<compile_context>
chip_gen: v5e
topology: v5e:2x2
jax: 0.10.0
libtpu: 0.0.40
codegen_flags: <defaults>
</compile_context>

<pallas_src>
import functools

import jax
import jax.numpy as jnp
from jax import lax
from jax.experimental import pallas as pl
from jax.experimental.pallas import tpu as pltpu

PAD = 3        # halo width = "same" padding of the largest (7x7) conv
LANES = 128    # TPU vreg lane width


def _round_up(v, m):
  return ((v + m - 1) // m) * m


# --------------------------------------------------------------------------
# Pallas kernel: full per-channel conv chain on BG_TILE lane-packed slabs
# --------------------------------------------------------------------------
def chain_kernel(x_ref, w1_ref, b1_ref, w2_ref, b2_ref, w3_ref, b3_ref,
                 out_ref, *, H, W, G, BG_TILE):
  """conv1(3x3) -> conv2(5x5) -> conv3(7x7) x3 for one (channel, bg tile).

  Slab layout (lane axis):
      [3 zero | img0 (W) | 3 zero | img1 (W) | 3 zero | ... | zero pad]
  Image rows occupy sublanes [PAD, PAD + H); everything else is zero.
  """
  c = pl.program_id(0)                       # channel selects the weight set
  Hpad, lanes = out_ref.shape[-2], out_ref.shape[-1]
  stride = W + PAD

  # ---- hoisted once per grid step (not per slab / per tap) ----------------
  # Interior mask: 1.0 at real pixels, 0.0 at halos / padding.  One multiply
  # per stage keeps every strip's zero halo intact so the next stage's
  # "same"-padding reads stay correct (no per-stage buffer re-zeroing).
  rows = lax.broadcasted_iota(jnp.int32, (Hpad, lanes), 0)
  cols = lax.broadcasted_iota(jnp.int32, (Hpad, lanes), 1)
  row_ok = (rows >= PAD) & (rows < PAD + H)
  col_ok = jnp.zeros((Hpad, lanes), dtype=jnp.bool_)
  for strip in range(G):                     # G <= 6, static unroll
    start = PAD + strip * stride
    col_ok = col_ok | ((cols >= start) & (cols < start + W))
  mask = jnp.where(row_ok & col_ok, 1.0, 0.0).astype(jnp.float32)

  # Scalar SMEM weight/bias reads, hoisted out of all loops.
  w1s = [w1_ref[c * 9 + t] for t in range(9)]
  w2s = [w2_ref[c * 25 + t] for t in range(25)]
  w3s = [w3_ref[c * 49 + t] for t in range(49)]
  bias1, bias2, bias3 = b1_ref[c], b2_ref[c], b3_ref[c]

  def stage(slab, ws, bias, k):
    """'same' kxk conv, rolls factored out of the tap loop.

    acc = sum_di roll_sub( sum_dj w[di,dj] * roll_lane(slab, p-dj), p-di )
    => k-1 lane rolls + k-1 sublane rolls (XLU), k^2 FMAs (VPU).
    """
    p = (k - 1) // 2
    lane_taps = []
    for dj in range(k):                      # lane-rolled copies, reused below
      ls = (p - dj) % lanes
      lane_taps.append(pltpu.roll(slab, shift=ls, axis=1) if ls else slab)
    acc = None
    for di in range(k):
      part = None
      for dj in range(k):
        term = ws[di * k + dj] * lane_taps[dj]
        part = term if part is None else part + term
      rs = (p - di) % Hpad
      part = pltpu.roll(part, shift=rs, axis=0) if rs else part
      acc = part if acc is None else acc + part
    return (acc + bias) * mask

  def do_slab(s):
    slab = x_ref[0, s]                       # (Hpad, 128) f32, halos already 0
    y = stage(slab, w1s, bias1, 3)
    y = stage(y, w2s, bias2, 5)
    y = stage(y, w3s, bias3, 7)              # conv3 applied three times,
    y = stage(y, w3s, bias3, 7)              # exactly as in the torch forward
    y = stage(y, w3s, bias3, 7)
    out_ref[0, s] = y.astype(out_ref.dtype)

  if BG_TILE == 1:
    do_slab(0)
  else:
    @pl.loop(0, BG_TILE)
    def _(s):
      do_slab(s)


def conv_chain_packed(x_packed, w1, b1, w2, b2, w3, b3, *, H, W, G):
  C, Bg, Hpad, lanes = x_packed.shape
  slab_bytes = Hpad * lanes * 4

  # BG_TILE: per-step block ~<= 1 MiB (safe on v7x's 64 MiB VMEM with in+out
  # double buffering, amortizes the ~0.35 us fixed grid-step overhead), and
  # keep >= 2 batch-group grid steps when possible so both v7x TCs get work.
  bg_tile = max(1, min(64, (1 << 20) // slab_bytes, Bg))
  n_bg = -(-Bg // bg_tile)
  if Bg >= 2 and n_bg < 2:
    bg_tile = -(-Bg // 2)
    n_bg = -(-Bg // bg_tile)
  Bg_pad = n_bg * bg_tile
  if Bg_pad != Bg:
    x_packed = jnp.pad(x_packed, ((0, 0), (0, Bg_pad - Bg), (0, 0), (0, 0)))

  kernel = functools.partial(chain_kernel, H=H, W=W, G=G, BG_TILE=bg_tile)
  # Whole-array SMEM specs: copied once, read as scalars inside the kernel.
  # TODO(synk): could become PrefetchScalarGridSpec(num_scalar_prefetch=6).
  smem = pl.BlockSpec(memory_space=pltpu.MemorySpace.SMEM)
  blk = pl.BlockSpec((1, bg_tile, Hpad, lanes), lambda c, bg: (c, bg, 0, 0))
  out = pl.pallas_call(
      kernel,
      out_shape=jax.ShapeDtypeStruct((C, Bg_pad, Hpad, lanes), x_packed.dtype),
      grid=(C, n_bg),
      in_specs=[blk, smem, smem, smem, smem, smem, smem],
      out_specs=blk,
      compiler_params=pltpu.CompilerParams(
          dimension_semantics=("parallel", "parallel"),
          vmem_limit_bytes=32 * 1024 * 1024),
  )(x_packed, w1, b1, w2, b2, w3, b3)
  return out[:, :Bg]


# --------------------------------------------------------------------------
# Wrapper-side layout plumbing (pure reshapes/pads, done once under jit)
# --------------------------------------------------------------------------
def pack_rgb(r, g, b):
  """(N,1,H,W) x3  ->  (3, Bg, Hpad, 128) lane-packed, zero-haloed slabs."""
  x = jnp.stack([r[:, 0], g[:, 0], b[:, 0]], axis=0).astype(jnp.float32)
  C, N, H, W = x.shape
  stride = W + PAD
  g_max = (LANES - PAD) // stride
  # TODO(synk): tile along W (extra grid axis with lane halos) for W > 122.
  assert g_max >= 1, "image width too large for a single 128-lane slab"
  G = min(g_max, N)
  Bg = -(-N // G)
  Hpad = _round_up(H + 2 * PAD, 8)
  x = jnp.pad(x, ((0, 0), (0, Bg * G - N), (0, 0), (0, PAD)))
  x = x.reshape(C, Bg, G, H, stride).transpose(0, 1, 3, 2, 4)
  x = x.reshape(C, Bg, H, G * stride)
  x = jnp.pad(x, ((0, 0), (0, 0), (PAD, Hpad - H - PAD),
                  (PAD, LANES - PAD - G * stride)))
  return x, G


def unpack_rgb(y, N, H, W, G):
  C, Bg, Hpad, lanes = y.shape
  stride = W + PAD
  y = y[:, :, PAD:PAD + H, PAD:PAD + G * stride]
  y = y.reshape(C, Bg, H, G, stride)[..., :W]
  y = y.transpose(0, 1, 3, 2, 4).reshape(C, Bg * G, H, W)[:, :N]
  return y[0][:, None], y[1][:, None], y[2][:, None]


def cnn_dpe_forward(params, r, g, b, s0, s1, s2):
  """r, g, b: (N,1,H,W) NCHW;  s0, s1, s2: (N,1).  Mirrors CNN_DPE.forward."""
  N, _, H, W = r.shape
  x_packed, G = pack_rgb(r, g, b)

  def flat(name):
    return jnp.stack([params[ch][name] for ch in ("r", "g", "b")]).reshape(-1)

  y_packed = conv_chain_packed(
      x_packed,
      flat("w1"), flat("b1"), flat("w2"), flat("b2"), flat("w3"), flat("b3"),
      H=H, W=W, G=G)
  r5, g5, b5 = unpack_rgb(y_packed, N, H, W, G)

  # F.linear((N,1), weight (1,)) -> (N,): a single scalar multiply per input;
  # plain JAX instead of three trivial kernel launches.
  s0o = s0[:, 0] * params["linear1"][0]
  s1o = s1[:, 0] * params["linear2"][0]
  s2o = s2[:, 0] * params["linear3"][0]
  return r5, g5, b5, s0o, s1o, s2o


# --------------------------------------------------------------------------
# Parameters (mirrors CNN_DPE.__init__) and a pure-JAX reference
# --------------------------------------------------------------------------
def conv_identity_filter(k):
  w = jnp.zeros((k, k), jnp.float32)
  return w.at[k // 2, k // 2].set(1.0)


def init_params():
  zero = jnp.zeros((1,), jnp.float32)
  chan = dict(w1=conv_identity_filter(3), b1=zero,
              w2=conv_identity_filter(5), b2=zero,
              w3=conv_identity_filter(7), b3=zero)
  lin = jnp.ones((1,), jnp.float32)          # torch.tensor([1.0])
  return {"r": dict(chan), "g": dict(chan), "b": dict(chan),
          "linear1": lin, "linear2": lin, "linear3": lin}


def random_params(key):
  ks = iter(jax.random.split(key, 32))
  def filt(k): return jax.random.normal(next(ks), (k, k), jnp.float32) / k
  def bias(): return 0.1 * jax.random.normal(next(ks), (1,), jnp.float32)
  p = {}
  for ch in ("r", "g", "b"):
    p[ch] = dict(w1=filt(3), b1=bias(), w2=filt(5), b2=bias(),
                 w3=filt(7), b3=bias())
  p["linear1"] = jax.random.normal(next(ks), (1,), jnp.float32)
  p["linear2"] = jax.random.normal(next(ks), (1,), jnp.float32)
  p["linear3"] = jax.random.normal(next(ks), (1,), jnp.float32)
  return p


def reference_forward(params, r, g, b, s0, s1, s2):
  def conv(x, w, bias, p):
    y = lax.conv_general_dilated(
        x, w[None, None], window_strides=(1, 1), padding=[(p, p), (p, p)],
        dimension_numbers=("NCHW", "OIHW", "NCHW"),
        precision=lax.Precision.HIGHEST)
    return y + bias[0]

  def chain(x, pc):
    y = conv(x, pc["w1"], pc["b1"], 1)
    y = conv(y, pc["w2"], pc["b2"], 2)
    y = conv(y, pc["w3"], pc["b3"], 3)
    y = conv(y, pc["w3"], pc["b3"], 3)
    y = conv(y, pc["w3"], pc["b3"], 3)
    return y

  return (chain(r, params["r"]), chain(g, params["g"]), chain(b, params["b"]),
          s0[:, 0] * params["linear1"][0],
          s1[:, 0] * params["linear2"][0],
          s2[:, 0] * params["linear3"][0])


# --------------------------------------------------------------------------
if __name__ == "__main__":
  key = jax.random.PRNGKey(0)
  kr, kg, kb, k0, k1, k2, kp = jax.random.split(key, 7)

  fwd = jax.jit(cnn_dpe_forward)
  ref = jax.jit(reference_forward)

  # ---- Test 1: small batch, module-default params (identity filters) ------
  N, H, W = 2, 16, 16
  r = jax.random.normal(kr, (N, 1, H, W), jnp.float32)
  g = jax.random.normal(kg, (N, 1, H, W), jnp.float32)
  b = jax.random.normal(kb, (N, 1, H, W), jnp.float32)
  s0 = jax.random.normal(k0, (N, 1), jnp.float32)
  s1 = jax.random.normal(k1, (N, 1), jnp.float32)
  s2 = jax.random.normal(k2, (N, 1), jnp.float32)

  params = init_params()
  r5, g5, b5, s0o, s1o, s2o = jax.block_until_ready(
      fwd(params, r, g, b, s0, s1, s2))
  assert r5.shape == (N, 1, H, W) and s0o.shape == (N,)
  assert jnp.allclose(r5, r, atol=1e-5)
  assert jnp.allclose(g5, g, atol=1e-5)
  assert jnp.allclose(b5, b, atol=1e-5)
  assert jnp.allclose(s0o, s0[:, 0]) and jnp.allclose(s1o, s1[:, 0])
  assert jnp.allclose(s2o, s2[:, 0])

  # ---- Test 2: small batch, random weights vs. lax.conv reference ---------
  rparams = random_params(kp)
  got = jax.block_until_ready(fwd(rparams, r, g, b, s0, s1, s2))
  want = jax.block_until_ready(ref(rparams, r, g, b, s0, s1, s2))
  for got_i, want_i in zip(got, want):
    assert jnp.allclose(got_i, want_i, atol=1e-3, rtol=1e-3)

  # ---- Test 3: larger batch -> exercises multi-strip lane packing (G=6),
  #      BG_TILE > 1 in-kernel slab loop and a multi-step bg grid axis. ------
  N2 = 16
  kr2, kg2, kb2 = jax.random.split(jax.random.PRNGKey(1), 3)
  r2 = jax.random.normal(kr2, (N2, 1, H, W), jnp.float32)
  g2 = jax.random.normal(kg2, (N2, 1, H, W), jnp.float32)
  b2 = jax.random.normal(kb2, (N2, 1, H, W), jnp.float32)
  s02 = jnp.ones((N2, 1), jnp.float32)
  s12 = jnp.ones((N2, 1), jnp.float32)
  s22 = jnp.ones((N2, 1), jnp.float32)
  got2 = jax.block_until_ready(fwd(rparams, r2, g2, b2, s02, s12, s22))
  want2 = jax.block_until_ready(ref(rparams, r2, g2, b2, s02, s12, s22))
  for got_i, want_i in zip(got2, want2):
    assert jnp.allclose(got_i, want_i, atol=1e-3, rtol=1e-3)

  print("KERNEL_OK")
</pallas_src>

<mosaic_0001>
module attributes {stable_mosaic.version = 11 : i64} {
  func.func @chain_kernel(%arg0: i32, %arg1: i32, %arg2: memref<1x1x24x128xf32, #tpu.memory_space<vmem>>, %arg3: memref<27xf32, #tpu.memory_space<smem>>, %arg4: memref<3xf32, #tpu.memory_space<smem>>, %arg5: memref<75xf32, #tpu.memory_space<smem>>, %arg6: memref<3xf32, #tpu.memory_space<smem>>, %arg7: memref<147xf32, #tpu.memory_space<smem>>, %arg8: memref<3xf32, #tpu.memory_space<smem>>, %arg9: memref<1x1x24x128xf32, #tpu.memory_space<vmem>>) attributes {dimension_semantics = [#tpu.dimension_semantics<parallel>, #tpu.dimension_semantics<parallel>], iteration_bounds = array<i64: 3, 1>, scalar_prefetch = 0 : i64, scratch_operands = 0 : i64, tpu.core_type = #tpu.core_type<tc>, window_params = [{transform_indices = @transform_0, window_bounds = array<i64: 1, 1, 24, 128>}, {transform_indices = @transform_1, window_bounds = array<i64: 27>}, {transform_indices = @transform_2, window_bounds = array<i64: 3>}, {transform_indices = @transform_3, window_bounds = array<i64: 75>}, {transform_indices = @transform_4, window_bounds = array<i64: 3>}, {transform_indices = @transform_5, window_bounds = array<i64: 147>}, {transform_indices = @transform_6, window_bounds = array<i64: 3>}, {transform_indices = @transform_7, window_bounds = array<i64: 1, 1, 24, 128>}]} {
    %0 = tpu.iota {dimensions = array<i32: 0>} : vector<24x128xi32>
    %1 = tpu.iota {dimensions = array<i32: 1>} : vector<24x128xi32>
    %c3_i32 = arith.constant 3 : i32
    %2 = vector.broadcast %c3_i32 : i32 to vector<24x128xi32>
    %3 = arith.cmpi sge, %0, %2 : vector<24x128xi32>
    %c19_i32 = arith.constant 19 : i32
    %4 = vector.broadcast %c19_i32 : i32 to vector<24x128xi32>
    %5 = arith.cmpi slt, %0, %4 : vector<24x128xi32>
    %6 = arith.andi %3, %5 : vector<24x128xi1>
    %false = arith.constant false
    %7 = vector.broadcast %false : i1 to vector<24x128xi1>
    %c3_i32_0 = arith.constant 3 : i32
    %8 = vector.broadcast %c3_i32_0 : i32 to vector<24x128xi32>
    %9 = arith.cmpi sge, %1, %8 : vector<24x128xi32>
    %c19_i32_1 = arith.constant 19 : i32
    %10 = vector.broadcast %c19_i32_1 : i32 to vector<24x128xi32>
    %11 = arith.cmpi slt, %1, %10 : vector<24x128xi32>
    %12 = arith.andi %9, %11 : vector<24x128xi1>
    %13 = arith.ori %7, %12 : vector<24x128xi1>
    %c22_i32 = arith.constant 22 : i32
    %14 = vector.broadcast %c22_i32 : i32 to vector<24x128xi32>
    %15 = arith.cmpi sge, %1, %14 : vector<24x128xi32>
    %c38_i32 = arith.constant 38 : i32
    %16 = vector.broadcast %c38_i32 : i32 to vector<24x128xi32>
    %17 = arith.cmpi slt, %1, %16 : vector<24x128xi32>
    %18 = arith.andi %15, %17 : vector<24x128xi1>
    %19 = arith.ori %13, %18 : vector<24x128xi1>
    %20 = arith.andi %6, %19 : vector<24x128xi1>
    %cst = arith.constant 1.000000e+00 : f32
    %cst_2 = arith.constant 0.000000e+00 : f32
    %21 = vector.broadcast %cst : f32 to vector<24x128xf32>
    %22 = vector.broadcast %cst_2 : f32 to vector<24x128xf32>
    %23 = arith.select %20, %21, %22 : vector<24x128xi1>, vector<24x128xf32>
    %c9_i32 = arith.constant 9 : i32
    %24 = arith.muli %arg0, %c9_i32 : i32
    %c0_i32 = arith.constant 0 : i32
    %25 = arith.addi %24, %c0_i32 : i32
    %26 = arith.index_cast %25 : i32 to index
    %27 = memref.load %arg3[%26] : memref<27xf32, #tpu.memory_space<smem>>
    %c9_i32_3 = arith.constant 9 : i32
    %28 = arith.muli %arg0, %c9_i32_3 : i32
    %c1_i32 = arith.constant 1 : i32
    %29 = arith.addi %28, %c1_i32 : i32
    %30 = arith.index_cast %29 : i32 to index
    %31 = memref.load %arg3[%30] : memref<27xf32, #tpu.memory_space<smem>>
    %c9_i32_4 = arith.constant 9 : i32
    %32 = arith.muli %arg0, %c9_i32_4 : i32
    %c2_i32 = arith.constant 2 : i32
    %33 = arith.addi %32, %c2_i32 : i32
    %34 = arith.index_cast %33 : i32 to index
    %35 = memref.load %arg3[%34] : memref<27xf32, #tpu.memory_space<smem>>
    %c9_i32_5 = arith.constant 9 : i32
    %36 = arith.muli %arg0, %c9_i32_5 : i32
    %c3_i32_6 = arith.constant 3 : i32
    %37 = arith.addi %36, %c3_i32_6 : i32
    %38 = arith.index_cast %37 : i32 to index
    %39 = memref.load %arg3[%38] : memref<27xf32, #tpu.memory_space<smem>>
    %c9_i32_7 = arith.constant 9 : i32
    %40 = arith.muli %arg0, %c9_i32_7 : i32
    %c4_i32 = arith.constant 4 : i32
    %41 = arith.addi %40, %c4_i32 : i32
    %42 = arith.index_cast %41 : i32 to index
    %43 = memref.load %arg3[%42] : memref<27xf32, #tpu.memory_space<smem>>
    %c9_i32_8 = arith.constant 9 : i32
    %44 = arith.muli %arg0, %c9_i32_8 : i32
    %c5_i32 = arith.constant 5 : i32
    %45 = arith.addi %44, %c5_i32 : i32
    %46 = arith.index_cast %45 : i32 to index
    %47 = memref.load %arg3[%46] : memref<27xf32, #tpu.memory_space<smem>>
    %c9_i32_9 = arith.constant 9 : i32
    %48 = arith.muli %arg0, %c9_i32_9 : i32
    %c6_i32 = arith.constant 6 : i32
    %49 = arith.addi %48, %c6_i32 : i32
    %50 = arith.index_cast %49 : i32 to index
    %51 = memref.load %arg3[%50] : memref<27xf32, #tpu.memory_space<smem>>
    %c9_i32_10 = arith.constant 9 : i32
    %52 = arith.muli %arg0, %c9_i32_10 : i32
    %c7_i32 = arith.constant 7 : i32
    %53 = arith.addi %52, %c7_i32 : i32
    %54 = arith.index_cast %53 : i32 to index
    %55 = memref.load %arg3[%54] : memref<27xf32, #tpu.memory_space<smem>>
    %c9_i32_11 = arith.constant 9 : i32
    %56 = arith.muli %arg0, %c9_i32_11 : i32
    %c8_i32 = arith.constant 8 : i32
    %57 = arith.addi %56, %c8_i32 : i32
    %58 = arith.index_cast %57 : i32 to index
    %59 = memref.load %arg3[%58] : memref<27xf32, #tpu.memory_space<smem>>
    %c25_i32 = arith.constant 25 : i32
    %60 = arith.muli %arg0, %c25_i32 : i32
    %c0_i32_12 = arith.constant 0 : i32
    %61 = arith.addi %60, %c0_i32_12 : i32
    %62 = arith.index_cast %61 : i32 to index
    %63 = memref.load %arg5[%62] : memref<75xf32, #tpu.memory_space<smem>>
    %c25_i32_13 = arith.constant 25 : i32
    %64 = arith.muli %arg0, %c25_i32_13 : i32
    %c1_i32_14 = arith.constant 1 : i32
    %65 = arith.addi %64, %c1_i32_14 : i32
    %66 = arith.index_cast %65 : i32 to index
    %67 = memref.load %arg5[%66] : memref<75xf32, #tpu.memory_space<smem>>
    %c25_i32_15 = arith.constant 25 : i32
    %68 = arith.muli %arg0, %c25_i32_15 : i32
    %c2_i32_16 = arith.constant 2 : i32
    %69 = arith.addi %68, %c2_i32_16 : i32
    %70 = arith.index_cast %69 : i32 to index
    %71 = memref.load %arg5[%70] : memref<75xf32, #tpu.memory_space<smem>>
    %c25_i32_17 = arith.constant 25 : i32
    %72 = arith.muli %arg0, %c25_i32_17 : i32
    %c3_i32_18 = arith.constant 3 : i32
    %73 = arith.addi %72, %c3_i32_18 : i32
    %74 = arith.index_cast %73 : i32 to index
    %75 = memref.load %arg5[%74] : memref<75xf32, #tpu.memory_space<smem>>
    %c25_i32_19 = arith.constant 25 : i32
    %76 = arith.muli %arg0, %c25_i32_19 : i32
    %c4_i32_20 = arith.constant 4 : i32
    %77 = arith.addi %76, %c4_i32_20 : i32
    %78 = arith.index_cast %77 : i32 to index
    %79 = memref.load %arg5[%78] : memref<75xf32, #tpu.memory_space<smem>>
    %c25_i32_21 = arith.constant 25 : i32
    %80 = arith.muli %arg0, %c25_i32_21 : i32
    %c5_i32_22 = arith.constant 5 : i32
    %81 = arith.addi %80, %c5_i32_22 : i32
    %82 = arith.index_cast %81 : i32 to index
    %83 = memref.load %arg5[%82] : memref<75xf32, #tpu.memory_space<smem>>
    %c25_i32_23 = arith.constant 25 : i32
    %84 = arith.muli %arg0, %c25_i32_23 : i32
    %c6_i32_24 = arith.constant 6 : i32
    %85 = arith.addi %84, %c6_i32_24 : i32
    %86 = arith.index_cast %85 : i32 to index
    %87 = memref.load %arg5[%86] : memref<75xf32, #tpu.memory_space<smem>>
    %c25_i32_25 = arith.constant 25 : i32
    %88 = arith.muli %arg0, %c25_i32_25 : i32
    %c7_i32_26 = arith.constant 7 : i32
    %89 = arith.addi %88, %c7_i32_26 : i32
    %90 = arith.index_cast %89 : i32 to index
    %91 = memref.load %arg5[%90] : memref<75xf32, #tpu.memory_space<smem>>
    %c25_i32_27 = arith.constant 25 : i32
    %92 = arith.muli %arg0, %c25_i32_27 : i32
    %c8_i32_28 = arith.constant 8 : i32
    %93 = arith.addi %92, %c8_i32_28 : i32
    %94 = arith.index_cast %93 : i32 to index
    %95 = memref.load %arg5[%94] : memref<75xf32, #tpu.memory_space<smem>>
    %c25_i32_29 = arith.constant 25 : i32
    %96 = arith.muli %arg0, %c25_i32_29 : i32
    %c9_i32_30 = arith.constant 9 : i32
    %97 = arith.addi %96, %c9_i32_30 : i32
    %98 = arith.index_cast %97 : i32 to index
    %99 = memref.load %arg5[%98] : memref<75xf32, #tpu.memory_space<smem>>
    %c25_i32_31 = arith.constant 25 : i32
    %100 = arith.muli %arg0, %c25_i32_31 : i32
    %c10_i32 = arith.constant 10 : i32
    %101 = arith.addi %100, %c10_i32 : i32
    %102 = arith.index_cast %101 : i32 to index
    %103 = memref.load %arg5[%102] : memref<75xf32, #tpu.memory_space<smem>>
    %c25_i32_32 = arith.constant 25 : i32
    %104 = arith.muli %arg0, %c25_i32_32 : i32
    %c11_i32 = arith.constant 11 : i32
    %105 = arith.addi %104, %c11_i32 : i32
    %106 = arith.index_cast %105 : i32 to index
    %107 = memref.load %arg5[%106] : memref<75xf32, #tpu.memory_space<smem>>
    %c25_i32_33 = arith.constant 25 : i32
    %108 = arith.muli %arg0, %c25_i32_33 : i32
    %c12_i32 = arith.constant 12 : i32
    %109 = arith.addi %108, %c12_i32 : i32
    %110 = arith.index_cast %109 : i32 to index
    %111 = memref.load %arg5[%110] : memref<75xf32, #tpu.memory_space<smem>>
    %c25_i32_34 = arith.constant 25 : i32
    %112 = arith.muli %arg0, %c25_i32_34 : i32
    %c13_i32 = arith.constant 13 : i32
    %113 = arith.addi %112, %c13_i32 : i32
    %114 = arith.index_cast %113 : i32 to index
    %115 = memref.load %arg5[%114] : memref<75xf32, #tpu.memory_space<smem>>
    %c25_i32_35 = arith.constant 25 : i32
    %116 = arith.muli %arg0, %c25_i32_35 : i32
    %c14_i32 = arith.constant 14 : i32
    %117 = arith.addi %116, %c14_i32 : i32
    %118 = arith.index_cast %117 : i32 to index
    %119 = memref.load %arg5[%118] : memref<75xf32, #tpu.memory_space<smem>>
    %c25_i32_36 = arith.constant 25 : i32
    %120 = arith.muli %arg0, %c25_i32_36 : i32
    %c15_i32 = arith.constant 15 : i32
    %121 = arith.addi %120, %c15_i32 : i32
    %122 = arith.index_cast %121 : i32 to index
    %123 = memref.load %arg5[%122] : memref<75xf32, #tpu.memory_space<smem>>
    %c25_i32_37 = arith.constant 25 : i32
    %124 = arith.muli %arg0, %c25_i32_37 : i32
    %c16_i32 = arith.constant 16 : i32
    %125 = arith.addi %124, %c16_i32 : i32
    %126 = arith.index_cast %125 : i32 to index
    %127 = memref.load %arg5[%126] : memref<75xf32, #tpu.memory_space<smem>>
    %c25_i32_38 = arith.constant 25 : i32
    %128 = arith.muli %arg0, %c25_i32_38 : i32
    %c17_i32 = arith.constant 17 : i32
    %129 = arith.addi %128, %c17_i32 : i32
    %130 = arith.index_cast %129 : i32 to index
    %131 = memref.load %arg5[%130] : memref<75xf32, #tpu.memory_space<smem>>
    %c25_i32_39 = arith.constant 25 : i32
    %132 = arith.muli %arg0, %c25_i32_39 : i32
    %c18_i32 = arith.constant 18 : i32
    %133 = arith.addi %132, %c18_i32 : i32
    %134 = arith.index_cast %133 : i32 to index
    %135 = memref.load %arg5[%134] : memref<75xf32, #tpu.memory_space<smem>>
    %c25_i32_40 = arith.constant 25 : i32
    %136 = arith.muli %arg0, %c25_i32_40 : i32
    %c19_i32_41 = arith.constant 19 : i32
    %137 = arith.addi %136, %c19_i32_41 : i32
    %138 = arith.index_cast %137 : i32 to index
    %139 = memref.load %arg5[%138] : memref<75xf32, #tpu.memory_space<smem>>
    %c25_i32_42 = arith.constant 25 : i32
    %140 = arith.muli %arg0, %c25_i32_42 : i32
    %c20_i32 = arith.constant 20 : i32
    %141 = arith.addi %140, %c20_i32 : i32
    %142 = arith.index_cast %141 : i32 to index
    %143 = memref.load %arg5[%142] : memref<75xf32, #tpu.memory_space<smem>>
    %c25_i32_43 = arith.constant 25 : i32
    %144 = arith.muli %arg0, %c25_i32_43 : i32
    %c21_i32 = arith.constant 21 : i32
    %145 = arith.addi %144, %c21_i32 : i32
    %146 = arith.index_cast %145 : i32 to index
    %147 = memref.load %arg5[%146] : memref<75xf32, #tpu.memory_space<smem>>
    %c25_i32_44 = arith.constant 25 : i32
    %148 = arith.muli %arg0, %c25_i32_44 : i32
    %c22_i32_45 = arith.constant 22 : i32
    %149 = arith.addi %148, %c22_i32_45 : i32
    %150 = arith.index_cast %149 : i32 to index
    %151 = memref.load %arg5[%150] : memref<75xf32, #tpu.memory_space<smem>>
    %c25_i32_46 = arith.constant 25 : i32
    %152 = arith.muli %arg0, %c25_i32_46 : i32
    %c23_i32 = arith.constant 23 : i32
    %153 = arith.addi %152, %c23_i32 : i32
    %154 = arith.index_cast %153 : i32 to index
    %155 = memref.load %arg5[%154] : memref<75xf32, #tpu.memory_space<smem>>
    %c25_i32_47 = arith.constant 25 : i32
    %156 = arith.muli %arg0, %c25_i32_47 : i32
    %c24_i32 = arith.constant 24 : i32
    %157 = arith.addi %156, %c24_i32 : i32
    %158 = arith.index_cast %157 : i32 to index
    %159 = memref.load %arg5[%158] : memref<75xf32, #tpu.memory_space<smem>>
    %c49_i32 = arith.constant 49 : i32
    %160 = arith.muli %arg0, %c49_i32 : i32
    %c0_i32_48 = arith.constant 0 : i32
    %161 = arith.addi %160, %c0_i32_48 : i32
    %162 = arith.index_cast %161 : i32 to index
    %163 = memref.load %arg7[%162] : memref<147xf32, #tpu.memory_space<smem>>
    %c49_i32_49 = arith.constant 49 : i32
    %164 = arith.muli %arg0, %c49_i32_49 : i32
    %c1_i32_50 = arith.constant 1 : i32
    %165 = arith.addi %164, %c1_i32_50 : i32
    %166 = arith.index_cast %165 : i32 to index
    %167 = memref.load %arg7[%166] : memref<147xf32, #tpu.memory_space<smem>>
    %c49_i32_51 = arith.constant 49 : i32
    %168 = arith.muli %arg0, %c49_i32_51 : i32
    %c2_i32_52 = arith.constant 2 : i32
    %169 = arith.addi %168, %c2_i32_52 : i32
    %170 = arith.index_cast %169 : i32 to index
    %171 = memref.load %arg7[%170] : memref<147xf32, #tpu.memory_space<smem>>
    %c49_i32_53 = arith.constant 49 : i32
    %172 = arith.muli %arg0, %c49_i32_53 : i32
    %c3_i32_54 = arith.constant 3 : i32
    %173 = arith.addi %172, %c3_i32_54 : i32
    %174 = arith.index_cast %173 : i32 to index
    %175 = memref.load %arg7[%174] : memref<147xf32, #tpu.memory_space<smem>>
    %c49_i32_55 = arith.constant 49 : i32
    %176 = arith.muli %arg0, %c49_i32_55 : i32
    %c4_i32_56 = arith.constant 4 : i32
    %177 = arith.addi %176, %c4_i32_56 : i32
    %178 = arith.index_cast %177 : i32 to index
    %179 = memref.load %arg7[%178] : memref<147xf32, #tpu.memory_space<smem>>
    %c49_i32_57 = arith.constant 49 : i32
    %180 = arith.muli %arg0, %c49_i32_57 : i32
    %c5_i32_58 = arith.constant 5 : i32
    %181 = arith.addi %180, %c5_i32_58 : i32
    %182 = arith.index_cast %181 : i32 to index
    %183 = memref.load %arg7[%182] : memref<147xf32, #tpu.memory_space<smem>>
    %c49_i32_59 = arith.constant 49 : i32
    %184 = arith.muli %arg0, %c49_i32_59 : i32
    %c6_i32_60 = arith.constant 6 : i32
    %185 = arith.addi %184, %c6_i32_60 : i32
    %186 = arith.index_cast %185 : i32 to index
    %187 = memref.load %arg7[%186] : memref<147xf32, #tpu.memory_space<smem>>
    %c49_i32_61 = arith.constant 49 : i32
    %188 = arith.muli %arg0, %c49_i32_61 : i32
    %c7_i32_62 = arith.constant 7 : i32
    %189 = arith.addi %188, %c7_i32_62 : i32
    %190 = arith.index_cast %189 : i32 to index
    %191 = memref.load %arg7[%190] : memref<147xf32, #tpu.memory_space<smem>>
    %c49_i32_63 = arith.constant 49 : i32
    %192 = arith.muli %arg0, %c49_i32_63 : i32
    %c8_i32_64 = arith.constant 8 : i32
    %193 = arith.addi %192, %c8_i32_64 : i32
    %194 = arith.index_cast %193 : i32 to index
    %195 = memref.load %arg7[%194] : memref<147xf32, #tpu.memory_space<smem>>
    %c49_i32_65 = arith.constant 49 : i32
    %196 = arith.muli %arg0, %c49_i32_65 : i32
    %c9_i32_66 = arith.constant 9 : i32
    %197 = arith.addi %196, %c9_i32_66 : i32
    %198 = arith.index_cast %197 : i32 to index
    %199 = memref.load %arg7[%198] : memref<147xf32, #tpu.memory_space<smem>>
    %c49_i32_67 = arith.constant 49 : i32
    %200 = arith.muli %arg0, %c49_i32_67 : i32
    %c10_i32_68 = arith.constant 10 : i32
    %201 = arith.addi %200, %c10_i32_68 : i32
    %202 = arith.index_cast %201 : i32 to index
    %203 = memref.load %arg7[%202] : memref<147xf32, #tpu.memory_space<smem>>
    %c49_i32_69 = arith.constant 49 : i32
    %204 = arith.muli %arg0, %c49_i32_69 : i32
    %c11_i32_70 = arith.constant 11 : i32
    %205 = arith.addi %204, %c11_i32_70 : i32
    %206 = arith.index_cast %205 : i32 to index
    %207 = memref.load %arg7[%206] : memref<147xf32, #tpu.memory_space<smem>>
    %c49_i32_71 = arith.constant 49 : i32
    %208 = arith.muli %arg0, %c49_i32_71 : i32
    %c12_i32_72 = arith.constant 12 : i32
    %209 = arith.addi %208, %c12_i32_72 : i32
    %210 = arith.index_cast %209 : i32 to index
    %211 = memref.load %arg7[%210] : memref<147xf32, #tpu.memory_space<smem>>
    %c49_i32_73 = arith.constant 49 : i32
    %212 = arith.muli %arg0, %c49_i32_73 : i32
    %c13_i32_74 = arith.constant 13 : i32
    %213 = arith.addi %212, %c13_i32_74 : i32
    %214 = arith.index_cast %213 : i32 to index
    %215 = memref.load %arg7[%214] : memref<147xf32, #tpu.memory_space<smem>>
    %c49_i32_75 = arith.constant 49 : i32
    %216 = arith.muli %arg0, %c49_i32_75 : i32
    %c14_i32_76 = arith.constant 14 : i32
    %217 = arith.addi %216, %c14_i32_76 : i32
    %218 = arith.index_cast %217 : i32 to index
    %219 = memref.load %arg7[%218] : memref<147xf32, #tpu.memory_space<smem>>
    %c49_i32_77 = arith.constant 49 : i32
    %220 = arith.muli %arg0, %c49_i32_77 : i32
    %c15_i32_78 = arith.constant 15 : i32
    %221 = arith.addi %220, %c15_i32_78 : i32
    %222 = arith.index_cast %221 : i32 to index
    %223 = memref.load %arg7[%222] : memref<147xf32, #tpu.memory_space<smem>>
    %c49_i32_79 = arith.constant 49 : i32
    %224 = arith.muli %arg0, %c49_i32_79 : i32
    %c16_i32_80 = arith.constant 16 : i32
    %225 = arith.addi %224, %c16_i32_80 : i32
    %226 = arith.index_cast %225 : i32 to index
    %227 = memref.load %arg7[%226] : memref<147xf32, #tpu.memory_space<smem>>
    %c49_i32_81 = arith.constant 49 : i32
    %228 = arith.muli %arg0, %c49_i32_81 : i32
    %c17_i32_82 = arith.constant 17 : i32
    %229 = arith.addi %228, %c17_i32_82 : i32
    %230 = arith.index_cast %229 : i32 to index
    %231 = memref.load %arg7[%230] : memref<147xf32, #tpu.memory_space<smem>>
    %c49_i32_83 = arith.constant 49 : i32
    %232 = arith.muli %arg0, %c49_i32_83 : i32
    %c18_i32_84 = arith.constant 18 : i32
    %233 = arith.addi %232, %c18_i32_84 : i32
    %234 = arith.index_cast %233 : i32 to index
    %235 = memref.load %arg7[%234] : memref<147xf32, #tpu.memory_space<smem>>
    %c49_i32_85 = arith.constant 49 : i32
    %236 = arith.muli %arg0, %c49_i32_85 : i32
    %c19_i32_86 = arith.constant 19 : i32
    %237 = arith.addi %236, %c19_i32_86 : i32
    %238 = arith.index_cast %237 : i32 to index
    %239 = memref.load %arg7[%238] : memref<147xf32, #tpu.memory_space<smem>>
    %c49_i32_87 = arith.constant 49 : i32
    %240 = arith.muli %arg0, %c49_i32_87 : i32
    %c20_i32_88 = arith.constant 20 : i32
    %241 = arith.addi %240, %c20_i32_88 : i32
    %242 = arith.index_cast %241 : i32 to index
    %243 = memref.load %arg7[%242] : memref<147xf32, #tpu.memory_space<smem>>
    %c49_i32_89 = arith.constant 49 : i32
    %244 = arith.muli %arg0, %c49_i32_89 : i32
    %c21_i32_90 = arith.constant 21 : i32
    %245 = arith.addi %244, %c21_i32_90 : i32
    %246 = arith.index_cast %245 : i32 to index
    %247 = memref.load %arg7[%246] : memref<147xf32, #tpu.memory_space<smem>>
    %c49_i32_91 = arith.constant 49 : i32
    %248 = arith.muli %arg0, %c49_i32_91 : i32
    %c22_i32_92 = arith.constant 22 : i32
    %249 = arith.addi %248, %c22_i32_92 : i32
    %250 = arith.index_cast %249 : i32 to index
    %251 = memref.load %arg7[%250] : memref<147xf32, #tpu.memory_space<smem>>
    %c49_i32_93 = arith.constant 49 : i32
    %252 = arith.muli %arg0, %c49_i32_93 : i32
    %c23_i32_94 = arith.constant 23 : i32
    %253 = arith.addi %252, %c23_i32_94 : i32
    %254 = arith.index_cast %253 : i32 to index
    %255 = memref.load %arg7[%254] : memref<147xf32, #tpu.memory_space<smem>>
    %c49_i32_95 = arith.constant 49 : i32
    %256 = arith.muli %arg0, %c49_i32_95 : i32
    %c24_i32_96 = arith.constant 24 : i32
    %257 = arith.addi %256, %c24_i32_96 : i32
    %258 = arith.index_cast %257 : i32 to index
    %259 = memref.load %arg7[%258] : memref<147xf32, #tpu.memory_space<smem>>
    %c49_i32_97 = arith.constant 49 : i32
    %260 = arith.muli %arg0, %c49_i32_97 : i32
    %c25_i32_98 = arith.constant 25 : i32
    %261 = arith.addi %260, %c25_i32_98 : i32
    %262 = arith.index_cast %261 : i32 to index
    %263 = memref.load %arg7[%262] : memref<147xf32, #tpu.memory_space<smem>>
    %c49_i32_99 = arith.constant 49 : i32
    %264 = arith.muli %arg0, %c49_i32_99 : i32
    %c26_i32 = arith.constant 26 : i32
    %265 = arith.addi %264, %c26_i32 : i32
    %266 = arith.index_cast %265 : i32 to index
    %267 = memref.load %arg7[%266] : memref<147xf32, #tpu.memory_space<smem>>
    %c49_i32_100 = arith.constant 49 : i32
    %268 = arith.muli %arg0, %c49_i32_100 : i32
    %c27_i32 = arith.constant 27 : i32
    %269 = arith.addi %268, %c27_i32 : i32
    %270 = arith.index_cast %269 : i32 to index
    %271 = memref.load %arg7[%270] : memref<147xf32, #tpu.memory_space<smem>>
    %c49_i32_101 = arith.constant 49 : i32
    %272 = arith.muli %arg0, %c49_i32_101 : i32
    %c28_i32 = arith.constant 28 : i32
    %273 = arith.addi %272, %c28_i32 : i32
    %274 = arith.index_cast %273 : i32 to index
    %275 = memref.load %arg7[%274] : memref<147xf32, #tpu.memory_space<smem>>
    %c49_i32_102 = arith.constant 49 : i32
    %276 = arith.muli %arg0, %c49_i32_102 : i32
    %c29_i32 = arith.constant 29 : i32
    %277 = arith.addi %276, %c29_i32 : i32
    %278 = arith.index_cast %277 : i32 to index
    %279 = memref.load %arg7[%278] : memref<147xf32, #tpu.memory_space<smem>>
    %c49_i32_103 = arith.constant 49 : i32
    %280 = arith.muli %arg0, %c49_i32_103 : i32
    %c30_i32 = arith.constant 30 : i32
    %281 = arith.addi %280, %c30_i32 : i32
    %282 = arith.index_cast %281 : i32 to index
    %283 = memref.load %arg7[%282] : memref<147xf32, #tpu.memory_space<smem>>
    %c49_i32_104 = arith.constant 49 : i32
    %284 = arith.muli %arg0, %c49_i32_104 : i32
    %c31_i32 = arith.constant 31 : i32
    %285 = arith.addi %284, %c31_i32 : i32
    %286 = arith.index_cast %285 : i32 to index
    %287 = memref.load %arg7[%286] : memref<147xf32, #tpu.memory_space<smem>>
    %c49_i32_105 = arith.constant 49 : i32
    %288 = arith.muli %arg0, %c49_i32_105 : i32
    %c32_i32 = arith.constant 32 : i32
    %289 = arith.addi %288, %c32_i32 : i32
    %290 = arith.index_cast %289 : i32 to index
    %291 = memref.load %arg7[%290] : memref<147xf32, #tpu.memory_space<smem>>
    %c49_i32_106 = arith.constant 49 : i32
    %292 = arith.muli %arg0, %c49_i32_106 : i32
    %c33_i32 = arith.constant 33 : i32
    %293 = arith.addi %292, %c33_i32 : i32
    %294 = arith.index_cast %293 : i32 to index
    %295 = memref.load %arg7[%294] : memref<147xf32, #tpu.memory_space<smem>>
    %c49_i32_107 = arith.constant 49 : i32
    %296 = arith.muli %arg0, %c49_i32_107 : i32
    %c34_i32 = arith.constant 34 : i32
    %297 = arith.addi %296, %c34_i32 : i32
    %298 = arith.index_cast %297 : i32 to index
    %299 = memref.load %arg7[%298] : memref<147xf32, #tpu.memory_space<smem>>
    %c49_i32_108 = arith.constant 49 : i32
    %300 = arith.muli %arg0, %c49_i32_108 : i32
    %c35_i32 = arith.constant 35 : i32
    %301 = arith.addi %300, %c35_i32 : i32
    %302 = arith.index_cast %301 : i32 to index
    %303 = memref.load %arg7[%302] : memref<147xf32, #tpu.memory_space<smem>>
    %c49_i32_109 = arith.constant 49 : i32
    %304 = arith.muli %arg0, %c49_i32_109 : i32
    %c36_i32 = arith.constant 36 : i32
    %305 = arith.addi %304, %c36_i32 : i32
    %306 = arith.index_cast %305 : i32 to index
    %307 = memref.load %arg7[%306] : memref<147xf32, #tpu.memory_space<smem>>
    %c49_i32_110 = arith.constant 49 : i32
    %308 = arith.muli %arg0, %c49_i32_110 : i32
    %c37_i32 = arith.constant 37 : i32
    %309 = arith.addi %308, %c37_i32 : i32
    %310 = arith.index_cast %309 : i32 to index
    %311 = memref.load %arg7[%310] : memref<147xf32, #tpu.memory_space<smem>>
    %c49_i32_111 = arith.constant 49 : i32
    %312 = arith.muli %arg0, %c49_i32_111 : i32
    %c38_i32_112 = arith.constant 38 : i32
    %313 = arith.addi %312, %c38_i32_112 : i32
    %314 = arith.index_cast %313 : i32 to index
    %315 = memref.load %arg7[%314] : memref<147xf32, #tpu.memory_space<smem>>
    %c49_i32_113 = arith.constant 49 : i32
    %316 = arith.muli %arg0, %c49_i32_113 : i32
    %c39_i32 = arith.constant 39 : i32
    %317 = arith.addi %316, %c39_i32 : i32
    %318 = arith.index_cast %317 : i32 to index
    %319 = memref.load %arg7[%318] : memref<147xf32, #tpu.memory_space<smem>>
    %c49_i32_114 = arith.constant 49 : i32
    %320 = arith.muli %arg0, %c49_i32_114 : i32
    %c40_i32 = arith.constant 40 : i32
    %321 = arith.addi %320, %c40_i32 : i32
    %322 = arith.index_cast %321 : i32 to index
    %323 = memref.load %arg7[%322] : memref<147xf32, #tpu.memory_space<smem>>
    %c49_i32_115 = arith.constant 49 : i32
    %324 = arith.muli %arg0, %c49_i32_115 : i32
    %c41_i32 = arith.constant 41 : i32
    %325 = arith.addi %324, %c41_i32 : i32
    %326 = arith.index_cast %325 : i32 to index
    %327 = memref.load %arg7[%326] : memref<147xf32, #tpu.memory_space<smem>>
    %c49_i32_116 = arith.constant 49 : i32
    %328 = arith.muli %arg0, %c49_i32_116 : i32
    %c42_i32 = arith.constant 42 : i32
    %329 = arith.addi %328, %c42_i32 : i32
    %330 = arith.index_cast %329 : i32 to index
    %331 = memref.load %arg7[%330] : memref<147xf32, #tpu.memory_space<smem>>
    %c49_i32_117 = arith.constant 49 : i32
    %332 = arith.muli %arg0, %c49_i32_117 : i32
    %c43_i32 = arith.constant 43 : i32
    %333 = arith.addi %332, %c43_i32 : i32
    %334 = arith.index_cast %333 : i32 to index
    %335 = memref.load %arg7[%334] : memref<147xf32, #tpu.memory_space<smem>>
    %c49_i32_118 = arith.constant 49 : i32
    %336 = arith.muli %arg0, %c49_i32_118 : i32
    %c44_i32 = arith.constant 44 : i32
    %337 = arith.addi %336, %c44_i32 : i32
    %338 = arith.index_cast %337 : i32 to index
    %339 = memref.load %arg7[%338] : memref<147xf32, #tpu.memory_space<smem>>
    %c49_i32_119 = arith.constant 49 : i32
    %340 = arith.muli %arg0, %c49_i32_119 : i32
    %c45_i32 = arith.constant 45 : i32
    %341 = arith.addi %340, %c45_i32 : i32
    %342 = arith.index_cast %341 : i32 to index
    %343 = memref.load %arg7[%342] : memref<147xf32, #tpu.memory_space<smem>>
    %c49_i32_120 = arith.constant 49 : i32
    %344 = arith.muli %arg0, %c49_i32_120 : i32
    %c46_i32 = arith.constant 46 : i32
    %345 = arith.addi %344, %c46_i32 : i32
    %346 = arith.index_cast %345 : i32 to index
    %347 = memref.load %arg7[%346] : memref<147xf32, #tpu.memory_space<smem>>
    %c49_i32_121 = arith.constant 49 : i32
    %348 = arith.muli %arg0, %c49_i32_121 : i32
    %c47_i32 = arith.constant 47 : i32
    %349 = arith.addi %348, %c47_i32 : i32
    %350 = arith.index_cast %349 : i32 to index
    %351 = memref.load %arg7[%350] : memref<147xf32, #tpu.memory_space<smem>>
    %c49_i32_122 = arith.constant 49 : i32
    %352 = arith.muli %arg0, %c49_i32_122 : i32
    %c48_i32 = arith.constant 48 : i32
    %353 = arith.addi %352, %c48_i32 : i32
    %354 = arith.index_cast %353 : i32 to index
    %355 = memref.load %arg7[%354] : memref<147xf32, #tpu.memory_space<smem>>
    %356 = arith.index_cast %arg0 : i32 to index
    %357 = memref.load %arg4[%356] : memref<3xf32, #tpu.memory_space<smem>>
    %358 = arith.index_cast %arg0 : i32 to index
    %359 = memref.load %arg6[%358] : memref<3xf32, #tpu.memory_space<smem>>
    %360 = arith.index_cast %arg0 : i32 to index
    %361 = memref.load %arg8[%360] : memref<3xf32, #tpu.memory_space<smem>>
    %c0 = arith.constant 0 : index
    %c0_123 = arith.constant 0 : index
    %c0_124 = arith.constant 0 : index
    %c0_125 = arith.constant 0 : index
    %362 = vector.load %arg2[%c0, %c0_123, %c0_124, %c0_125] : memref<1x1x24x128xf32, #tpu.memory_space<vmem>>, vector<1x1x24x128xf32>
    %363 = vector.shape_cast %362 : vector<1x1x24x128xf32> to vector<24x128xf32>
    %c1_i32_126 = arith.constant 1 : i32
    %364 = tpu.dynamic_rotate %363 by %c1_i32_126 dim 1 : vector<24x128xf32>, i32 -> vector<24x128xf32>
    %c127_i32 = arith.constant 127 : i32
    %365 = tpu.dynamic_rotate %363 by %c127_i32 dim 1 : vector<24x128xf32>, i32 -> vector<24x128xf32>
    %366 = vector.broadcast %27 : f32 to vector<24x128xf32>
    %367 = arith.mulf %366, %364 : vector<24x128xf32>
    %368 = vector.broadcast %31 : f32 to vector<24x128xf32>
    %369 = arith.mulf %368, %363 : vector<24x128xf32>
    %370 = arith.addf %367, %369 : vector<24x128xf32>
    %371 = vector.broadcast %35 : f32 to vector<24x128xf32>
    %372 = arith.mulf %371, %365 : vector<24x128xf32>
    %373 = arith.addf %370, %372 : vector<24x128xf32>
    %c1_i32_127 = arith.constant 1 : i32
    %374 = tpu.dynamic_rotate %373 by %c1_i32_127 dim 0 : vector<24x128xf32>, i32 -> vector<24x128xf32>
    %375 = vector.broadcast %39 : f32 to vector<24x128xf32>
    %376 = arith.mulf %375, %364 : vector<24x128xf32>
    %377 = vector.broadcast %43 : f32 to vector<24x128xf32>
    %378 = arith.mulf %377, %363 : vector<24x128xf32>
    %379 = arith.addf %376, %378 : vector<24x128xf32>
    %380 = vector.broadcast %47 : f32 to vector<24x128xf32>
    %381 = arith.mulf %380, %365 : vector<24x128xf32>
    %382 = arith.addf %379, %381 : vector<24x128xf32>
    %383 = arith.addf %374, %382 : vector<24x128xf32>
    %384 = vector.broadcast %51 : f32 to vector<24x128xf32>
    %385 = arith.mulf %384, %364 : vector<24x128xf32>
    %386 = vector.broadcast %55 : f32 to vector<24x128xf32>
    %387 = arith.mulf %386, %363 : vector<24x128xf32>
    %388 = arith.addf %385, %387 : vector<24x128xf32>
    %389 = vector.broadcast %59 : f32 to vector<24x128xf32>
    %390 = arith.mulf %389, %365 : vector<24x128xf32>
    %391 = arith.addf %388, %390 : vector<24x128xf32>
    %c23_i32_128 = arith.constant 23 : i32
    %392 = tpu.dynamic_rotate %391 by %c23_i32_128 dim 0 : vector<24x128xf32>, i32 -> vector<24x128xf32>
    %393 = arith.addf %383, %392 : vector<24x128xf32>
    %394 = vector.broadcast %357 : f32 to vector<24x128xf32>
    %395 = arith.addf %393, %394 : vector<24x128xf32>
    %396 = arith.mulf %395, %23 : vector<24x128xf32>
    %c2_i32_129 = arith.constant 2 : i32
    %397 = tpu.dynamic_rotate %396 by %c2_i32_129 dim 1 : vector<24x128xf32>, i32 -> vector<24x128xf32>
    %c1_i32_130 = arith.constant 1 : i32
    %398 = tpu.dynamic_rotate %396 by %c1_i32_130 dim 1 : vector<24x128xf32>, i32 -> vector<24x128xf32>
    %c127_i32_131 = arith.constant 127 : i32
    %399 = tpu.dynamic_rotate %396 by %c127_i32_131 dim 1 : vector<24x128xf32>, i32 -> vector<24x128xf32>
    %c126_i32 = arith.constant 126 : i32
    %400 = tpu.dynamic_rotate %396 by %c126_i32 dim 1 : vector<24x128xf32>, i32 -> vector<24x128xf32>
    %401 = vector.broadcast %63 : f32 to vector<24x128xf32>
    %402 = arith.mulf %401, %397 : vector<24x128xf32>
    %403 = vector.broadcast %67 : f32 to vector<24x128xf32>
    %404 = arith.mulf %403, %398 : vector<24x128xf32>
    %405 = arith.addf %402, %404 : vector<24x128xf32>
    %406 = vector.broadcast %71 : f32 to vector<24x128xf32>
    %407 = arith.mulf %406, %396 : vector<24x128xf32>
    %408 = arith.addf %405, %407 : vector<24x128xf32>
    %409 = vector.broadcast %75 : f32 to vector<24x128xf32>
    %410 = arith.mulf %409, %399 : vector<24x128xf32>
    %411 = arith.addf %408, %410 : vector<24x128xf32>
    %412 = vector.broadcast %79 : f32 to vector<24x128xf32>
    %413 = arith.mulf %412, %400 : vector<24x128xf32>
    %414 = arith.addf %411, %413 : vector<24x128xf32>
    %c2_i32_132 = arith.constant 2 : i32
    %415 = tpu.dynamic_rotate %414 by %c2_i32_132 dim 0 : vector<24x128xf32>, i32 -> vector<24x128xf32>
    %416 = vector.broadcast %83 : f32 to vector<24x128xf32>
    %417 = arith.mulf %416, %397 : vector<24x128xf32>
    %418 = vector.broadcast %87 : f32 to vector<24x128xf32>
    %419 = arith.mulf %418, %398 : vector<24x128xf32>
    %420 = arith.addf %417, %419 : vector<24x128xf32>
    %421 = vector.broadcast %91 : f32 to vector<24x128xf32>
    %422 = arith.mulf %421, %396 : vector<24x128xf32>
    %423 = arith.addf %420, %422 : vector<24x128xf32>
    %424 = vector.broadcast %95 : f32 to vector<24x128xf32>
    %425 = arith.mulf %424, %399 : vector<24x128xf32>
    %426 = arith.addf %423, %425 : vector<24x128xf32>
    %427 = vector.broadcast %99 : f32 to vector<24x128xf32>
    %428 = arith.mulf %427, %400 : vector<24x128xf32>
    %429 = arith.addf %426, %428 : vector<24x128xf32>
    %c1_i32_133 = arith.constant 1 : i32
    %430 = tpu.dynamic_rotate %429 by %c1_i32_133 dim 0 : vector<24x128xf32>, i32 -> vector<24x128xf32>
    %431 = arith.addf %415, %430 : vector<24x128xf32>
    %432 = vector.broadcast %103 : f32 to vector<24x128xf32>
    %433 = arith.mulf %432, %397 : vector<24x128xf32>
    %434 = vector.broadcast %107 : f32 to vector<24x128xf32>
    %435 = arith.mulf %434, %398 : vector<24x128xf32>
    %436 = arith.addf %433, %435 : vector<24x128xf32>
    %437 = vector.broadcast %111 : f32 to vector<24x128xf32>
    %438 = arith.mulf %437, %396 : vector<24x128xf32>
    %439 = arith.addf %436, %438 : vector<24x128xf32>
    %440 = vector.broadcast %115 : f32 to vector<24x128xf32>
    %441 = arith.mulf %440, %399 : vector<24x128xf32>
    %442 = arith.addf %439, %441 : vector<24x128xf32>
    %443 = vector.broadcast %119 : f32 to vector<24x128xf32>
    %444 = arith.mulf %443, %400 : vector<24x128xf32>
    %445 = arith.addf %442, %444 : vector<24x128xf32>
    %446 = arith.addf %431, %445 : vector<24x128xf32>
    %447 = vector.broadcast %123 : f32 to vector<24x128xf32>
    %448 = arith.mulf %447, %397 : vector<24x128xf32>
    %449 = vector.broadcast %127 : f32 to vector<24x128xf32>
    %450 = arith.mulf %449, %398 : vector<24x128xf32>
    %451 = arith.addf %448, %450 : vector<24x128xf32>
    %452 = vector.broadcast %131 : f32 to vector<24x128xf32>
    %453 = arith.mulf %452, %396 : vector<24x128xf32>
    %454 = arith.addf %451, %453 : vector<24x128xf32>
    %455 = vector.broadcast %135 : f32 to vector<24x128xf32>
    %456 = arith.mulf %455, %399 : vector<24x128xf32>
    %457 = arith.addf %454, %456 : vector<24x128xf32>
    %458 = vector.broadcast %139 : f32 to vector<24x128xf32>
    %459 = arith.mulf %458, %400 : vector<24x128xf32>
    %460 = arith.addf %457, %459 : vector<24x128xf32>
    %c23_i32_134 = arith.constant 23 : i32
    %461 = tpu.dynamic_rotate %460 by %c23_i32_134 dim 0 : vector<24x128xf32>, i32 -> vector<24x128xf32>
    %462 = arith.addf %446, %461 : vector<24x128xf32>
    %463 = vector.broadcast %143 : f32 to vector<24x128xf32>
    %464 = arith.mulf %463, %397 : vector<24x128xf32>
    %465 = vector.broadcast %147 : f32 to vector<24x128xf32>
    %466 = arith.mulf %465, %398 : vector<24x128xf32>
    %467 = arith.addf %464, %466 : vector<24x128xf32>
    %468 = vector.broadcast %151 : f32 to vector<24x128xf32>
    %469 = arith.mulf %468, %396 : vector<24x128xf32>
    %470 = arith.addf %467, %469 : vector<24x128xf32>
    %471 = vector.broadcast %155 : f32 to vector<24x128xf32>
    %472 = arith.mulf %471, %399 : vector<24x128xf32>
    %473 = arith.addf %470, %472 : vector<24x128xf32>
    %474 = vector.broadcast %159 : f32 to vector<24x128xf32>
    %475 = arith.mulf %474, %400 : vector<24x128xf32>
    %476 = arith.addf %473, %475 : vector<24x128xf32>
    %c22_i32_135 = arith.constant 22 : i32
    %477 = tpu.dynamic_rotate %476 by %c22_i32_135 dim 0 : vector<24x128xf32>, i32 -> vector<24x128xf32>
    %478 = arith.addf %462, %477 : vector<24x128xf32>
    %479 = vector.broadcast %359 : f32 to vector<24x128xf32>
    %480 = arith.addf %478, %479 : vector<24x128xf32>
    %481 = arith.mulf %480, %23 : vector<24x128xf32>
    %c3_i32_136 = arith.constant 3 : i32
    %482 = tpu.dynamic_rotate %481 by %c3_i32_136 dim 1 : vector<24x128xf32>, i32 -> vector<24x128xf32>
    %c2_i32_137 = arith.constant 2 : i32
    %483 = tpu.dynamic_rotate %481 by %c2_i32_137 dim 1 : vector<24x128xf32>, i32 -> vector<24x128xf32>
    %c1_i32_138 = arith.constant 1 : i32
    %484 = tpu.dynamic_rotate %481 by %c1_i32_138 dim 1 : vector<24x128xf32>, i32 -> vector<24x128xf32>
    %c127_i32_139 = arith.constant 127 : i32
    %485 = tpu.dynamic_rotate %481 by %c127_i32_139 dim 1 : vector<24x128xf32>, i32 -> vector<24x128xf32>
    %c126_i32_140 = arith.constant 126 : i32
    %486 = tpu.dynamic_rotate %481 by %c126_i32_140 dim 1 : vector<24x128xf32>, i32 -> vector<24x128xf32>
    %c125_i32 = arith.constant 125 : i32
    %487 = tpu.dynamic_rotate %481 by %c125_i32 dim 1 : vector<24x128xf32>, i32 -> vector<24x128xf32>
    %488 = vector.broadcast %163 : f32 to vector<24x128xf32>
    %489 = arith.mulf %488, %482 : vector<24x128xf32>
    %490 = vector.broadcast %167 : f32 to vector<24x128xf32>
    %491 = arith.mulf %490, %483 : vector<24x128xf32>
    %492 = arith.addf %489, %491 : vector<24x128xf32>
    %493 = vector.broadcast %171 : f32 to vector<24x128xf32>
    %494 = arith.mulf %493, %484 : vector<24x128xf32>
    %495 = arith.addf %492, %494 : vector<24x128xf32>
    %496 = vector.broadcast %175 : f32 to vector<24x128xf32>
    %497 = arith.mulf %496, %481 : vector<24x128xf32>
    %498 = arith.addf %495, %497 : vector<24x128xf32>
    %499 = vector.broadcast %179 : f32 to vector<24x128xf32>
    %500 = arith.mulf %499, %485 : vector<24x128xf32>
    %501 = arith.addf %498, %500 : vector<24x128xf32>
    %502 = vector.broadcast %183 : f32 to vector<24x128xf32>
    %503 = arith.mulf %502, %486 : vector<24x128xf32>
    %504 = arith.addf %501, %503 : vector<24x128xf32>
    %505 = vector.broadcast %187 : f32 to vector<24x128xf32>
    %506 = arith.mulf %505, %487 : vector<24x128xf32>
    %507 = arith.addf %504, %506 : vector<24x128xf32>
    %c3_i32_141 = arith.constant 3 : i32
    %508 = tpu.dynamic_rotate %507 by %c3_i32_141 dim 0 : vector<24x128xf32>, i32 -> vector<24x128xf32>
    %509 = vector.broadcast %191 : f32 to vector<24x128xf32>
    %510 = arith.mulf %509, %482 : vector<24x128xf32>
    %511 = vector.broadcast %195 : f32 to vector<24x128xf32>
    %512 = arith.mulf %511, %483 : vector<24x128xf32>
    %513 = arith.addf %510, %512 : vector<24x128xf32>
    %514 = vector.broadcast %199 : f32 to vector<24x128xf32>
    %515 = arith.mulf %514, %484 : vector<24x128xf32>
    %516 = arith.addf %513, %515 : vector<24x128xf32>
    %517 = vector.broadcast %203 : f32 to vector<24x128xf32>
    %518 = arith.mulf %517, %481 : vector<24x128xf32>
    %519 = arith.addf %516, %518 : vector<24x128xf32>
    %520 = vector.broadcast %207 : f32 to vector<24x128xf32>
    %521 = arith.mulf %520, %485 : vector<24x128xf32>
    %522 = arith.addf %519, %521 : vector<24x128xf32>
    %523 = vector.broadcast %211 : f32 to vector<24x128xf32>
    %524 = arith.mulf %523, %486 : vector<24x128xf32>
    %525 = arith.addf %522, %524 : vector<24x128xf32>
    %526 = vector.broadcast %215 : f32 to vector<24x128xf32>
    %527 = arith.mulf %526, %487 : vector<24x128xf32>
    %528 = arith.addf %525, %527 : vector<24x128xf32>
    %c2_i32_142 = arith.constant 2 : i32
    %529 = tpu.dynamic_rotate %528 by %c2_i32_142 dim 0 : vector<24x128xf32>, i32 -> vector<24x128xf32>
    %530 = arith.addf %508, %529 : vector<24x128xf32>
    %531 = vector.broadcast %219 : f32 to vector<24x128xf32>
    %532 = arith.mulf %531, %482 : vector<24x128xf32>
    %533 = vector.broadcast %223 : f32 to vector<24x128xf32>
    %534 = arith.mulf %533, %483 : vector<24x128xf32>
    %535 = arith.addf %532, %534 : vector<24x128xf32>
    %536 = vector.broadcast %227 : f32 to vector<24x128xf32>
    %537 = arith.mulf %536, %484 : vector<24x128xf32>
    %538 = arith.addf %535, %537 : vector<24x128xf32>
    %539 = vector.broadcast %231 : f32 to vector<24x128xf32>
    %540 = arith.mulf %539, %481 : vector<24x128xf32>
    %541 = arith.addf %538, %540 : vector<24x128xf32>
    %542 = vector.broadcast %235 : f32 to vector<24x128xf32>
    %543 = arith.mulf %542, %485 : vector<24x128xf32>
    %544 = arith.addf %541, %543 : vector<24x128xf32>
    %545 = vector.broadcast %239 : f32 to vector<24x128xf32>
    %546 = arith.mulf %545, %486 : vector<24x128xf32>
    %547 = arith.addf %544, %546 : vector<24x128xf32>
    %548 = vector.broadcast %243 : f32 to vector<24x128xf32>
    %549 = arith.mulf %548, %487 : vector<24x128xf32>
    %550 = arith.addf %547, %549 : vector<24x128xf32>
    %c1_i32_143 = arith.constant 1 : i32
    %551 = tpu.dynamic_rotate %550 by %c1_i32_143 dim 0 : vector<24x128xf32>, i32 -> vector<24x128xf32>
    %552 = arith.addf %530, %551 : vector<24x128xf32>
    %553 = vector.broadcast %247 : f32 to vector<24x128xf32>
    %554 = arith.mulf %553, %482 : vector<24x128xf32>
    %555 = vector.broadcast %251 : f32 to vector<24x128xf32>
    %556 = arith.mulf %555, %483 : vector<24x128xf32>
    %557 = arith.addf %554, %556 : vector<24x128xf32>
    %558 = vector.broadcast %255 : f32 to vector<24x128xf32>
    %559 = arith.mulf %558, %484 : vector<24x128xf32>
    %560 = arith.addf %557, %559 : vector<24x128xf32>
    %561 = vector.broadcast %259 : f32 to vector<24x128xf32>
    %562 = arith.mulf %561, %481 : vector<24x128xf32>
    %563 = arith.addf %560, %562 : vector<24x128xf32>
    %564 = vector.broadcast %263 : f32 to vector<24x128xf32>
    %565 = arith.mulf %564, %485 : vector<24x128xf32>
    %566 = arith.addf %563, %565 : vector<24x128xf32>
    %567 = vector.broadcast %267 : f32 to vector<24x128xf32>
    %568 = arith.mulf %567, %486 : vector<24x128xf32>
    %569 = arith.addf %566, %568 : vector<24x128xf32>
    %570 = vector.broadcast %271 : f32 to vector<24x128xf32>
    %571 = arith.mulf %570, %487 : vector<24x128xf32>
    %572 = arith.addf %569, %571 : vector<24x128xf32>
    %573 = arith.addf %552, %572 : vector<24x128xf32>
    %574 = vector.broadcast %275 : f32 to vector<24x128xf32>
    %575 = arith.mulf %574, %482 : vector<24x128xf32>
    %576 = vector.broadcast %279 : f32 to vector<24x128xf32>
    %577 = arith.mulf %576, %483 : vector<24x128xf32>
    %578 = arith.addf %575, %577 : vector<24x128xf32>
    %579 = vector.broadcast %283 : f32 to vector<24x128xf32>
    %580 = arith.mulf %579, %484 : vector<24x128xf32>
    %581 = arith.addf %578, %580 : vector<24x128xf32>
    %582 = vector.broadcast %287 : f32 to vector<24x128xf32>
    %583 = arith.mulf %582, %481 : vector<24x128xf32>
    %584 = arith.addf %581, %583 : vector<24x128xf32>
    %585 = vector.broadcast %291 : f32 to vector<24x128xf32>
    %586 = arith.mulf %585, %485 : vector<24x128xf32>
    %587 = arith.addf %584, %586 : vector<24x128xf32>
    %588 = vector.broadcast %295 : f32 to vector<24x128xf32>
    %589 = arith.mulf %588, %486 : vector<24x128xf32>
    %590 = arith.addf %587, %589 : vector<24x128xf32>
    %591 = vector.broadcast %299 : f32 to vector<24x128xf32>
    %592 = arith.mulf %591, %487 : vector<24x128xf32>
    %593 = arith.addf %590, %592 : vector<24x128xf32>
    %c23_i32_144 = arith.constant 23 : i32
    %594 = tpu.dynamic_rotate %593 by %c23_i32_144 dim 0 : vector<24x128xf32>, i32 -> vector<24x128xf32>
    %595 = arith.addf %573, %594 : vector<24x128xf32>
    %596 = vector.broadcast %303 : f32 to vector<24x128xf32>
    %597 = arith.mulf %596, %482 : vector<24x128xf32>
    %598 = vector.broadcast %307 : f32 to vector<24x128xf32>
    %599 = arith.mulf %598, %483 : vector<24x128xf32>
    %600 = arith.addf %597, %599 : vector<24x128xf32>
    %601 = vector.broadcast %311 : f32 to vector<24x128xf32>
    %602 = arith.mulf %601, %484 : vector<24x128xf32>
    %603 = arith.addf %600, %602 : vector<24x128xf32>
    %604 = vector.broadcast %315 : f32 to vector<24x128xf32>
    %605 = arith.mulf %604, %481 : vector<24x128xf32>
    %606 = arith.addf %603, %605 : vector<24x128xf32>
    %607 = vector.broadcast %319 : f32 to vector<24x128xf32>
    %608 = arith.mulf %607, %485 : vector<24x128xf32>
    %609 = arith.addf %606, %608 : vector<24x128xf32>
    %610 = vector.broadcast %323 : f32 to vector<24x128xf32>
    %611 = arith.mulf %610, %486 : vector<24x128xf32>
    %612 = arith.addf %609, %611 : vector<24x128xf32>
    %613 = vector.broadcast %327 : f32 to vector<24x128xf32>
    %614 = arith.mulf %613, %487 : vector<24x128xf32>
    %615 = arith.addf %612, %614 : vector<24x128xf32>
    %c22_i32_145 = arith.constant 22 : i32
    %616 = tpu.dynamic_rotate %615 by %c22_i32_145 dim 0 : vector<24x128xf32>, i32 -> vector<24x128xf32>
    %617 = arith.addf %595, %616 : vector<24x128xf32>
    %618 = vector.broadcast %331 : f32 to vector<24x128xf32>
    %619 = arith.mulf %618, %482 : vector<24x128xf32>
    %620 = vector.broadcast %335 : f32 to vector<24x128xf32>
    %621 = arith.mulf %620, %483 : vector<24x128xf32>
    %622 = arith.addf %619, %621 : vector<24x128xf32>
    %623 = vector.broadcast %339 : f32 to vector<24x128xf32>
    %624 = arith.mulf %623, %484 : vector<24x128xf32>
    %625 = arith.addf %622, %624 : vector<24x128xf32>
    %626 = vector.broadcast %343 : f32 to vector<24x128xf32>
    %627 = arith.mulf %626, %481 : vector<24x128xf32>
    %628 = arith.addf %625, %627 : vector<24x128xf32>
    %629 = vector.broadcast %347 : f32 to vector<24x128xf32>
    %630 = arith.mulf %629, %485 : vector<24x128xf32>
    %631 = arith.addf %628, %630 : vector<24x128xf32>
    %632 = vector.broadcast %351 : f32 to vector<24x128xf32>
    %633 = arith.mulf %632, %486 : vector<24x128xf32>
    %634 = arith.addf %631, %633 : vector<24x128xf32>
    %635 = vector.broadcast %355 : f32 to vector<24x128xf32>
    %636 = arith.mulf %635, %487 : vector<24x128xf32>
    %637 = arith.addf %634, %636 : vector<24x128xf32>
    %c21_i32_146 = arith.constant 21 : i32
    %638 = tpu.dynamic_rotate %637 by %c21_i32_146 dim 0 : vector<24x128xf32>, i32 -> vector<24x128xf32>
    %639 = arith.addf %617, %638 : vector<24x128xf32>
    %640 = vector.broadcast %361 : f32 to vector<24x128xf32>
    %641 = arith.addf %639, %640 : vector<24x128xf32>
    %642 = arith.mulf %641, %23 : vector<24x128xf32>
    %c3_i32_147 = arith.constant 3 : i32
    %643 = tpu.dynamic_rotate %642 by %c3_i32_147 dim 1 : vector<24x128xf32>, i32 -> vector<24x128xf32>
    %c2_i32_148 = arith.constant 2 : i32
    %644 = tpu.dynamic_rotate %642 by %c2_i32_148 dim 1 : vector<24x128xf32>, i32 -> vector<24x128xf32>
    %c1_i32_149 = arith.constant 1 : i32
    %645 = tpu.dynamic_rotate %642 by %c1_i32_149 dim 1 : vector<24x128xf32>, i32 -> vector<24x128xf32>
    %c127_i32_150 = arith.constant 127 : i32
    %646 = tpu.dynamic_rotate %642 by %c127_i32_150 dim 1 : vector<24x128xf32>, i32 -> vector<24x128xf32>
    %c126_i32_151 = arith.constant 126 : i32
    %647 = tpu.dynamic_rotate %642 by %c126_i32_151 dim 1 : vector<24x128xf32>, i32 -> vector<24x128xf32>
    %c125_i32_152 = arith.constant 125 : i32
    %648 = tpu.dynamic_rotate %642 by %c125_i32_152 dim 1 : vector<24x128xf32>, i32 -> vector<24x128xf32>
    %649 = vector.broadcast %163 : f32 to vector<24x128xf32>
    %650 = arith.mulf %649, %643 : vector<24x128xf32>
    %651 = vector.broadcast %167 : f32 to vector<24x128xf32>
    %652 = arith.mulf %651, %644 : vector<24x128xf32>
    %653 = arith.addf %650, %652 : vector<24x128xf32>
    %654 = vector.broadcast %171 : f32 to vector<24x128xf32>
    %655 = arith.mulf %654, %645 : vector<24x128xf32>
    %656 = arith.addf %653, %655 : vector<24x128xf32>
    %657 = vector.broadcast %175 : f32 to vector<24x128xf32>
    %658 = arith.mulf %657, %642 : vector<24x128xf32>
    %659 = arith.addf %656, %658 : vector<24x128xf32>
    %660 = vector.broadcast %179 : f32 to vector<24x128xf32>
    %661 = arith.mulf %660, %646 : vector<24x128xf32>
    %662 = arith.addf %659, %661 : vector<24x128xf32>
    %663 = vector.broadcast %183 : f32 to vector<24x128xf32>
    %664 = arith.mulf %663, %647 : vector<24x128xf32>
    %665 = arith.addf %662, %664 : vector<24x128xf32>
    %666 = vector.broadcast %187 : f32 to vector<24x128xf32>
    %667 = arith.mulf %666, %648 : vector<24x128xf32>
    %668 = arith.addf %665, %667 : vector<24x128xf32>
    %c3_i32_153 = arith.constant 3 : i32
    %669 = tpu.dynamic_rotate %668 by %c3_i32_153 dim 0 : vector<24x128xf32>, i32 -> vector<24x128xf32>
    %670 = vector.broadcast %191 : f32 to vector<24x128xf32>
    %671 = arith.mulf %670, %643 : vector<24x128xf32>
    %672 = vector.broadcast %195 : f32 to vector<24x128xf32>
    %673 = arith.mulf %672, %644 : vector<24x128xf32>
    %674 = arith.addf %671, %673 : vector<24x128xf32>
    %675 = vector.broadcast %199 : f32 to vector<24x128xf32>
    %676 = arith.mulf %675, %645 : vector<24x128xf32>
    %677 = arith.addf %674, %676 : vector<24x128xf32>
    %678 = vector.broadcast %203 : f32 to vector<24x128xf32>
    %679 = arith.mulf %678, %642 : vector<24x128xf32>
    %680 = arith.addf %677, %679 : vector<24x128xf32>
    %681 = vector.broadcast %207 : f32 to vector<24x128xf32>
    %682 = arith.mulf %681, %646 : vector<24x128xf32>
    %683 = arith.addf %680, %682 : vector<24x128xf32>
    %684 = vector.broadcast %211 : f32 to vector<24x128xf32>
    %685 = arith.mulf %684, %647 : vector<24x128xf32>
    %686 = arith.addf %683, %685 : vector<24x128xf32>
    %687 = vector.broadcast %215 : f32 to vector<24x128xf32>
    %688 = arith.mulf %687, %648 : vector<24x128xf32>
    %689 = arith.addf %686, %688 : vector<24x128xf32>
    %c2_i32_154 = arith.constant 2 : i32
    %690 = tpu.dynamic_rotate %689 by %c2_i32_154 dim 0 : vector<24x128xf32>, i32 -> vector<24x128xf32>
    %691 = arith.addf %669, %690 : vector<24x128xf32>
    %692 = vector.broadcast %219 : f32 to vector<24x128xf32>
    %693 = arith.mulf %692, %643 : vector<24x128xf32>
    %694 = vector.broadcast %223 : f32 to vector<24x128xf32>
    %695 = arith.mulf %694, %644 : vector<24x128xf32>
    %696 = arith.addf %693, %695 : vector<24x128xf32>
    %697 = vector.broadcast %227 : f32 to vector<24x128xf32>
    %698 = arith.mulf %697, %645 : vector<24x128xf32>
    %699 = arith.addf %696, %698 : vector<24x128xf32>
    %700 = vector.broadcast %231 : f32 to vector<24x128xf32>
    %701 = arith.mulf %700, %642 : vector<24x128xf32>
    %702 = arith.addf %699, %701 : vector<24x128xf32>
    %703 = vector.broadcast %235 : f32 to vector<24x128xf32>
    %704 = arith.mulf %703, %646 : vector<24x128xf32>
    %705 = arith.addf %702, %704 : vector<24x128xf32>
    %706 = vector.broadcast %239 : f32 to vector<24x128xf32>
    %707 = arith.mulf %706, %647 : vector<24x128xf32>
    %708 = arith.addf %705, %707 : vector<24x128xf32>
    %709 = vector.broadcast %243 : f32 to vector<24x128xf32>
    %710 = arith.mulf %709, %648 : vector<24x128xf32>
    %711 = arith.addf %708, %710 : vector<24x128xf32>
    %c1_i32_155 = arith.constant 1 : i32
    %712 = tpu.dynamic_rotate %711 by %c1_i32_155 dim 0 : vector<24x128xf32>, i32 -> vector<24x128xf32>
    %713 = arith.addf %691, %712 : vector<24x128xf32>
    %714 = vector.broadcast %247 : f32 to vector<24x128xf32>
    %715 = arith.mulf %714, %643 : vector<24x128xf32>
    %716 = vector.broadcast %251 : f32 to vector<24x128xf32>
    %717 = arith.mulf %716, %644 : vector<24x128xf32>
    %718 = arith.addf %715, %717 : vector<24x128xf32>
    %719 = vector.broadcast %255 : f32 to vector<24x128xf32>
    %720 = arith.mulf %719, %645 : vector<24x128xf32>
    %721 = arith.addf %718, %720 : vector<24x128xf32>
    %722 = vector.broadcast %259 : f32 to vector<24x128xf32>
    %723 = arith.mulf %722, %642 : vector<24x128xf32>
    %724 = arith.addf %721, %723 : vector<24x128xf32>
    %725 = vector.broadcast %263 : f32 to vector<24x128xf32>
    %726 = arith.mulf %725, %646 : vector<24x128xf32>
    %727 = arith.addf %724, %726 : vector<24x128xf32>
    %728 = vector.broadcast %267 : f32 to vector<24x128xf32>
    %729 = arith.mulf %728, %647 : vector<24x128xf32>
    %730 = arith.addf %727, %729 : vector<24x128xf32>
    %731 = vector.broadcast %271 : f32 to vector<24x128xf32>
    %732 = arith.mulf %731, %648 : vector<24x128xf32>
    %733 = arith.addf %730, %732 : vector<24x128xf32>
    %734 = arith.addf %713, %733 : vector<24x128xf32>
    %735 = vector.broadcast %275 : f32 to vector<24x128xf32>
    %736 = arith.mulf %735, %643 : vector<24x128xf32>
    %737 = vector.broadcast %279 : f32 to vector<24x128xf32>
    %738 = arith.mulf %737, %644 : vector<24x128xf32>
    %739 = arith.addf %736, %738 : vector<24x128xf32>
    %740 = vector.broadcast %283 : f32 to vector<24x128xf32>
    %741 = arith.mulf %740, %645 : vector<24x128xf32>
    %742 = arith.addf %739, %741 : vector<24x128xf32>
    %743 = vector.broadcast %287 : f32 to vector<24x128xf32>
    %744 = arith.mulf %743, %642 : vector<24x128xf32>
    %745 = arith.addf %742, %744 : vector<24x128xf32>
    %746 = vector.broadcast %291 : f32 to vector<24x128xf32>
    %747 = arith.mulf %746, %646 : vector<24x128xf32>
    %748 = arith.addf %745, %747 : vector<24x128xf32>
    %749 = vector.broadcast %295 : f32 to vector<24x128xf32>
    %750 = arith.mulf %749, %647 : vector<24x128xf32>
    %751 = arith.addf %748, %750 : vector<24x128xf32>
    %752 = vector.broadcast %299 : f32 to vector<24x128xf32>
    %753 = arith.mulf %752, %648 : vector<24x128xf32>
    %754 = arith.addf %751, %753 : vector<24x128xf32>
    %c23_i32_156 = arith.constant 23 : i32
    %755 = tpu.dynamic_rotate %754 by %c23_i32_156 dim 0 : vector<24x128xf32>, i32 -> vector<24x128xf32>
    %756 = arith.addf %734, %755 : vector<24x128xf32>
    %757 = vector.broadcast %303 : f32 to vector<24x128xf32>
    %758 = arith.mulf %757, %643 : vector<24x128xf32>
    %759 = vector.broadcast %307 : f32 to vector<24x128xf32>
    %760 = arith.mulf %759, %644 : vector<24x128xf32>
    %761 = arith.addf %758, %760 : vector<24x128xf32>
    %762 = vector.broadcast %311 : f32 to vector<24x128xf32>
    %763 = arith.mulf %762, %645 : vector<24x128xf32>
    %764 = arith.addf %761, %763 : vector<24x128xf32>
    %765 = vector.broadcast %315 : f32 to vector<24x128xf32>
    %766 = arith.mulf %765, %642 : vector<24x128xf32>
    %767 = arith.addf %764, %766 : vector<24x128xf32>
    %768 = vector.broadcast %319 : f32 to vector<24x128xf32>
    %769 = arith.mulf %768, %646 : vector<24x128xf32>
    %770 = arith.addf %767, %769 : vector<24x128xf32>
    %771 = vector.broadcast %323 : f32 to vector<24x128xf32>
    %772 = arith.mulf %771, %647 : vector<24x128xf32>
    %773 = arith.addf %770, %772 : vector<24x128xf32>
    %774 = vector.broadcast %327 : f32 to vector<24x128xf32>
    %775 = arith.mulf %774, %648 : vector<24x128xf32>
    %776 = arith.addf %773, %775 : vector<24x128xf32>
    %c22_i32_157 = arith.constant 22 : i32
    %777 = tpu.dynamic_rotate %776 by %c22_i32_157 dim 0 : vector<24x128xf32>, i32 -> vector<24x128xf32>
    %778 = arith.addf %756, %777 : vector<24x128xf32>
    %779 = vector.broadcast %331 : f32 to vector<24x128xf32>
    %780 = arith.mulf %779, %643 : vector<24x128xf32>
    %781 = vector.broadcast %335 : f32 to vector<24x128xf32>
    %782 = arith.mulf %781, %644 : vector<24x128xf32>
    %783 = arith.addf %780, %782 : vector<24x128xf32>
    %784 = vector.broadcast %339 : f32 to vector<24x128xf32>
    %785 = arith.mulf %784, %645 : vector<24x128xf32>
    %786 = arith.addf %783, %785 : vector<24x128xf32>
    %787 = vector.broadcast %343 : f32 to vector<24x128xf32>
    %788 = arith.mulf %787, %642 : vector<24x128xf32>
    %789 = arith.addf %786, %788 : vector<24x128xf32>
    %790 = vector.broadcast %347 : f32 to vector<24x128xf32>
    %791 = arith.mulf %790, %646 : vector<24x128xf32>
    %792 = arith.addf %789, %791 : vector<24x128xf32>
    %793 = vector.broadcast %351 : f32 to vector<24x128xf32>
    %794 = arith.mulf %793, %647 : vector<24x128xf32>
    %795 = arith.addf %792, %794 : vector<24x128xf32>
    %796 = vector.broadcast %355 : f32 to vector<24x128xf32>
    %797 = arith.mulf %796, %648 : vector<24x128xf32>
    %798 = arith.addf %795, %797 : vector<24x128xf32>
    %c21_i32_158 = arith.constant 21 : i32
    %799 = tpu.dynamic_rotate %798 by %c21_i32_158 dim 0 : vector<24x128xf32>, i32 -> vector<24x128xf32>
    %800 = arith.addf %778, %799 : vector<24x128xf32>
    %801 = vector.broadcast %361 : f32 to vector<24x128xf32>
    %802 = arith.addf %800, %801 : vector<24x128xf32>
    %803 = arith.mulf %802, %23 : vector<24x128xf32>
    %c3_i32_159 = arith.constant 3 : i32
    %804 = tpu.dynamic_rotate %803 by %c3_i32_159 dim 1 : vector<24x128xf32>, i32 -> vector<24x128xf32>
    %c2_i32_160 = arith.constant 2 : i32
    %805 = tpu.dynamic_rotate %803 by %c2_i32_160 dim 1 : vector<24x128xf32>, i32 -> vector<24x128xf32>
    %c1_i32_161 = arith.constant 1 : i32
    %806 = tpu.dynamic_rotate %803 by %c1_i32_161 dim 1 : vector<24x128xf32>, i32 -> vector<24x128xf32>
    %c127_i32_162 = arith.constant 127 : i32
    %807 = tpu.dynamic_rotate %803 by %c127_i32_162 dim 1 : vector<24x128xf32>, i32 -> vector<24x128xf32>
    %c126_i32_163 = arith.constant 126 : i32
    %808 = tpu.dynamic_rotate %803 by %c126_i32_163 dim 1 : vector<24x128xf32>, i32 -> vector<24x128xf32>
    %c125_i32_164 = arith.constant 125 : i32
    %809 = tpu.dynamic_rotate %803 by %c125_i32_164 dim 1 : vector<24x128xf32>, i32 -> vector<24x128xf32>
    %810 = vector.broadcast %163 : f32 to vector<24x128xf32>
    %811 = arith.mulf %810, %804 : vector<24x128xf32>
    %812 = vector.broadcast %167 : f32 to vector<24x128xf32>
    %813 = arith.mulf %812, %805 : vector<24x128xf32>
    %814 = arith.addf %811, %813 : vector<24x128xf32>
    %815 = vector.broadcast %171 : f32 to vector<24x128xf32>
    %816 = arith.mulf %815, %806 : vector<24x128xf32>
    %817 = arith.addf %814, %816 : vector<24x128xf32>
    %818 = vector.broadcast %175 : f32 to vector<24x128xf32>
    %819 = arith.mulf %818, %803 : vector<24x128xf32>
    %820 = arith.addf %817, %819 : vector<24x128xf32>
    %821 = vector.broadcast %179 : f32 to vector<24x128xf32>
    %822 = arith.mulf %821, %807 : vector<24x128xf32>
    %823 = arith.addf %820, %822 : vector<24x128xf32>
    %824 = vector.broadcast %183 : f32 to vector<24x128xf32>
    %825 = arith.mulf %824, %808 : vector<24x128xf32>
    %826 = arith.addf %823, %825 : vector<24x128xf32>
    %827 = vector.broadcast %187 : f32 to vector<24x128xf32>
    %828 = arith.mulf %827, %809 : vector<24x128xf32>
    %829 = arith.addf %826, %828 : vector<24x128xf32>
    %c3_i32_165 = arith.constant 3 : i32
    %830 = tpu.dynamic_rotate %829 by %c3_i32_165 dim 0 : vector<24x128xf32>, i32 -> vector<24x128xf32>
    %831 = vector.broadcast %191 : f32 to vector<24x128xf32>
    %832 = arith.mulf %831, %804 : vector<24x128xf32>
    %833 = vector.broadcast %195 : f32 to vector<24x128xf32>
    %834 = arith.mulf %833, %805 : vector<24x128xf32>
    %835 = arith.addf %832, %834 : vector<24x128xf32>
    %836 = vector.broadcast %199 : f32 to vector<24x128xf32>
    %837 = arith.mulf %836, %806 : vector<24x128xf32>
    %838 = arith.addf %835, %837 : vector<24x128xf32>
    %839 = vector.broadcast %203 : f32 to vector<24x128xf32>
    %840 = arith.mulf %839, %803 : vector<24x128xf32>
    %841 = arith.addf %838, %840 : vector<24x128xf32>
    %842 = vector.broadcast %207 : f32 to vector<24x128xf32>
    %843 = arith.mulf %842, %807 : vector<24x128xf32>
    %844 = arith.addf %841, %843 : vector<24x128xf32>
    %845 = vector.broadcast %211 : f32 to vector<24x128xf32>
    %846 = arith.mulf %845, %808 : vector<24x128xf32>
    %847 = arith.addf %844, %846 : vector<24x128xf32>
    %848 = vector.broadcast %215 : f32 to vector<24x128xf32>
    %849 = arith.mulf %848, %809 : vector<24x128xf32>
    %850 = arith.addf %847, %849 : vector<24x128xf32>
    %c2_i32_166 = arith.constant 2 : i32
    %851 = tpu.dynamic_rotate %850 by %c2_i32_166 dim 0 : vector<24x128xf32>, i32 -> vector<24x128xf32>
    %852 = arith.addf %830, %851 : vector<24x128xf32>
    %853 = vector.broadcast %219 : f32 to vector<24x128xf32>
    %854 = arith.mulf %853, %804 : vector<24x128xf32>
    %855 = vector.broadcast %223 : f32 to vector<24x128xf32>
    %856 = arith.mulf %855, %805 : vector<24x128xf32>
    %857 = arith.addf %854, %856 : vector<24x128xf32>
    %858 = vector.broadcast %227 : f32 to vector<24x128xf32>
    %859 = arith.mulf %858, %806 : vector<24x128xf32>
    %860 = arith.addf %857, %859 : vector<24x128xf32>
    %861 = vector.broadcast %231 : f32 to vector<24x128xf32>
    %862 = arith.mulf %861, %803 : vector<24x128xf32>
    %863 = arith.addf %860, %862 : vector<24x128xf32>
    %864 = vector.broadcast %235 : f32 to vector<24x128xf32>
    %865 = arith.mulf %864, %807 : vector<24x128xf32>
    %866 = arith.addf %863, %865 : vector<24x128xf32>
    %867 = vector.broadcast %239 : f32 to vector<24x128xf32>
    %868 = arith.mulf %867, %808 : vector<24x128xf32>
    %869 = arith.addf %866, %868 : vector<24x128xf32>
    %870 = vector.broadcast %243 : f32 to vector<24x128xf32>
    %871 = arith.mulf %870, %809 : vector<24x128xf32>
    %872 = arith.addf %869, %871 : vector<24x128xf32>
    %c1_i32_167 = arith.constant 1 : i32
    %873 = tpu.dynamic_rotate %872 by %c1_i32_167 dim 0 : vector<24x128xf32>, i32 -> vector<24x128xf32>
    %874 = arith.addf %852, %873 : vector<24x128xf32>
    %875 = vector.broadcast %247 : f32 to vector<24x128xf32>
    %876 = arith.mulf %875, %804 : vector<24x128xf32>
    %877 = vector.broadcast %251 : f32 to vector<24x128xf32>
    %878 = arith.mulf %877, %805 : vector<24x128xf32>
    %879 = arith.addf %876, %878 : vector<24x128xf32>
    %880 = vector.broadcast %255 : f32 to vector<24x128xf32>
    %881 = arith.mulf %880, %806 : vector<24x128xf32>
    %882 = arith.addf %879, %881 : vector<24x128xf32>
    %883 = vector.broadcast %259 : f32 to vector<24x128xf32>
    %884 = arith.mulf %883, %803 : vector<24x128xf32>
    %885 = arith.addf %882, %884 : vector<24x128xf32>
    %886 = vector.broadcast %263 : f32 to vector<24x128xf32>
    %887 = arith.mulf %886, %807 : vector<24x128xf32>
    %888 = arith.addf %885, %887 : vector<24x128xf32>
    %889 = vector.broadcast %267 : f32 to vector<24x128xf32>
    %890 = arith.mulf %889, %808 : vector<24x128xf32>
    %891 = arith.addf %888, %890 : vector<24x128xf32>
    %892 = vector.broadcast %271 : f32 to vector<24x128xf32>
    %893 = arith.mulf %892, %809 : vector<24x128xf32>
    %894 = arith.addf %891, %893 : vector<24x128xf32>
    %895 = arith.addf %874, %894 : vector<24x128xf32>
    %896 = vector.broadcast %275 : f32 to vector<24x128xf32>
    %897 = arith.mulf %896, %804 : vector<24x128xf32>
    %898 = vector.broadcast %279 : f32 to vector<24x128xf32>
    %899 = arith.mulf %898, %805 : vector<24x128xf32>
    %900 = arith.addf %897, %899 : vector<24x128xf32>
    %901 = vector.broadcast %283 : f32 to vector<24x128xf32>
    %902 = arith.mulf %901, %806 : vector<24x128xf32>
    %903 = arith.addf %900, %902 : vector<24x128xf32>
    %904 = vector.broadcast %287 : f32 to vector<24x128xf32>
    %905 = arith.mulf %904, %803 : vector<24x128xf32>
    %906 = arith.addf %903, %905 : vector<24x128xf32>
    %907 = vector.broadcast %291 : f32 to vector<24x128xf32>
    %908 = arith.mulf %907, %807 : vector<24x128xf32>
    %909 = arith.addf %906, %908 : vector<24x128xf32>
    %910 = vector.broadcast %295 : f32 to vector<24x128xf32>
    %911 = arith.mulf %910, %808 : vector<24x128xf32>
    %912 = arith.addf %909, %911 : vector<24x128xf32>
    %913 = vector.broadcast %299 : f32 to vector<24x128xf32>
    %914 = arith.mulf %913, %809 : vector<24x128xf32>
    %915 = arith.addf %912, %914 : vector<24x128xf32>
    %c23_i32_168 = arith.constant 23 : i32
    %916 = tpu.dynamic_rotate %915 by %c23_i32_168 dim 0 : vector<24x128xf32>, i32 -> vector<24x128xf32>
    %917 = arith.addf %895, %916 : vector<24x128xf32>
    %918 = vector.broadcast %303 : f32 to vector<24x128xf32>
    %919 = arith.mulf %918, %804 : vector<24x128xf32>
    %920 = vector.broadcast %307 : f32 to vector<24x128xf32>
    %921 = arith.mulf %920, %805 : vector<24x128xf32>
    %922 = arith.addf %919, %921 : vector<24x128xf32>
    %923 = vector.broadcast %311 : f32 to vector<24x128xf32>
    %924 = arith.mulf %923, %806 : vector<24x128xf32>
    %925 = arith.addf %922, %924 : vector<24x128xf32>
    %926 = vector.broadcast %315 : f32 to vector<24x128xf32>
    %927 = arith.mulf %926, %803 : vector<24x128xf32>
    %928 = arith.addf %925, %927 : vector<24x128xf32>
    %929 = vector.broadcast %319 : f32 to vector<24x128xf32>
    %930 = arith.mulf %929, %807 : vector<24x128xf32>
    %931 = arith.addf %928, %930 : vector<24x128xf32>
    %932 = vector.broadcast %323 : f32 to vector<24x128xf32>
    %933 = arith.mulf %932, %808 : vector<24x128xf32>
    %934 = arith.addf %931, %933 : vector<24x128xf32>
    %935 = vector.broadcast %327 : f32 to vector<24x128xf32>
    %936 = arith.mulf %935, %809 : vector<24x128xf32>
    %937 = arith.addf %934, %936 : vector<24x128xf32>
    %c22_i32_169 = arith.constant 22 : i32
    %938 = tpu.dynamic_rotate %937 by %c22_i32_169 dim 0 : vector<24x128xf32>, i32 -> vector<24x128xf32>
    %939 = arith.addf %917, %938 : vector<24x128xf32>
    %940 = vector.broadcast %331 : f32 to vector<24x128xf32>
    %941 = arith.mulf %940, %804 : vector<24x128xf32>
    %942 = vector.broadcast %335 : f32 to vector<24x128xf32>
    %943 = arith.mulf %942, %805 : vector<24x128xf32>
    %944 = arith.addf %941, %943 : vector<24x128xf32>
    %945 = vector.broadcast %339 : f32 to vector<24x128xf32>
    %946 = arith.mulf %945, %806 : vector<24x128xf32>
    %947 = arith.addf %944, %946 : vector<24x128xf32>
    %948 = vector.broadcast %343 : f32 to vector<24x128xf32>
    %949 = arith.mulf %948, %803 : vector<24x128xf32>
    %950 = arith.addf %947, %949 : vector<24x128xf32>
    %951 = vector.broadcast %347 : f32 to vector<24x128xf32>
    %952 = arith.mulf %951, %807 : vector<24x128xf32>
    %953 = arith.addf %950, %952 : vector<24x128xf32>
    %954 = vector.broadcast %351 : f32 to vector<24x128xf32>
    %955 = arith.mulf %954, %808 : vector<24x128xf32>
    %956 = arith.addf %953, %955 : vector<24x128xf32>
    %957 = vector.broadcast %355 : f32 to vector<24x128xf32>
    %958 = arith.mulf %957, %809 : vector<24x128xf32>
    %959 = arith.addf %956, %958 : vector<24x128xf32>
    %c21_i32_170 = arith.constant 21 : i32
    %960 = tpu.dynamic_rotate %959 by %c21_i32_170 dim 0 : vector<24x128xf32>, i32 -> vector<24x128xf32>
    %961 = arith.addf %939, %960 : vector<24x128xf32>
    %962 = vector.broadcast %361 : f32 to vector<24x128xf32>
    %963 = arith.addf %961, %962 : vector<24x128xf32>
    %964 = arith.mulf %963, %23 : vector<24x128xf32>
    %c0_171 = arith.constant 0 : index
    %c0_172 = arith.constant 0 : index
    %c0_173 = arith.constant 0 : index
    %c0_174 = arith.constant 0 : index
    %965 = vector.load %arg9[%c0_171, %c0_172, %c0_173, %c0_174] : memref<1x1x24x128xf32, #tpu.memory_space<vmem>>, vector<1x1x24x128xf32>
    %966 = vector.shape_cast %965 : vector<1x1x24x128xf32> to vector<24x128xf32>
    %967 = vector.shape_cast %964 : vector<24x128xf32> to vector<1x1x24x128xf32>
    tpu.vector_store %arg9[%c0_171, %c0_172, %c0_173, %c0_174], %967 {strides = array<i32>} : memref<1x1x24x128xf32, #tpu.memory_space<vmem>>, vector<1x1x24x128xf32>,
    return
  }
  func.func @transform_0(%arg0: i32, %arg1: i32) -> (i32, i32, i32, i32) {
    %c0_i32 = arith.constant 0 : i32
    %c0_i32_0 = arith.constant 0 : i32
    %c0_i32_1 = arith.constant 0 : i32
    return %arg0, %arg1, %c0_i32, %c0_i32_0 : i32, i32, i32, i32
  }
  func.func @transform_1(%arg0: i32, %arg1: i32) -> i32 {
    %c0_i32 = arith.constant 0 : i32
    %c0_i32_0 = arith.constant 0 : i32
    return %c0_i32 : i32
  }
  func.func @transform_2(%arg0: i32, %arg1: i32) -> i32 {
    %c0_i32 = arith.constant 0 : i32
    %c0_i32_0 = arith.constant 0 : i32
    return %c0_i32 : i32
  }
  func.func @transform_3(%arg0: i32, %arg1: i32) -> i32 {
    %c0_i32 = arith.constant 0 : i32
    %c0_i32_0 = arith.constant 0 : i32
    return %c0_i32 : i32
  }
  func.func @transform_4(%arg0: i32, %arg1: i32) -> i32 {
    %c0_i32 = arith.constant 0 : i32
    %c0_i32_0 = arith.constant 0 : i32
    return %c0_i32 : i32
  }
  func.func @transform_5(%arg0: i32, %arg1: i32) -> i32 {
    %c0_i32 = arith.constant 0 : i32
    %c0_i32_0 = arith.constant 0 : i32
    return %c0_i32 : i32
  }
  func.func @transform_6(%arg0: i32, %arg1: i32) -> i32 {
    %c0_i32 = arith.constant 0 : i32
    %c0_i32_0 = arith.constant 0 : i32
    return %c0_i32 : i32
  }
  func.func @transform_7(%arg0: i32, %arg1: i32) -> (i32, i32, i32, i32) {
    %c0_i32 = arith.constant 0 : i32
    %c0_i32_0 = arith.constant 0 : i32
    %c0_i32_1 = arith.constant 0 : i32
    return %arg0, %arg1, %c0_i32, %c0_i32_0 : i32, i32, i32, i32
  }
}

</mosaic_0001>

<llo_original>
// kernel: cnn_dpe_forward.1
$region0: #{cnn_dpe_forward.1}
  #allocation0 [shape = 'u32[]', space=smem, size = 0x4, offset = 0x4, fixed_abs, tag = 'smem constant byte address 0x4 - core index']
  #allocation1 [shape = 'u32[72,128]{1,0:T(1,128)}', space=vmem, size = 0x9000, scoped, tag = 'internal scratch']
  %s0 = inlined_call_operand.vmem [shape: f32[3,1,24,128], index: 0, kind: input, shape index: {}]
  %s1 = inlined_call_operand.vmem [shape: f32[27], index: 1, kind: input, shape index: {}]
  %s2 = inlined_call_operand.vmem [shape: f32[3], index: 2, kind: input, shape index: {}]
  %s3 = inlined_call_operand.vmem [shape: f32[75], index: 3, kind: input, shape index: {}]
  %s4 = inlined_call_operand.vmem [shape: f32[3], index: 4, kind: input, shape index: {}]
  %s5 = inlined_call_operand.vmem [shape: f32[147], index: 5, kind: input, shape index: {}]
  %s6 = inlined_call_operand.vmem [shape: f32[3], index: 6, kind: input, shape index: {}]
  %s7 = inlined_call_operand.vmem [shape: f32[3,1,24,128], index: 7, kind: output, shape index: {}]
  %s8 = sld [smem:[#allocation0]]
  $region85: #{cnn_dpe_forward.1} parent=0
    _
  %s10 = ssub.s32 1, %s8
  %s11 = scalar_select 0, %s10, %s8
  $region1: #{cnn_dpe_forward.1} parent=0
    #allocation2 [shape = 'u8[512]{0}', space=smem, size = 0x200, scoped, tag = 'input window, operand 1, single buffered']
    #allocation3 [shape = 's32[2]{0}', space=sflag, size = 0x8, scoped, tag = 'scoped memory for cnn_dpe_forward.1']
    #allocation4 [shape = 'u8[512]{0}', space=smem, size = 0x200, scoped, tag = 'input window, operand 2, single buffered']
    #allocation5 [shape = 's32[1]{0}', space=sflag, size = 0x4, scoped, tag = 'scoped memory for cnn_dpe_forward.1']
    #allocation6 [shape = 'u8[512]{0}', space=smem, size = 0x200, scoped, tag = 'input window, operand 3, single buffered']
    #allocation7 [shape = 'u8[512]{0}', space=smem, size = 0x200, scoped, tag = 'input window, operand 4, single buffered']
    #allocation8 [shape = 's32[1]{0}', space=sflag, size = 0x4, scoped, tag = 'scoped memory for cnn_dpe_forward.1']
    #allocation9 [shape = 'u8[1024]{0}', space=smem, size = 0x400, scoped, tag = 'input window, operand 5, single buffered']
    #allocation10 [shape = 'u8[512]{0}', space=smem, size = 0x200, scoped, tag = 'input window, operand 6, single buffered']
    #allocation11 [shape = 's32[1]{0}', space=sflag, size = 0x4, scoped, tag = 'scoped memory for cnn_dpe_forward.1']
    %12 = vsyncpa [#allocation3], 0
    %13 = vsyncpa [#allocation5], 0
    %14 = vsyncpa [#allocation8], 0
    %15 = vsyncpa [#allocation11], 0
    loop: start=0, step=1, limit=5
    $region2: #{cnn_dpe_forward.1} parent=1 // loop_pre_header
      _
    $region3: #{cnn_dpe_forward.1} parent=1 // loop_header
      %s17 = sphi 0, %s21
      %p18 = scmp.ge.s32.totalorder %s17, 5
      %s24 = sphi 0, %s36
      %s25 = sphi 0, %s32
      %s26 = sphi 0, %s24
      %s27 = sphi 0, %s25
      %s28 = sphi 0, %s26
      %s29 = sphi 0, %s27
      %s41 = sphi 0, %s43
      %s44 = sphi 0, %s41
      %s45 = sphi 0, %s44
      %s61 = sphi 0, %s45
      %s65 = sphi 0, %s65
      %s67 = sphi 0, %s65
      %s68 = sphi 0, %s67
      %s82 = sphi 0, %s68
      %s86 = sphi 0, %s86
      %s88 = sphi 0, %s86
      %s89 = sphi 0, %s88
      %s103 = sphi 0, %s89
      %s107 = sphi 0, %s107
      %s109 = sphi 0, %s107
      %s110 = sphi 0, %s109
      %s124 = sphi 0, %s110
      %s128 = sphi 0, %s128
      %s130 = sphi 0, %s128
      %s131 = sphi 0, %s130
      %s145 = sphi 0, %s131
      %s149 = sphi 0, %s149
      %s151 = sphi 0, %s149
      %s152 = sphi 0, %s151
      %s166 = sphi 0, %s152
      %s170 = sphi 0, %s170
      %s172 = sphi 0, %s170
      %s173 = sphi 0, %s172
      %s187 = sphi 0, %s173
      %s195 = sphi 0, %s197
      %s198 = sphi 0, %s195
      %s199 = sphi 0, %s198
      %s215 = sphi 0, %s199
    $region4: #{cnn_dpe_forward.1} parent=1 // loop_header_branch
      %20 = sbr.rel (%p18) target = $region8
    $region5: #{cnn_dpe_forward.1} parent=1 // loop_body
      %s22 = ssub.s32 %s17, 1
      %s23 = ssub.s32 %s17, 2
      %s30 = sadd.s32 1, %s25
      %p31 = scmp.ge.s32.totalorder %s30, 1
      %s32 = scalar_select %p31, 0, %s30
      %s33 = sadd.s32 1, %s24
      %s34 = scalar_select %p31, %s33, %s24
      %p35 = scmp.ge.s32.totalorder %s34, 3
      %s36 = scalar_select %p35, 0, %s34
      %s37 = ssub.s32 %s24, %s36
      %s38 = ssub.s32 %s25, %s32
      %s39 = sor.u32 %s37, %s38
      %p40 = scmp.eq.s32.totalorder %s39, 0
      %s42 = sadd.s32 %s41, 1
      %s43 = scalar_select %p40, %s41, %s42
      %p46 = pneg %p40
      %p47 = scmp.eq.s32.totalorder %s17, 2
      %p48 = por %p46, %p47
      %p49 = scmp.ne.s32.totalorder %s41, %s44
      %p50 = scmp.eq.s32.totalorder %s17, 0
      %p51 = por %p49, %p50
      %p52 = scmp.ne.s32.totalorder %s41, %s44
      %p53 = scmp.eq.s32.totalorder %s22, 2
      %p54 = por %p52, %p53
      %p55 = scmp.ne.s32.totalorder %s44, %s45
      %p56 = scmp.eq.s32.totalorder %s22, 0
      %p57 = por %p55, %p56
      %p58 = scmp.ne.s32.totalorder %s44, %s45
      %p59 = scmp.eq.s32.totalorder %s23, 2
      %p60 = por %p58, %p59
      %p62 = scmp.ne.s32.totalorder %s45, %s61
      %p63 = scmp.eq.s32.totalorder %s23, 0
      %p64 = por %p62, %p63
      %s66 = sadd.s32 %s65, 1
      %p69 = scmp.eq.s32.totalorder %s17, 2
      %p70 = scmp.ne.s32.totalorder %s65, %s67
      %p71 = scmp.eq.s32.totalorder %s17, 0
      %p72 = por %p70, %p71
      %p73 = scmp.ne.s32.totalorder %s65, %s67
      %p74 = scmp.eq.s32.totalorder %s22, 2
      %p75 = por %p73, %p74
      %p76 = scmp.ne.s32.totalorder %s67, %s68
      %p77 = scmp.eq.s32.totalorder %s22, 0
      %p78 = por %p76, %p77
      %p79 = scmp.ne.s32.totalorder %s67, %s68
      %p80 = scmp.eq.s32.totalorder %s23, 2
      %p81 = por %p79, %p80
      %p83 = scmp.ne.s32.totalorder %s68, %s82
      %p84 = scmp.eq.s32.totalorder %s23, 0
      %p85 = por %p83, %p84
      %s87 = sadd.s32 %s86, 1
      %p90 = scmp.eq.s32.totalorder %s17, 2
      %p91 = scmp.ne.s32.totalorder %s86, %s88
      %p92 = scmp.eq.s32.totalorder %s17, 0
      %p93 = por %p91, %p92
      %p94 = scmp.ne.s32.totalorder %s86, %s88
      %p95 = scmp.eq.s32.totalorder %s22, 2
      %p96 = por %p94, %p95
      %p97 = scmp.ne.s32.totalorder %s88, %s89
      %p98 = scmp.eq.s32.totalorder %s22, 0
      %p99 = por %p97, %p98
      %p100 = scmp.ne.s32.totalorder %s88, %s89
      %p101 = scmp.eq.s32.totalorder %s23, 2
      %p102 = por %p100, %p101
      %p104 = scmp.ne.s32.totalorder %s89, %s103
      %p105 = scmp.eq.s32.totalorder %s23, 0
      %p106 = por %p104, %p105
      %s108 = sadd.s32 %s107, 1
      %p111 = scmp.eq.s32.totalorder %s17, 2
      %p112 = scmp.ne.s32.totalorder %s107, %s109
      %p113 = scmp.eq.s32.totalorder %s17, 0
      %p114 = por %p112, %p113
      %p115 = scmp.ne.s32.totalorder %s107, %s109
      %p116 = scmp.eq.s32.totalorder %s22, 2
      %p117 = por %p115, %p116
      %p118 = scmp.ne.s32.totalorder %s109, %s110
      %p119 = scmp.eq.s32.totalorder %s22, 0
      %p120 = por %p118, %p119
      %p121 = scmp.ne.s32.totalorder %s109, %s110
      %p122 = scmp.eq.s32.totalorder %s23, 2
      %p123 = por %p121, %p122
      %p125 = scmp.ne.s32.totalorder %s110, %s124
      %p126 = scmp.eq.s32.totalorder %s23, 0
      %p127 = por %p125, %p126
      %s129 = sadd.s32 %s128, 1
      %p132 = scmp.eq.s32.totalorder %s17, 2
      %p133 = scmp.ne.s32.totalorder %s128, %s130
      %p134 = scmp.eq.s32.totalorder %s17, 0
      %p135 = por %p133, %p134
      %p136 = scmp.ne.s32.totalorder %s128, %s130
      %p137 = scmp.eq.s32.totalorder %s22, 2
      %p138 = por %p136, %p137
      %p139 = scmp.ne.s32.totalorder %s130, %s131
      %p140 = scmp.eq.s32.totalorder %s22, 0
      %p141 = por %p139, %p140
      %p142 = scmp.ne.s32.totalorder %s130, %s131
      %p143 = scmp.eq.s32.totalorder %s23, 2
      %p144 = por %p142, %p143
      %p146 = scmp.ne.s32.totalorder %s131, %s145
      %p147 = scmp.eq.s32.totalorder %s23, 0
      %p148 = por %p146, %p147
      %s150 = sadd.s32 %s149, 1
      %p153 = scmp.eq.s32.totalorder %s17, 2
      %p154 = scmp.ne.s32.totalorder %s149, %s151
      %p155 = scmp.eq.s32.totalorder %s17, 0
      %p156 = por %p154, %p155
      %p157 = scmp.ne.s32.totalorder %s149, %s151
      %p158 = scmp.eq.s32.totalorder %s22, 2
      %p159 = por %p157, %p158
      %p160 = scmp.ne.s32.totalorder %s151, %s152
      %p161 = scmp.eq.s32.totalorder %s22, 0
      %p162 = por %p160, %p161
      %p163 = scmp.ne.s32.totalorder %s151, %s152
      %p164 = scmp.eq.s32.totalorder %s23, 2
      %p165 = por %p163, %p164
      %p167 = scmp.ne.s32.totalorder %s152, %s166
      %p168 = scmp.eq.s32.totalorder %s23, 0
      %p169 = por %p167, %p168
      %s171 = sadd.s32 %s170, 1
      %p174 = scmp.eq.s32.totalorder %s17, 2
      %p175 = scmp.ne.s32.totalorder %s170, %s172
      %p176 = scmp.eq.s32.totalorder %s17, 0
      %p177 = por %p175, %p176
      %p178 = scmp.ne.s32.totalorder %s170, %s172
      %p179 = scmp.eq.s32.totalorder %s22, 2
      %p180 = por %p178, %p179
      %p181 = scmp.ne.s32.totalorder %s172, %s173
      %p182 = scmp.eq.s32.totalorder %s22, 0
      %p183 = por %p181, %p182
      %p184 = scmp.ne.s32.totalorder %s172, %s173
      %p185 = scmp.eq.s32.totalorder %s23, 2
      %p186 = por %p184, %p185
      %p188 = scmp.ne.s32.totalorder %s173, %s187
      %p189 = scmp.eq.s32.totalorder %s23, 0
      %p190 = por %p188, %p189
      %s191 = ssub.s32 %s24, %s36
      %s192 = ssub.s32 %s25, %s32
      %s193 = sor.u32 %s191, %s192
      %p194 = scmp.eq.s32.totalorder %s193, 0
      %s196 = sadd.s32 %s195, 1
      %s197 = scalar_select %p194, %s195, %s196
      %p200 = pneg %p194
      %p201 = scmp.eq.s32.totalorder %s17, 2
      %p202 = por %p200, %p201
      %p203 = scmp.ne.s32.totalorder %s195, %s198
      %p204 = scmp.eq.s32.totalorder %s17, 0
      %p205 = por %p203, %p204
      %p206 = scmp.ne.s32.totalorder %s195, %s198
      %p207 = scmp.eq.s32.totalorder %s22, 2
      %p208 = por %p206, %p207
      %p209 = scmp.ne.s32.totalorder %s198, %s199
      %p210 = scmp.eq.s32.totalorder %s22, 0
      %p211 = por %p209, %p210
      %p212 = scmp.ne.s32.totalorder %s198, %s199
      %p213 = scmp.eq.s32.totalorder %s23, 2
      %p214 = por %p212, %p213
      %p216 = scmp.ne.s32.totalorder %s199, %s215
      %p217 = scmp.eq.s32.totalorder %s23, 0
      %p218 = por %p216, %p217
      %p219 = scmp.le.s32.totalorder 1, %s17
      %p220 = scmp.lt.s32.totalorder %s17, 4
      %p221 = pnand %p219, %p220
      %p222 = pneg %p221
      // Predicated region
      $region9: #{cnn_dpe_forward.1} parent=5 // pred_check
        _
      $region10: #{cnn_dpe_forward.1} parent=5 // pred_check_branch
        %224 = sbr.rel (%p221) target = $region12
      $region11: #{cnn_dpe_forward.1} parent=5 // pred_region
        %s225 = ssub.s32 %s17, 1
        // Predicated region
        $region13: #{cnn_dpe_forward.1} parent=11 // pred_check
          %p226 = pneg %p78
        $region14: #{cnn_dpe_forward.1} parent=11 // pred_check_branch
          %228 = sbr.rel (%p226) target = $region16
        $region15: #{cnn_dpe_forward.1} parent=11 // pred_region
          %230 = vsyncadd [#allocation3], 0
          %s232 = sshll.u32 %s1, 4
          %s233 = int_to_ptr.vmem [resolvable:$true] %s232
          %235 = dma.vmem_to_smem %s233, 16, [#allocation2], [#allocation3]
        $region16: #{cnn_dpe_forward.1} parent=11 // pred_fallthru
          _
        // Predicated region
        $region17: #{cnn_dpe_forward.1} parent=11 // pred_check
          %p236 = pneg %p99
        $region18: #{cnn_dpe_forward.1} parent=11 // pred_check_branch
          %238 = sbr.rel (%p236) target = $region20
        $region19: #{cnn_dpe_forward.1} parent=11 // pred_region
          %240 = vsyncadd [#allocation5], 0
          %s242 = sshll.u32 %s2, 4
          %s243 = int_to_ptr.vmem [resolvable:$true] %s242
          %245 = dma.vmem_to_smem %s243, 16, [#allocation4], [#allocation5]
        $region20: #{cnn_dpe_forward.1} parent=11 // pred_fallthru
          _
        // Predicated region
        $region21: #{cnn_dpe_forward.1} parent=11 // pred_check
          %p246 = pneg %p120
        $region22: #{cnn_dpe_forward.1} parent=11 // pred_check_branch
          %248 = sbr.rel (%p246) target = $region24
        $region23: #{cnn_dpe_forward.1} parent=11 // pred_region
          %250 = vsyncadd [#allocation5], 0
          %s252 = sshll.u32 %s3, 4
          %s253 = int_to_ptr.vmem [resolvable:$true] %s252
          %255 = dma.vmem_to_smem %s253, 16, [#allocation6], [#allocation5]
        $region24: #{cnn_dpe_forward.1} parent=11 // pred_fallthru
          _
        // Predicated region
        $region25: #{cnn_dpe_forward.1} parent=11 // pred_check
          %p256 = pneg %p141
        $region26: #{cnn_dpe_forward.1} parent=11 // pred_check_branch
          %258 = sbr.rel (%p256) target = $region28
        $region27: #{cnn_dpe_forward.1} parent=11 // pred_region
          %260 = vsyncadd [#allocation8], 0
          %s262 = sshll.u32 %s4, 4
          %s263 = int_to_ptr.vmem [resolvable:$true] %s262
          %265 = dma.vmem_to_smem %s263, 16, [#allocation7], [#allocation8]
        $region28: #{cnn_dpe_forward.1} parent=11 // pred_fallthru
          _
        // Predicated region
        $region29: #{cnn_dpe_forward.1} parent=11 // pred_check
          %p266 = pneg %p162
        $region30: #{cnn_dpe_forward.1} parent=11 // pred_check_branch
          %268 = sbr.rel (%p266) target = $region32
        $region31: #{cnn_dpe_forward.1} parent=11 // pred_region
          %270 = vsyncadd [#allocation8], 0
          %s272 = sshll.u32 %s5, 4
          %s273 = int_to_ptr.vmem [resolvable:$true] %s272
          %275 = dma.vmem_to_smem %s273, 32, [#allocation9], [#allocation8]
        $region32: #{cnn_dpe_forward.1} parent=11 // pred_fallthru
          _
        // Predicated region
        $region33: #{cnn_dpe_forward.1} parent=11 // pred_check
          %p276 = pneg %p183
        $region34: #{cnn_dpe_forward.1} parent=11 // pred_check_branch
          %278 = sbr.rel (%p276) target = $region36
        $region35: #{cnn_dpe_forward.1} parent=11 // pred_region
          %280 = vsyncadd [#allocation11], 0
          %s282 = sshll.u32 %s6, 4
          %s283 = int_to_ptr.vmem [resolvable:$true] %s282
          %285 = dma.vmem_to_smem %s283, 16, [#allocation10], [#allocation11]
        $region36: #{cnn_dpe_forward.1} parent=11 // pred_fallthru
          _
      $region12: #{cnn_dpe_forward.1} parent=5 // pred_fallthru
        _
      %p286 = scmp.lt.s32.totalorder %s17, 3
      // Predicated region
      $region37: #{cnn_dpe_forward.1} parent=5 // pred_check
        %p287 = pneg %p286
      $region38: #{cnn_dpe_forward.1} parent=5 // pred_check_branch
        %289 = sbr.rel (%p287) target = $region40
      $region39: #{cnn_dpe_forward.1} parent=5 // pred_region
        // Predicated region
        $region41: #{cnn_dpe_forward.1} parent=39 // pred_check
          %p290 = pneg %p51
        $region42: #{cnn_dpe_forward.1} parent=39 // pred_check_branch
          %292 = sbr.rel (%p290) target = $region44
        $region43: #{cnn_dpe_forward.1} parent=39 // pred_region
          %p293 = scmp.lt.s32.totalorder %s24, 2
          %s294 = scalar_select %p293, %s24, 2
          %p295 = scmp.lt.s32.totalorder %s25, 0
          %s296 = scalar_select %p295, %s25, 0
          %s297 = smul.addr %s296, 3
          %s298 = smul.addr %s294, 3
          %s299 = sadd.s32 %s297, %s298
          %s300 = smul.addr %s299, 8
          %s301 = scalar_lea.vmem %s0, %s300
        $region44: #{cnn_dpe_forward.1} parent=39 // pred_fallthru
          _
      $region40: #{cnn_dpe_forward.1} parent=5 // pred_fallthru
        _
      %p302 = scmp.le.s32.totalorder 1, %s17
      %p303 = scmp.lt.s32.totalorder %s17, 4
      %p304 = pnand %p302, %p303
      %p305 = pneg %p304
      // Predicated region
      $region45: #{cnn_dpe_forward.1} parent=5 // pred_check
        _
      $region46: #{cnn_dpe_forward.1} parent=5 // pred_check_branch
        %307 = sbr.rel (%p304) target = $region48
      $region47: #{cnn_dpe_forward.1} parent=5 // pred_region
        %s308 = ssub.s32 %s17, 1
        // Predicated region
        $region49: #{cnn_dpe_forward.1} parent=47 // pred_check
          %p309 = pneg %p78
        $region50: #{cnn_dpe_forward.1} parent=47 // pred_check_branch
          %311 = sbr.rel (%p309) target = $region52
        $region51: #{cnn_dpe_forward.1} parent=47 // pred_region
          %313 = dma.done [#allocation3], 16
        $region52: #{cnn_dpe_forward.1} parent=47 // pred_fallthru
          _
        // Predicated region
        $region53: #{cnn_dpe_forward.1} parent=47 // pred_check
          %p314 = pneg %p99
        $region54: #{cnn_dpe_forward.1} parent=47 // pred_check_branch
          %316 = sbr.rel (%p314) target = $region56
        $region55: #{cnn_dpe_forward.1} parent=47 // pred_region
          %318 = dma.done [#allocation5], 16
        $region56: #{cnn_dpe_forward.1} parent=47 // pred_fallthru
          _
        // Predicated region
        $region57: #{cnn_dpe_forward.1} parent=47 // pred_check
          %p319 = pneg %p120
        $region58: #{cnn_dpe_forward.1} parent=47 // pred_check_branch
          %321 = sbr.rel (%p319) target = $region60
        $region59: #{cnn_dpe_forward.1} parent=47 // pred_region
          %323 = dma.done [#allocation5], 16
        $region60: #{cnn_dpe_forward.1} parent=47 // pred_fallthru
          _
        // Predicated region
        $region61: #{cnn_dpe_forward.1} parent=47 // pred_check
          %p324 = pneg %p141
        $region62: #{cnn_dpe_forward.1} parent=47 // pred_check_branch
          %326 = sbr.rel (%p324) target = $region64
        $region63: #{cnn_dpe_forward.1} parent=47 // pred_region
          %328 = dma.done [#allocation8], 16
        $region64: #{cnn_dpe_forward.1} parent=47 // pred_fallthru
          _
        // Predicated region
        $region65: #{cnn_dpe_forward.1} parent=47 // pred_check
          %p329 = pneg %p162
        $region66: #{cnn_dpe_forward.1} parent=47 // pred_check_branch
          %331 = sbr.rel (%p329) target = $region68
        $region67: #{cnn_dpe_forward.1} parent=47 // pred_region
          %333 = dma.done [#allocation8], 32
        $region68: #{cnn_dpe_forward.1} parent=47 // pred_fallthru
          _
        // Predicated region
        $region69: #{cnn_dpe_forward.1} parent=47 // pred_check
          %p334 = pneg %p183
        $region70: #{cnn_dpe_forward.1} parent=47 // pred_check_branch
          %336 = sbr.rel (%p334) target = $region72
        $region71: #{cnn_dpe_forward.1} parent=47 // pred_region
          %338 = dma.done [#allocation11], 16
        $region72: #{cnn_dpe_forward.1} parent=47 // pred_fallthru
          _
        %339 = sfence
        %p340 = scmp.lt.s32.totalorder %s26, 2
        %s341 = scalar_select %p340, %s26, 2
        %p342 = scmp.lt.s32.totalorder %s27, 0
        %s343 = scalar_select %p342, %s27, 0
        %s344 = smul.addr %s343, 3
        %s345 = smul.addr %s341, 3
        %s346 = sadd.s32 %s344, %s345
        %s347 = smul.addr %s346, 8
        %s348 = scalar_lea.vmem %s0, %s347
        %p349 = pneg %p57
        %p350 = pneg %p54
        %p351 = pneg %p78
        %p352 = pneg %p75
        %p353 = pneg %p99
        %p354 = pneg %p96
        %p355 = pneg %p120
        %p356 = pneg %p117
        %p357 = pneg %p141
        %p358 = pneg %p138
        %p359 = pneg %p162
        %p360 = pneg %p159
        %p361 = pneg %p183
        %p362 = pneg %p180
        %p363 = pneg %p211
        %p364 = pneg %p208
        %p365 = scmp.lt.s32.totalorder %s26, 2
        %s366 = scalar_select %p365, %s26, 2
        %p367 = scmp.lt.s32.totalorder %s27, 0
        %s368 = scalar_select %p367, %s27, 0
        %s369 = smul.addr %s368, 3
        %s370 = smul.addr %s366, 3
        %s371 = sadd.s32 %s369, %s370
        %s372 = smul.addr %s371, 8
        %s373 = scalar_lea.vmem %s7, %s372
        %p374 = scmp.lt.s32.totalorder %s26, 2
        %s375 = scalar_select %p374, %s26, 2
        %p376 = scmp.lt.s32.totalorder %s27, 0
        %s377 = scalar_select %p376, %s27, 0
        %s378 = smul.addr %s377, 3
        %s379 = smul.addr %s375, 3
        %s380 = sadd.s32 %s378, %s379
        %s381 = smul.addr %s380, 8
        %s382 = scalar_lea.vmem %s0, %s381
        %p383 = scmp.lt.s32.totalorder %s26, 2
        %s384 = scalar_select %p383, %s26, 2
        %p385 = scmp.lt.s32.totalorder %s27, 0
        %s386 = scalar_select %p385, %s27, 0
        %s387 = smul.addr %s386, 3
        %s388 = smul.addr %s384, 3
        %s389 = sadd.s32 %s387, %s388
        %s390 = smul.addr %s389, 8
        %s391 = scalar_lea.vmem %s7, %s390
        %v392 = vlaneseq
        %v393 = vshrl.u32 %v392, 7
        %v394 = vadd.s32 %v393, 8
        %v395 = vadd.s32 %v393, 16
        %v396 = vlaneseq
        %v397 = vand.u32 %v396, 127
        %vm398 = vcmp.ge.s32.totalorder %v393, 3
        %vm399 = vcmp.ge.s32.totalorder %v394, 3
        %vm400 = vcmp.ge.s32.totalorder %v395, 3
        %vm401 = vcmp.lt.s32.totalorder %v393, 19
        %vm402 = vcmp.lt.s32.totalorder %v394, 19
        %vm403 = vcmp.lt.s32.totalorder %v395, 19
        %vm404 = vmand %vm398, %vm401
        %vm405 = vmand %vm399, %vm402
        %vm406 = vmand %vm400, %vm403
        %vm407 = vcmp.ge.s32.totalorder %v397, 3
        %vm408 = vcmp.lt.s32.totalorder %v397, 19
        %vm409 = vmand %vm407, %vm408
        %vm410 = vcmp.ge.s32.totalorder %v397, 22
        %vm411 = vcmp.lt.s32.totalorder %v397, 38
        %vm412 = vmand %vm410, %vm411
        %vm413 = vmor %vm409, %vm412
        %vm414 = vmand %vm404, %vm413
        %vm415 = vmand %vm405, %vm413
        %vm416 = vmand %vm406, %vm413
        %v417 = vsel %vm414, 1.0, 0.0
        %v418 = vsel %vm415, 1.0, 0.0
        %v419 = vsel %vm416, 1.0, 0.0
        %s420 = smul.u32 %s26, 9
        %s421 = sld [smem:[#allocation2 + %s420]]
        %s422 = sadd.s32 %s420, 1
        %s423 = sld [smem:[#allocation2 + %s422]]
        %s424 = sadd.s32 %s420, 2
        %s425 = sld [smem:[#allocation2 + %s424]]
        %s426 = sadd.s32 %s420, 3
        %s427 = sld [smem:[#allocation2 + %s426]]
        %s428 = sadd.s32 %s420, 4
        %s429 = sld [smem:[#allocation2 + %s428]]
        %s430 = sadd.s32 %s420, 5
        %s431 = sld [smem:[#allocation2 + %s430]]
        %s432 = sadd.s32 %s420, 6
        %s433 = sld [smem:[#allocation2 + %s432]]
        %s434 = sadd.s32 %s420, 7
        %s435 = sld [smem:[#allocation2 + %s434]]
        %s436 = sadd.s32 %s420, 8
        %s437 = sld [smem:[#allocation2 + %s436]]
        %s438 = smul.u32 %s26, 25
        %s439 = sld [smem:[#allocation6 + %s438]]
        %s440 = sadd.s32 %s438, 1
        %s441 = sld [smem:[#allocation6 + %s440]]
        %s442 = sadd.s32 %s438, 2
        %s443 = sld [smem:[#allocation6 + %s442]]
        %s444 = sadd.s32 %s438, 3
        %s445 = sld [smem:[#allocation6 + %s444]]
        %s446 = sadd.s32 %s438, 4
        %s447 = sld [smem:[#allocation6 + %s446]]
        %s448 = sadd.s32 %s438, 5
        %s449 = sld [smem:[#allocation6 + %s448]]
        %s450 = sadd.s32 %s438, 6
        %s451 = sld [smem:[#allocation6 + %s450]]
        %s452 = sadd.s32 %s438, 7
        %s453 = sld [smem:[#allocation6 + %s452]]
        %s454 = sadd.s32 %s438, 8
        %s455 = sld [smem:[#allocation6 + %s454]]
        %s456 = sadd.s32 %s438, 9
        %s457 = sld [smem:[#allocation6 + %s456]]
        %s458 = sadd.s32 %s438, 10
        %s459 = sld [smem:[#allocation6 + %s458]]
        %s460 = sadd.s32 %s438, 11
        %s461 = sld [smem:[#allocation6 + %s460]]
        %s462 = sadd.s32 %s438, 12
        %s463 = sld [smem:[#allocation6 + %s462]]
        %s464 = sadd.s32 %s438, 13
        %s465 = sld [smem:[#allocation6 + %s464]]
        %s466 = sadd.s32 %s438, 14
        %s467 = sld [smem:[#allocation6 + %s466]]
        %s468 = sadd.s32 %s438, 15
        %s469 = sld [smem:[#allocation6 + %s468]]
        %s470 = sadd.s32 %s438, 16
        %s471 = sld [smem:[#allocation6 + %s470]]
        %s472 = sadd.s32 %s438, 17
        %s473 = sld [smem:[#allocation6 + %s472]]
        %s474 = sadd.s32 %s438, 18
        %s475 = sld [smem:[#allocation6 + %s474]]
        %s476 = sadd.s32 %s438, 19
        %s477 = sld [smem:[#allocation6 + %s476]]
        %s478 = sadd.s32 %s438, 20
        %s479 = sld [smem:[#allocation6 + %s478]]
        %s480 = sadd.s32 %s438, 21
        %s481 = sld [smem:[#allocation6 + %s480]]
        %s482 = sadd.s32 %s438, 22
        %s483 = sld [smem:[#allocation6 + %s482]]
        %s484 = sadd.s32 %s438, 23
        %s485 = sld [smem:[#allocation6 + %s484]]
        %s486 = sadd.s32 %s438, 24
        %s487 = sld [smem:[#allocation6 + %s486]]
        %s488 = smul.u32 %s26, 49
        %s489 = sld [smem:[#allocation9 + %s488]]
        %s490 = sadd.s32 %s488, 1
        %s491 = sld [smem:[#allocation9 + %s490]]
        %s492 = sadd.s32 %s488, 2
        %s493 = sld [smem:[#allocation9 + %s492]]
        %s494 = sadd.s32 %s488, 3
        %s495 = sld [smem:[#allocation9 + %s494]]
        %s496 = sadd.s32 %s488, 4
        %s497 = sld [smem:[#allocation9 + %s496]]
        %s498 = sadd.s32 %s488, 5
        %s499 = sld [smem:[#allocation9 + %s498]]
        %s500 = sadd.s32 %s488, 6
        %s501 = sld [smem:[#allocation9 + %s500]]
        %s502 = sadd.s32 %s488, 7
        %s503 = sld [smem:[#allocation9 + %s502]]
        %s504 = sadd.s32 %s488, 8
        %s505 = sld [smem:[#allocation9 + %s504]]
        %s506 = sadd.s32 %s488, 9
        %s507 = sld [smem:[#allocation9 + %s506]]
        %s508 = sadd.s32 %s488, 10
        %s509 = sld [smem:[#allocation9 + %s508]]
        %s510 = sadd.s32 %s488, 11
        %s511 = sld [smem:[#allocation9 + %s510]]
        %s512 = sadd.s32 %s488, 12
        %s513 = sld [smem:[#allocation9 + %s512]]
        %s514 = sadd.s32 %s488, 13
        %s515 = sld [smem:[#allocation9 + %s514]]
        %s516 = sadd.s32 %s488, 14
        %s517 = sld [smem:[#allocation9 + %s516]]
        %s518 = sadd.s32 %s488, 15
        %s519 = sld [smem:[#allocation9 + %s518]]
        %s520 = sadd.s32 %s488, 16
        %s521 = sld [smem:[#allocation9 + %s520]]
        %s522 = sadd.s32 %s488, 17
        %s523 = sld [smem:[#allocation9 + %s522]]
        %s524 = sadd.s32 %s488, 18
        %s525 = sld [smem:[#allocation9 + %s524]]
        %s526 = sadd.s32 %s488, 19
        %s527 = sld [smem:[#allocation9 + %s526]]
        %s528 = sadd.s32 %s488, 20
        %s529 = sld [smem:[#allocation9 + %s528]]
        %s530 = sadd.s32 %s488, 21
        %s531 = sld [smem:[#allocation9 + %s530]]
        %s532 = sadd.s32 %s488, 22
        %s533 = sld [smem:[#allocation9 + %s532]]
        %s534 = sadd.s32 %s488, 23
        %s535 = sld [smem:[#allocation9 + %s534]]
        %s536 = sadd.s32 %s488, 24
        %s537 = sld [smem:[#allocation9 + %s536]]
        %s538 = sadd.s32 %s488, 25
        %s539 = sld [smem:[#allocation9 + %s538]]
        %s540 = sadd.s32 %s488, 26
        %s541 = sld [smem:[#allocation9 + %s540]]
        %s542 = sadd.s32 %s488, 27
        %s543 = sld [smem:[#allocation9 + %s542]]
        %s544 = sadd.s32 %s488, 28
        %s545 = sld [smem:[#allocation9 + %s544]]
        %s546 = sadd.s32 %s488, 29
        %s547 = sld [smem:[#allocation9 + %s546]]
        %s548 = sadd.s32 %s488, 30
        %s549 = sld [smem:[#allocation9 + %s548]]
        %s550 = sadd.s32 %s488, 31
        %s551 = sld [smem:[#allocation9 + %s550]]
        %s552 = sadd.s32 %s488, 32
        %s553 = sld [smem:[#allocation9 + %s552]]
        %s554 = sadd.s32 %s488, 33
        %s555 = sld [smem:[#allocation9 + %s554]]
        %s556 = sadd.s32 %s488, 34
        %s557 = sld [smem:[#allocation9 + %s556]]
        %s558 = sadd.s32 %s488, 35
        %s559 = sld [smem:[#allocation9 + %s558]]
        %s560 = sadd.s32 %s488, 36
        %s561 = sld [smem:[#allocation9 + %s560]]
        %s562 = sadd.s32 %s488, 37
        %s563 = sld [smem:[#allocation9 + %s562]]
        %s564 = sadd.s32 %s488, 38
        %s565 = sld [smem:[#allocation9 + %s564]]
        %s566 = sadd.s32 %s488, 39
        %s567 = sld [smem:[#allocation9 + %s566]]
        %s568 = sadd.s32 %s488, 40
        %s569 = sld [smem:[#allocation9 + %s568]]
        %s570 = sadd.s32 %s488, 41
        %s571 = sld [smem:[#allocation9 + %s570]]
        %s572 = sadd.s32 %s488, 42
        %s573 = sld [smem:[#allocation9 + %s572]]
        %s574 = sadd.s32 %s488, 43
        %s575 = sld [smem:[#allocation9 + %s574]]
        %s576 = sadd.s32 %s488, 44
        %s577 = sld [smem:[#allocation9 + %s576]]
        %s578 = sadd.s32 %s488, 45
        %s579 = sld [smem:[#allocation9 + %s578]]
        %s580 = sadd.s32 %s488, 46
        %s581 = sld [smem:[#allocation9 + %s580]]
        %s582 = sadd.s32 %s488, 47
        %s583 = sld [smem:[#allocation9 + %s582]]
        %s584 = sadd.s32 %s488, 48
        %s585 = sld [smem:[#allocation9 + %s584]]
        %s586 = sld [smem:[#allocation4 + %s26]]
        %s587 = sld [smem:[#allocation7 + %s26]]
        %s588 = sld [smem:[#allocation10 + %s26]]
        %v589 = vld [vmem:[%s382] sm:$0xff]
        %v590 = vld [vmem:[%s382 + $0x8] sm:$0xff]
        %v591 = vld [vmem:[%s382 + $0x10] sm:$0xff]
        %592 = vrot.lane.b32.xlu0 %v589, 1
        %v593 = vpop.permute.xlu0 %592
        %594 = vrot.lane.b32.xlu0 %v590, 1
        %v595 = vpop.permute.xlu0 %594
        %596 = vrot.lane.b32.xlu0 %v591, 1
        %v597 = vpop.permute.xlu0 %596
        %598 = vrot.lane.b32.xlu0 %v589, 127
        %v599 = vpop.permute.xlu0 %598
        %600 = vrot.lane.b32.xlu0 %v590, 127
        %v601 = vpop.permute.xlu0 %600
        %602 = vrot.lane.b32.xlu0 %v591, 127
        %v603 = vpop.permute.xlu0 %602
        %v604 = vstv %s421
        %v605 = vmul.f32 %v604, %v593
        %v606 = vmul.f32 %v604, %v595
        %v607 = vmul.f32 %v604, %v597
        %v608 = vstv %s423
        %v609 = vmul.f32 %v608, %v589
        %v610 = vmul.f32 %v608, %v590
        %v611 = vmul.f32 %v608, %v591
        %v612 = vadd.f32 %v605, %v609
        %v613 = vadd.f32 %v606, %v610
        %v614 = vadd.f32 %v607, %v611
        %v615 = vstv %s425
        %v616 = vmul.f32 %v615, %v599
        %v617 = vmul.f32 %v615, %v601
        %v618 = vmul.f32 %v615, %v603
        %v619 = vadd.f32 %v612, %v616
        %v620 = vadd.f32 %v613, %v617
        %v621 = vadd.f32 %v614, %v618
        %v622 = vrot.slane %v619, 7
        %v623 = vrot.slane %v620, 7
        %v624 = vrot.slane %v621, 7
        %vm625 = vcmp.lt.s32.totalorder %v393, 1
        %v626 = vsel %vm625, %v623, %v624
        %v627 = vsel %vm625, %v622, %v623
        %v628 = vsel %vm625, %v624, %v622
        %v629 = vstv %s427
        %v630 = vmul.f32 %v629, %v593
        %v631 = vmul.f32 %v629, %v595
        %v632 = vmul.f32 %v629, %v597
        %v633 = vstv %s429
        %v634 = vmul.f32 %v633, %v589
        %v635 = vmul.f32 %v633, %v590
        %v636 = vmul.f32 %v633, %v591
        %v637 = vadd.f32 %v630, %v634
        %v638 = vadd.f32 %v631, %v635
        %v639 = vadd.f32 %v632, %v636
        %v640 = vstv %s431
        %v641 = vmul.f32 %v640, %v599
        %v642 = vmul.f32 %v640, %v601
        %v643 = vmul.f32 %v640, %v603
        %v644 = vadd.f32 %v637, %v641
        %v645 = vadd.f32 %v638, %v642
        %v646 = vadd.f32 %v639, %v643
        %v647 = vadd.f32 %v628, %v644
        %v648 = vadd.f32 %v627, %v645
        %v649 = vadd.f32 %v626, %v646
        %v650 = vstv %s433
        %v651 = vmul.f32 %v650, %v593
        %v652 = vmul.f32 %v650, %v595
        %v653 = vmul.f32 %v650, %v597
        %v654 = vstv %s435
        %v655 = vmul.f32 %v654, %v589
        %v656 = vmul.f32 %v654, %v590
        %v657 = vmul.f32 %v654, %v591
        %v658 = vadd.f32 %v651, %v655
        %v659 = vadd.f32 %v652, %v656
        %v660 = vadd.f32 %v653, %v657
        %v661 = vstv %s437
        %v662 = vmul.f32 %v661, %v599
        %v663 = vmul.f32 %v661, %v601
        %v664 = vmul.f32 %v661, %v603
        %v665 = vadd.f32 %v658, %v662
        %v666 = vadd.f32 %v659, %v663
        %v667 = vadd.f32 %v660, %v664
        %v668 = vrot.slane %v665, 1
        %v669 = vrot.slane %v666, 1
        %v670 = vrot.slane %v667, 1
        %vm671 = vcmp.lt.s32.totalorder %v393, 7
        %v672 = vsel %vm671, %v669, %v670
        %v673 = vsel %vm671, %v668, %v669
        %v674 = vsel %vm671, %v670, %v668
        %v675 = vadd.f32 %v647, %v673
        %v676 = vadd.f32 %v648, %v672
        %v677 = vadd.f32 %v649, %v674
        %v678 = vstv %s586
        %v679 = vadd.f32 %v675, %v678
        %v680 = vadd.f32 %v676, %v678
        %v681 = vadd.f32 %v677, %v678
        %v682 = vmul.f32 %v679, %v417
        %v683 = vmul.f32 %v680, %v418
        %v684 = vmul.f32 %v681, %v419
        %685 = vrot.lane.b32.xlu0 %v682, 2
        %v686 = vpop.permute.xlu0 %685
        %687 = vrot.lane.b32.xlu0 %v683, 2
        %v688 = vpop.permute.xlu0 %687
        %689 = vrot.lane.b32.xlu0 %v684, 2
        %v690 = vpop.permute.xlu0 %689
        %691 = vrot.lane.b32.xlu0 %v682, 1
        %v692 = vpop.permute.xlu0 %691
        %693 = vrot.lane.b32.xlu0 %v683, 1
        %v694 = vpop.permute.xlu0 %693
        %695 = vrot.lane.b32.xlu0 %v684, 1
        %v696 = vpop.permute.xlu0 %695
        %697 = vrot.lane.b32.xlu0 %v682, 127
        %v698 = vpop.permute.xlu0 %697
        %699 = vrot.lane.b32.xlu0 %v683, 127
        %v700 = vpop.permute.xlu0 %699
        %701 = vrot.lane.b32.xlu0 %v684, 127
        %v702 = vpop.permute.xlu0 %701
        %703 = vrot.lane.b32.xlu0 %v682, 126
        %v704 = vpop.permute.xlu0 %703
        %705 = vrot.lane.b32.xlu0 %v683, 126
        %v706 = vpop.permute.xlu0 %705
        %707 = vrot.lane.b32.xlu0 %v684, 126
        %v708 = vpop.permute.xlu0 %707
        %v709 = vstv %s439
        %v710 = vmul.f32 %v709, %v686
        %v711 = vmul.f32 %v709, %v688
        %v712 = vmul.f32 %v709, %v690
        %v713 = vstv %s441
        %v714 = vmul.f32 %v713, %v692
        %v715 = vmul.f32 %v713, %v694
        %v716 = vmul.f32 %v713, %v696
        %v717 = vadd.f32 %v710, %v714
        %v718 = vadd.f32 %v711, %v715
        %v719 = vadd.f32 %v712, %v716
        %v720 = vstv %s443
        %v721 = vmul.f32 %v720, %v682
        %v722 = vmul.f32 %v720, %v683
        %v723 = vmul.f32 %v720, %v684
        %v724 = vadd.f32 %v717, %v721
        %v725 = vadd.f32 %v718, %v722
        %v726 = vadd.f32 %v719, %v723
        %v727 = vstv %s445
        %v728 = vmul.f32 %v727, %v698
        %v729 = vmul.f32 %v727, %v700
        %v730 = vmul.f32 %v727, %v702
        %v731 = vadd.f32 %v724, %v728
        %v732 = vadd.f32 %v725, %v729
        %v733 = vadd.f32 %v726, %v730
        %v734 = vstv %s447
        %v735 = vmul.f32 %v734, %v704
        %v736 = vmul.f32 %v734, %v706
        %v737 = vmul.f32 %v734, %v708
        %v738 = vadd.f32 %v731, %v735
        %v739 = vadd.f32 %v732, %v736
        %v740 = vadd.f32 %v733, %v737
        %v741 = vrot.slane %v738, 6
        %v742 = vrot.slane %v739, 6
        %v743 = vrot.slane %v740, 6
        %vm744 = vcmp.lt.s32.totalorder %v393, 2
        %v745 = vsel %vm744, %v742, %v743
        %v746 = vsel %vm744, %v741, %v742
        %v747 = vsel %vm744, %v743, %v741
        %v748 = vstv %s449
        %v749 = vmul.f32 %v748, %v686
        %v750 = vmul.f32 %v748, %v688
        %v751 = vmul.f32 %v748, %v690
        %v752 = vstv %s451
        %v753 = vmul.f32 %v752, %v692
        %v754 = vmul.f32 %v752, %v694
        %v755 = vmul.f32 %v752, %v696
        %v756 = vadd.f32 %v749, %v753
        %v757 = vadd.f32 %v750, %v754
        %v758 = vadd.f32 %v751, %v755
        %v759 = vstv %s453
        %v760 = vmul.f32 %v759, %v682
        %v761 = vmul.f32 %v759, %v683
        %v762 = vmul.f32 %v759, %v684
        %v763 = vadd.f32 %v756, %v760
        %v764 = vadd.f32 %v757, %v761
        %v765 = vadd.f32 %v758, %v762
        %v766 = vstv %s455
        %v767 = vmul.f32 %v766, %v698
        %v768 = vmul.f32 %v766, %v700
        %v769 = vmul.f32 %v766, %v702
        %v770 = vadd.f32 %v763, %v767
        %v771 = vadd.f32 %v764, %v768
        %v772 = vadd.f32 %v765, %v769
        %v773 = vstv %s457
        %v774 = vmul.f32 %v773, %v704
        %v775 = vmul.f32 %v773, %v706
        %v776 = vmul.f32 %v773, %v708
        %v777 = vadd.f32 %v770, %v774
        %v778 = vadd.f32 %v771, %v775
        %v779 = vadd.f32 %v772, %v776
        %v780 = vrot.slane %v777, 7
        %v781 = vrot.slane %v778, 7
        %v782 = vrot.slane %v779, 7
        %v783 = vsel %vm625, %v781, %v782
        %v784 = vsel %vm625, %v780, %v781
        %v785 = vsel %vm625, %v782, %v780
        %v786 = vadd.f32 %v747, %v785
        %v787 = vadd.f32 %v746, %v784
        %v788 = vadd.f32 %v745, %v783
        %v789 = vstv %s459
        %v790 = vmul.f32 %v789, %v686
        %v791 = vmul.f32 %v789, %v688
        %v792 = vmul.f32 %v789, %v690
        %v793 = vstv %s461
        %v794 = vmul.f32 %v793, %v692
        %v795 = vmul.f32 %v793, %v694
        %v796 = vmul.f32 %v793, %v696
        %v797 = vadd.f32 %v790, %v794
        %v798 = vadd.f32 %v791, %v795
        %v799 = vadd.f32 %v792, %v796
        %v800 = vstv %s463
        %v801 = vmul.f32 %v800, %v682
        %v802 = vmul.f32 %v800, %v683
        %v803 = vmul.f32 %v800, %v684
        %v804 = vadd.f32 %v797, %v801
        %v805 = vadd.f32 %v798, %v802
        %v806 = vadd.f32 %v799, %v803
        %v807 = vstv %s465
        %v808 = vmul.f32 %v807, %v698
        %v809 = vmul.f32 %v807, %v700
        %v810 = vmul.f32 %v807, %v702
        %v811 = vadd.f32 %v804, %v808
        %v812 = vadd.f32 %v805, %v809
        %v813 = vadd.f32 %v806, %v810
        %v814 = vstv %s467
        %v815 = vmul.f32 %v814, %v704
        %v816 = vmul.f32 %v814, %v706
        %v817 = vmul.f32 %v814, %v708
        %v818 = vadd.f32 %v811, %v815
        %v819 = vadd.f32 %v812, %v816
        %v820 = vadd.f32 %v813, %v817
        %v821 = vadd.f32 %v786, %v818
        %v822 = vadd.f32 %v787, %v819
        %v823 = vadd.f32 %v788, %v820
        %v824 = vstv %s469
        %v825 = vmul.f32 %v824, %v686
        %v826 = vmul.f32 %v824, %v688
        %v827 = vmul.f32 %v824, %v690
        %v828 = vstv %s471
        %v829 = vmul.f32 %v828, %v692
        %v830 = vmul.f32 %v828, %v694
        %v831 = vmul.f32 %v828, %v696
        %v832 = vadd.f32 %v825, %v829
        %v833 = vadd.f32 %v826, %v830
        %v834 = vadd.f32 %v827, %v831
        %v835 = vstv %s473
        %v836 = vmul.f32 %v835, %v682
        %v837 = vmul.f32 %v835, %v683
        %v838 = vmul.f32 %v835, %v684
        %v839 = vadd.f32 %v832, %v836
        %v840 = vadd.f32 %v833, %v837
        %v841 = vadd.f32 %v834, %v838
        %v842 = vstv %s475
        %v843 = vmul.f32 %v842, %v698
        %v844 = vmul.f32 %v842, %v700
        %v845 = vmul.f32 %v842, %v702
        %v846 = vadd.f32 %v839, %v843
        %v847 = vadd.f32 %v840, %v844
        %v848 = vadd.f32 %v841, %v845
        %v849 = vstv %s477
        %v850 = vmul.f32 %v849, %v704
        %v851 = vmul.f32 %v849, %v706
        %v852 = vmul.f32 %v849, %v708
        %v853 = vadd.f32 %v846, %v850
        %v854 = vadd.f32 %v847, %v851
        %v855 = vadd.f32 %v848, %v852
        %v856 = vrot.slane %v853, 1
        %v857 = vrot.slane %v854, 1
        %v858 = vrot.slane %v855, 1
        %v859 = vsel %vm671, %v857, %v858
        %v860 = vsel %vm671, %v856, %v857
        %v861 = vsel %vm671, %v858, %v856
        %v862 = vadd.f32 %v821, %v860
        %v863 = vadd.f32 %v822, %v859
        %v864 = vadd.f32 %v823, %v861
        %v865 = vstv %s479
        %v866 = vmul.f32 %v865, %v686
        %v867 = vmul.f32 %v865, %v688
        %v868 = vmul.f32 %v865, %v690
        %v869 = vstv %s481
        %v870 = vmul.f32 %v869, %v692
        %v871 = vmul.f32 %v869, %v694
        %v872 = vmul.f32 %v869, %v696
        %v873 = vadd.f32 %v866, %v870
        %v874 = vadd.f32 %v867, %v871
        %v875 = vadd.f32 %v868, %v872
        %v876 = vstv %s483
        %v877 = vmul.f32 %v876, %v682
        %v878 = vmul.f32 %v876, %v683
        %v879 = vmul.f32 %v876, %v684
        %v880 = vadd.f32 %v873, %v877
        %v881 = vadd.f32 %v874, %v878
        %v882 = vadd.f32 %v875, %v879
        %v883 = vstv %s485
        %v884 = vmul.f32 %v883, %v698
        %v885 = vmul.f32 %v883, %v700
        %v886 = vmul.f32 %v883, %v702
        %v887 = vadd.f32 %v880, %v884
        %v888 = vadd.f32 %v881, %v885
        %v889 = vadd.f32 %v882, %v886
        %v890 = vstv %s487
        %v891 = vmul.f32 %v890, %v704
        %v892 = vmul.f32 %v890, %v706
        %v893 = vmul.f32 %v890, %v708
        %v894 = vadd.f32 %v887, %v891
        %v895 = vadd.f32 %v888, %v892
        %v896 = vadd.f32 %v889, %v893
        %v897 = vrot.slane %v894, 2
        %v898 = vrot.slane %v895, 2
        %v899 = vrot.slane %v896, 2
        %vm900 = vcmp.lt.s32.totalorder %v393, 6
        %v901 = vsel %vm900, %v898, %v899
        %v902 = vsel %vm900, %v897, %v898
        %v903 = vsel %vm900, %v899, %v897
        %v904 = vadd.f32 %v862, %v902
        %v905 = vadd.f32 %v863, %v901
        %v906 = vadd.f32 %v864, %v903
        %v907 = vstv %s587
        %v908 = vadd.f32 %v904, %v907
        %v909 = vadd.f32 %v905, %v907
        %v910 = vadd.f32 %v906, %v907
        %v911 = vmul.f32 %v908, %v417
        %v912 = vmul.f32 %v909, %v418
        %v913 = vmul.f32 %v910, %v419
        %914 = vrot.lane.b32.xlu0 %v911, 3
        %v915 = vpop.permute.xlu0 %914
        %916 = vrot.lane.b32.xlu0 %v912, 3
        %v917 = vpop.permute.xlu0 %916
        %918 = vrot.lane.b32.xlu0 %v913, 3
        %v919 = vpop.permute.xlu0 %918
        %920 = vrot.lane.b32.xlu0 %v911, 2
        %v921 = vpop.permute.xlu0 %920
        %922 = vrot.lane.b32.xlu0 %v912, 2
        %v923 = vpop.permute.xlu0 %922
        %924 = vrot.lane.b32.xlu0 %v913, 2
        %v925 = vpop.permute.xlu0 %924
        %926 = vrot.lane.b32.xlu0 %v911, 1
        %v927 = vpop.permute.xlu0 %926
        %928 = vrot.lane.b32.xlu0 %v912, 1
        %v929 = vpop.permute.xlu0 %928
        %930 = vrot.lane.b32.xlu0 %v913, 1
        %v931 = vpop.permute.xlu0 %930
        %932 = vrot.lane.b32.xlu0 %v911, 127
        %v933 = vpop.permute.xlu0 %932
        %934 = vrot.lane.b32.xlu0 %v912, 127
        %v935 = vpop.permute.xlu0 %934
        %936 = vrot.lane.b32.xlu0 %v913, 127
        %v937 = vpop.permute.xlu0 %936
        %938 = vrot.lane.b32.xlu0 %v911, 126
        %v939 = vpop.permute.xlu0 %938
        %940 = vrot.lane.b32.xlu0 %v912, 126
        %v941 = vpop.permute.xlu0 %940
        %942 = vrot.lane.b32.xlu0 %v913, 126
        %v943 = vpop.permute.xlu0 %942
        %944 = vrot.lane.b32.xlu0 %v911, 125
        %v945 = vpop.permute.xlu0 %944
        %946 = vrot.lane.b32.xlu0 %v912, 125
        %v947 = vpop.permute.xlu0 %946
        %948 = vrot.lane.b32.xlu0 %v913, 125
        %v949 = vpop.permute.xlu0 %948
        %v950 = vstv %s489
        %v951 = vmul.f32 %v950, %v915
        %v952 = vmul.f32 %v950, %v917
        %v953 = vmul.f32 %v950, %v919
        %v954 = vstv %s491
        %v955 = vmul.f32 %v954, %v921
        %v956 = vmul.f32 %v954, %v923
        %v957 = vmul.f32 %v954, %v925
        %v958 = vadd.f32 %v951, %v955
        %v959 = vadd.f32 %v952, %v956
        %v960 = vadd.f32 %v953, %v957
        %v961 = vstv %s493
        %v962 = vmul.f32 %v961, %v927
        %v963 = vmul.f32 %v961, %v929
        %v964 = vmul.f32 %v961, %v931
        %v965 = vadd.f32 %v958, %v962
        %v966 = vadd.f32 %v959, %v963
        %v967 = vadd.f32 %v960, %v964
        %v968 = vstv %s495
        %v969 = vmul.f32 %v968, %v911
        %v970 = vmul.f32 %v968, %v912
        %v971 = vmul.f32 %v968, %v913
        %v972 = vadd.f32 %v965, %v969
        %v973 = vadd.f32 %v966, %v970
        %v974 = vadd.f32 %v967, %v971
        %v975 = vstv %s497
        %v976 = vmul.f32 %v975, %v933
        %v977 = vmul.f32 %v975, %v935
        %v978 = vmul.f32 %v975, %v937
        %v979 = vadd.f32 %v972, %v976
        %v980 = vadd.f32 %v973, %v977
        %v981 = vadd.f32 %v974, %v978
        %v982 = vstv %s499
        %v983 = vmul.f32 %v982, %v939
        %v984 = vmul.f32 %v982, %v941
        %v985 = vmul.f32 %v982, %v943
        %v986 = vadd.f32 %v979, %v983
        %v987 = vadd.f32 %v980, %v984
        %v988 = vadd.f32 %v981, %v985
        %v989 = vstv %s501
        %v990 = vmul.f32 %v989, %v945
        %v991 = vmul.f32 %v989, %v947
        %v992 = vmul.f32 %v989, %v949
        %v993 = vadd.f32 %v986, %v990
        %v994 = vadd.f32 %v987, %v991
        %v995 = vadd.f32 %v988, %v992
        %v996 = vrot.slane %v993, 5
        %v997 = vrot.slane %v994, 5
        %v998 = vrot.slane %v995, 5
        %vm999 = vcmp.lt.s32.totalorder %v393, 3
        %v1000 = vsel %vm999, %v997, %v998
        %v1001 = vsel %vm999, %v996, %v997
        %v1002 = vsel %vm999, %v998, %v996
        %v1003 = vstv %s503
        %v1004 = vmul.f32 %v1003, %v915
        %v1005 = vmul.f32 %v1003, %v917
        %v1006 = vmul.f32 %v1003, %v919
        %v1007 = vstv %s505
        %v1008 = vmul.f32 %v1007, %v921
        %v1009 = vmul.f32 %v1007, %v923
        %v1010 = vmul.f32 %v1007, %v925
        %v1011 = vadd.f32 %v1004, %v1008
        %v1012 = vadd.f32 %v1005, %v1009
        %v1013 = vadd.f32 %v1006, %v1010
        %v1014 = vstv %s507
        %v1015 = vmul.f32 %v1014, %v927
        %v1016 = vmul.f32 %v1014, %v929
        %v1017 = vmul.f32 %v1014, %v931
        %v1018 = vadd.f32 %v1011, %v1015
        %v1019 = vadd.f32 %v1012, %v1016
        %v1020 = vadd.f32 %v1013, %v1017
        %v1021 = vstv %s509
        %v1022 = vmul.f32 %v1021, %v911
        %v1023 = vmul.f32 %v1021, %v912
        %v1024 = vmul.f32 %v1021, %v913
        %v1025 = vadd.f32 %v1018, %v1022
        %v1026 = vadd.f32 %v1019, %v1023
        %v1027 = vadd.f32 %v1020, %v1024
        %v1028 = vstv %s511
        %v1029 = vmul.f32 %v1028, %v933
        %v1030 = vmul.f32 %v1028, %v935
        %v1031 = vmul.f32 %v1028, %v937
        %v1032 = vadd.f32 %v1025, %v1029
        %v1033 = vadd.f32 %v1026, %v1030
        %v1034 = vadd.f32 %v1027, %v1031
        %v1035 = vstv %s513
        %v1036 = vmul.f32 %v1035, %v939
        %v1037 = vmul.f32 %v1035, %v941
        %v1038 = vmul.f32 %v1035, %v943
        %v1039 = vadd.f32 %v1032, %v1036
        %v1040 = vadd.f32 %v1033, %v1037
        %v1041 = vadd.f32 %v1034, %v1038
        %v1042 = vstv %s515
        %v1043 = vmul.f32 %v1042, %v945
        %v1044 = vmul.f32 %v1042, %v947
        %v1045 = vmul.f32 %v1042, %v949
        %v1046 = vadd.f32 %v1039, %v1043
        %v1047 = vadd.f32 %v1040, %v1044
        %v1048 = vadd.f32 %v1041, %v1045
        %v1049 = vrot.slane %v1046, 6
        %v1050 = vrot.slane %v1047, 6
        %v1051 = vrot.slane %v1048, 6
        %v1052 = vsel %vm744, %v1050, %v1051
        %v1053 = vsel %vm744, %v1049, %v1050
        %v1054 = vsel %vm744, %v1051, %v1049
        %v1055 = vadd.f32 %v1002, %v1054
        %v1056 = vadd.f32 %v1001, %v1053
        %v1057 = vadd.f32 %v1000, %v1052
        %v1058 = vstv %s517
        %v1059 = vmul.f32 %v1058, %v915
        %v1060 = vmul.f32 %v1058, %v917
        %v1061 = vmul.f32 %v1058, %v919
        %v1062 = vstv %s519
        %v1063 = vmul.f32 %v1062, %v921
        %v1064 = vmul.f32 %v1062, %v923
        %v1065 = vmul.f32 %v1062, %v925
        %v1066 = vadd.f32 %v1059, %v1063
        %v1067 = vadd.f32 %v1060, %v1064
        %v1068 = vadd.f32 %v1061, %v1065
        %v1069 = vstv %s521
        %v1070 = vmul.f32 %v1069, %v927
        %v1071 = vmul.f32 %v1069, %v929
        %v1072 = vmul.f32 %v1069, %v931
        %v1073 = vadd.f32 %v1066, %v1070
        %v1074 = vadd.f32 %v1067, %v1071
        %v1075 = vadd.f32 %v1068, %v1072
        %v1076 = vstv %s523
        %v1077 = vmul.f32 %v1076, %v911
        %v1078 = vmul.f32 %v1076, %v912
        %v1079 = vmul.f32 %v1076, %v913
        %v1080 = vadd.f32 %v1073, %v1077
        %v1081 = vadd.f32 %v1074, %v1078
        %v1082 = vadd.f32 %v1075, %v1079
        %v1083 = vstv %s525
        %v1084 = vmul.f32 %v1083, %v933
        %v1085 = vmul.f32 %v1083, %v935
        %v1086 = vmul.f32 %v1083, %v937
        %v1087 = vadd.f32 %v1080, %v1084
        %v1088 = vadd.f32 %v1081, %v1085
        %v1089 = vadd.f32 %v1082, %v1086
        %v1090 = vstv %s527
        %v1091 = vmul.f32 %v1090, %v939
        %v1092 = vmul.f32 %v1090, %v941
        %v1093 = vmul.f32 %v1090, %v943
        %v1094 = vadd.f32 %v1087, %v1091
        %v1095 = vadd.f32 %v1088, %v1092
        %v1096 = vadd.f32 %v1089, %v1093
        %v1097 = vstv %s529
        %v1098 = vmul.f32 %v1097, %v945
        %v1099 = vmul.f32 %v1097, %v947
        %v1100 = vmul.f32 %v1097, %v949
        %v1101 = vadd.f32 %v1094, %v1098
        %v1102 = vadd.f32 %v1095, %v1099
        %v1103 = vadd.f32 %v1096, %v1100
        %v1104 = vrot.slane %v1101, 7
        %v1105 = vrot.slane %v1102, 7
        %v1106 = vrot.slane %v1103, 7
        %v1107 = vsel %vm625, %v1105, %v1106
        %v1108 = vsel %vm625, %v1104, %v1105
        %v1109 = vsel %vm625, %v1106, %v1104
        %v1110 = vadd.f32 %v1055, %v1109
        %v1111 = vadd.f32 %v1056, %v1108
        %v1112 = vadd.f32 %v1057, %v1107
        %v1113 = vstv %s531
        %v1114 = vmul.f32 %v1113, %v915
        %v1115 = vmul.f32 %v1113, %v917
        %v1116 = vmul.f32 %v1113, %v919
        %v1117 = vstv %s533
        %v1118 = vmul.f32 %v1117, %v921
        %v1119 = vmul.f32 %v1117, %v923
        %v1120 = vmul.f32 %v1117, %v925
        %v1121 = vadd.f32 %v1114, %v1118
        %v1122 = vadd.f32 %v1115, %v1119
        %v1123 = vadd.f32 %v1116, %v1120
        %v1124 = vstv %s535
        %v1125 = vmul.f32 %v1124, %v927
        %v1126 = vmul.f32 %v1124, %v929
        %v1127 = vmul.f32 %v1124, %v931
        %v1128 = vadd.f32 %v1121, %v1125
        %v1129 = vadd.f32 %v1122, %v1126
        %v1130 = vadd.f32 %v1123, %v1127
        %v1131 = vstv %s537
        %v1132 = vmul.f32 %v1131, %v911
        %v1133 = vmul.f32 %v1131, %v912
        %v1134 = vmul.f32 %v1131, %v913
        %v1135 = vadd.f32 %v1128, %v1132
        %v1136 = vadd.f32 %v1129, %v1133
        %v1137 = vadd.f32 %v1130, %v1134
        %v1138 = vstv %s539
        %v1139 = vmul.f32 %v1138, %v933
        %v1140 = vmul.f32 %v1138, %v935
        %v1141 = vmul.f32 %v1138, %v937
        %v1142 = vadd.f32 %v1135, %v1139
        %v1143 = vadd.f32 %v1136, %v1140
        %v1144 = vadd.f32 %v1137, %v1141
        %v1145 = vstv %s541
        %v1146 = vmul.f32 %v1145, %v939
        %v1147 = vmul.f32 %v1145, %v941
        %v1148 = vmul.f32 %v1145, %v943
        %v1149 = vadd.f32 %v1142, %v1146
        %v1150 = vadd.f32 %v1143, %v1147
        %v1151 = vadd.f32 %v1144, %v1148
        %v1152 = vstv %s543
        %v1153 = vmul.f32 %v1152, %v945
        %v1154 = vmul.f32 %v1152, %v947
        %v1155 = vmul.f32 %v1152, %v949
        %v1156 = vadd.f32 %v1149, %v1153
        %v1157 = vadd.f32 %v1150, %v1154
        %v1158 = vadd.f32 %v1151, %v1155
        %v1159 = vadd.f32 %v1110, %v1156
        %v1160 = vadd.f32 %v1111, %v1157
        %v1161 = vadd.f32 %v1112, %v1158
        %v1162 = vstv %s545
        %v1163 = vmul.f32 %v1162, %v915
        %v1164 = vmul.f32 %v1162, %v917
        %v1165 = vmul.f32 %v1162, %v919
        %v1166 = vstv %s547
        %v1167 = vmul.f32 %v1166, %v921
        %v1168 = vmul.f32 %v1166, %v923
        %v1169 = vmul.f32 %v1166, %v925
        %v1170 = vadd.f32 %v1163, %v1167
        %v1171 = vadd.f32 %v1164, %v1168
        %v1172 = vadd.f32 %v1165, %v1169
        %v1173 = vstv %s549
        %v1174 = vmul.f32 %v1173, %v927
        %v1175 = vmul.f32 %v1173, %v929
        %v1176 = vmul.f32 %v1173, %v931
        %v1177 = vadd.f32 %v1170, %v1174
        %v1178 = vadd.f32 %v1171, %v1175
        %v1179 = vadd.f32 %v1172, %v1176
        %v1180 = vstv %s551
        %v1181 = vmul.f32 %v1180, %v911
        %v1182 = vmul.f32 %v1180, %v912
        %v1183 = vmul.f32 %v1180, %v913
        %v1184 = vadd.f32 %v1177, %v1181
        %v1185 = vadd.f32 %v1178, %v1182
        %v1186 = vadd.f32 %v1179, %v1183
        %v1187 = vstv %s553
        %v1188 = vmul.f32 %v1187, %v933
        %v1189 = vmul.f32 %v1187, %v935
        %v1190 = vmul.f32 %v1187, %v937
        %v1191 = vadd.f32 %v1184, %v1188
        %v1192 = vadd.f32 %v1185, %v1189
        %v1193 = vadd.f32 %v1186, %v1190
        %v1194 = vstv %s555
        %v1195 = vmul.f32 %v1194, %v939
        %v1196 = vmul.f32 %v1194, %v941
        %v1197 = vmul.f32 %v1194, %v943
        %v1198 = vadd.f32 %v1191, %v1195
        %v1199 = vadd.f32 %v1192, %v1196
        %v1200 = vadd.f32 %v1193, %v1197
        %v1201 = vstv %s557
        %v1202 = vmul.f32 %v1201, %v945
        %v1203 = vmul.f32 %v1201, %v947
        %v1204 = vmul.f32 %v1201, %v949
        %v1205 = vadd.f32 %v1198, %v1202
        %v1206 = vadd.f32 %v1199, %v1203
        %v1207 = vadd.f32 %v1200, %v1204
        %v1208 = vrot.slane %v1205, 1
        %v1209 = vrot.slane %v1206, 1
        %v1210 = vrot.slane %v1207, 1
        %v1211 = vsel %vm671, %v1209, %v1210
        %v1212 = vsel %vm671, %v1208, %v1209
        %v1213 = vsel %vm671, %v1210, %v1208
        %v1214 = vadd.f32 %v1159, %v1212
        %v1215 = vadd.f32 %v1160, %v1211
        %v1216 = vadd.f32 %v1161, %v1213
        %v1217 = vstv %s559
        %v1218 = vmul.f32 %v1217, %v915
        %v1219 = vmul.f32 %v1217, %v917
        %v1220 = vmul.f32 %v1217, %v919
        %v1221 = vstv %s561
        %v1222 = vmul.f32 %v1221, %v921
        %v1223 = vmul.f32 %v1221, %v923
        %v1224 = vmul.f32 %v1221, %v925
        %v1225 = vadd.f32 %v1218, %v1222
        %v1226 = vadd.f32 %v1219, %v1223
        %v1227 = vadd.f32 %v1220, %v1224
        %v1228 = vstv %s563
        %v1229 = vmul.f32 %v1228, %v927
        %v1230 = vmul.f32 %v1228, %v929
        %v1231 = vmul.f32 %v1228, %v931
        %v1232 = vadd.f32 %v1225, %v1229
        %v1233 = vadd.f32 %v1226, %v1230
        %v1234 = vadd.f32 %v1227, %v1231
        %v1235 = vstv %s565
        %v1236 = vmul.f32 %v1235, %v911
        %v1237 = vmul.f32 %v1235, %v912
        %v1238 = vmul.f32 %v1235, %v913
        %v1239 = vadd.f32 %v1232, %v1236
        %v1240 = vadd.f32 %v1233, %v1237
        %v1241 = vadd.f32 %v1234, %v1238
        %v1242 = vstv %s567
        %v1243 = vmul.f32 %v1242, %v933
        %v1244 = vmul.f32 %v1242, %v935
        %v1245 = vmul.f32 %v1242, %v937
        %v1246 = vadd.f32 %v1239, %v1243
        %v1247 = vadd.f32 %v1240, %v1244
        %v1248 = vadd.f32 %v1241, %v1245
        %v1249 = vstv %s569
        %v1250 = vmul.f32 %v1249, %v939
        %v1251 = vmul.f32 %v1249, %v941
        %v1252 = vmul.f32 %v1249, %v943
        %v1253 = vadd.f32 %v1246, %v1250
        %v1254 = vadd.f32 %v1247, %v1251
        %v1255 = vadd.f32 %v1248, %v1252
        %v1256 = vstv %s571
        %v1257 = vmul.f32 %v1256, %v945
        %v1258 = vmul.f32 %v1256, %v947
        %v1259 = vmul.f32 %v1256, %v949
        %v1260 = vadd.f32 %v1253, %v1257
        %v1261 = vadd.f32 %v1254, %v1258
        %v1262 = vadd.f32 %v1255, %v1259
        %v1263 = vrot.slane %v1260, 2
        %v1264 = vrot.slane %v1261, 2
        %v1265 = vrot.slane %v1262, 2
        %v1266 = vsel %vm900, %v1264, %v1265
        %v1267 = vsel %vm900, %v1263, %v1264
        %v1268 = vsel %vm900, %v1265, %v1263
        %v1269 = vadd.f32 %v1214, %v1267
        %v1270 = vadd.f32 %v1215, %v1266
        %v1271 = vadd.f32 %v1216, %v1268
        %v1272 = vstv %s573
        %v1273 = vmul.f32 %v1272, %v915
        %v1274 = vmul.f32 %v1272, %v917
        %v1275 = vmul.f32 %v1272, %v919
        %v1276 = vstv %s575
        %v1277 = vmul.f32 %v1276, %v921
        %v1278 = vmul.f32 %v1276, %v923
        %v1279 = vmul.f32 %v1276, %v925
        %v1280 = vadd.f32 %v1273, %v1277
        %v1281 = vadd.f32 %v1274, %v1278
        %v1282 = vadd.f32 %v1275, %v1279
        %v1283 = vstv %s577
        %v1284 = vmul.f32 %v1283, %v927
        %v1285 = vmul.f32 %v1283, %v929
        %v1286 = vmul.f32 %v1283, %v931
        %v1287 = vadd.f32 %v1280, %v1284
        %v1288 = vadd.f32 %v1281, %v1285
        %v1289 = vadd.f32 %v1282, %v1286
        %v1290 = vstv %s579
        %v1291 = vmul.f32 %v1290, %v911
        %v1292 = vmul.f32 %v1290, %v912
        %v1293 = vmul.f32 %v1290, %v913
        %v1294 = vadd.f32 %v1287, %v1291
        %v1295 = vadd.f32 %v1288, %v1292
        %v1296 = vadd.f32 %v1289, %v1293
        %v1297 = vstv %s581
        %v1298 = vmul.f32 %v1297, %v933
        %v1299 = vmul.f32 %v1297, %v935
        %v1300 = vmul.f32 %v1297, %v937
        %v1301 = vadd.f32 %v1294, %v1298
        %v1302 = vadd.f32 %v1295, %v1299
        %v1303 = vadd.f32 %v1296, %v1300
        %v1304 = vstv %s583
        %v1305 = vmul.f32 %v1304, %v939
        %v1306 = vmul.f32 %v1304, %v941
        %v1307 = vmul.f32 %v1304, %v943
        %v1308 = vadd.f32 %v1301, %v1305
        %v1309 = vadd.f32 %v1302, %v1306
        %v1310 = vadd.f32 %v1303, %v1307
        %v1311 = vstv %s585
        %v1312 = vmul.f32 %v1311, %v945
        %v1313 = vmul.f32 %v1311, %v947
        %v1314 = vmul.f32 %v1311, %v949
        %v1315 = vadd.f32 %v1308, %v1312
        %v1316 = vadd.f32 %v1309, %v1313
        %v1317 = vadd.f32 %v1310, %v1314
        %v1318 = vrot.slane %v1315, 3
        %v1319 = vrot.slane %v1316, 3
        %v1320 = vrot.slane %v1317, 3
        %vm1321 = vcmp.lt.s32.totalorder %v393, 5
        %v1322 = vsel %vm1321, %v1319, %v1320
        %v1323 = vsel %vm1321, %v1318, %v1319
        %v1324 = vsel %vm1321, %v1320, %v1318
        %v1325 = vadd.f32 %v1269, %v1323
        %v1326 = vadd.f32 %v1270, %v1322
        %v1327 = vadd.f32 %v1271, %v1324
        %v1328 = vstv %s588
        %v1329 = vadd.f32 %v1325, %v1328
        %v1330 = vadd.f32 %v1326, %v1328
        %v1331 = vadd.f32 %v1327, %v1328
        %v1332 = vmul.f32 %v1329, %v417
        %v1333 = vmul.f32 %v1330, %v418
        %v1334 = vmul.f32 %v1331, %v419
        %1335 = vrot.lane.b32.xlu0 %v1332, 3
        %v1336 = vpop.permute.xlu0 %1335
        %1337 = vrot.lane.b32.xlu0 %v1333, 3
        %v1338 = vpop.permute.xlu0 %1337
        %1339 = vrot.lane.b32.xlu0 %v1334, 3
        %v1340 = vpop.permute.xlu0 %1339
        %1341 = vrot.lane.b32.xlu0 %v1332, 2
        %v1342 = vpop.permute.xlu0 %1341
        %1343 = vrot.lane.b32.xlu0 %v1333, 2
        %v1344 = vpop.permute.xlu0 %1343
        %1345 = vrot.lane.b32.xlu0 %v1334, 2
        %v1346 = vpop.permute.xlu0 %1345
        %1347 = vrot.lane.b32.xlu0 %v1332, 1
        %v1348 = vpop.permute.xlu0 %1347
        %1349 = vrot.lane.b32.xlu0 %v1333, 1
        %v1350 = vpop.permute.xlu0 %1349
        %1351 = vrot.lane.b32.xlu0 %v1334, 1
        %v1352 = vpop.permute.xlu0 %1351
        %1353 = vrot.lane.b32.xlu0 %v1332, 127
        %v1354 = vpop.permute.xlu0 %1353
        %1355 = vrot.lane.b32.xlu0 %v1333, 127
        %v1356 = vpop.permute.xlu0 %1355
        %1357 = vrot.lane.b32.xlu0 %v1334, 127
        %v1358 = vpop.permute.xlu0 %1357
        %1359 = vrot.lane.b32.xlu0 %v1332, 126
        %v1360 = vpop.permute.xlu0 %1359
        %1361 = vrot.lane.b32.xlu0 %v1333, 126
        %v1362 = vpop.permute.xlu0 %1361
        %1363 = vrot.lane.b32.xlu0 %v1334, 126
        %v1364 = vpop.permute.xlu0 %1363
        %1365 = vrot.lane.b32.xlu0 %v1332, 125
        %v1366 = vpop.permute.xlu0 %1365
        %1367 = vrot.lane.b32.xlu0 %v1333, 125
        %v1368 = vpop.permute.xlu0 %1367
        %1369 = vrot.lane.b32.xlu0 %v1334, 125
        %v1370 = vpop.permute.xlu0 %1369
        %v1371 = vmul.f32 %v950, %v1336
        %v1372 = vmul.f32 %v950, %v1338
        %v1373 = vmul.f32 %v950, %v1340
        %v1374 = vmul.f32 %v954, %v1342
        %v1375 = vmul.f32 %v954, %v1344
        %v1376 = vmul.f32 %v954, %v1346
        %v1377 = vadd.f32 %v1371, %v1374
        %v1378 = vadd.f32 %v1372, %v1375
        %v1379 = vadd.f32 %v1373, %v1376
        %v1380 = vmul.f32 %v961, %v1348
        %v1381 = vmul.f32 %v961, %v1350
        %v1382 = vmul.f32 %v961, %v1352
        %v1383 = vadd.f32 %v1377, %v1380
        %v1384 = vadd.f32 %v1378, %v1381
        %v1385 = vadd.f32 %v1379, %v1382
        %v1386 = vmul.f32 %v968, %v1332
        %v1387 = vmul.f32 %v968, %v1333
        %v1388 = vmul.f32 %v968, %v1334
        %v1389 = vadd.f32 %v1383, %v1386
        %v1390 = vadd.f32 %v1384, %v1387
        %v1391 = vadd.f32 %v1385, %v1388
        %v1392 = vmul.f32 %v975, %v1354
        %v1393 = vmul.f32 %v975, %v1356
        %v1394 = vmul.f32 %v975, %v1358
        %v1395 = vadd.f32 %v1389, %v1392
        %v1396 = vadd.f32 %v1390, %v1393
        %v1397 = vadd.f32 %v1391, %v1394
        %v1398 = vmul.f32 %v982, %v1360
        %v1399 = vmul.f32 %v982, %v1362
        %v1400 = vmul.f32 %v982, %v1364
        %v1401 = vadd.f32 %v1395, %v1398
        %v1402 = vadd.f32 %v1396, %v1399
        %v1403 = vadd.f32 %v1397, %v1400
        %v1404 = vmul.f32 %v989, %v1366
        %v1405 = vmul.f32 %v989, %v1368
        %v1406 = vmul.f32 %v989, %v1370
        %v1407 = vadd.f32 %v1401, %v1404
        %v1408 = vadd.f32 %v1402, %v1405
        %v1409 = vadd.f32 %v1403, %v1406
        %v1410 = vrot.slane %v1407, 5
        %v1411 = vrot.slane %v1408, 5
        %v1412 = vrot.slane %v1409, 5
        %v1413 = vsel %vm999, %v1411, %v1412
        %v1414 = vsel %vm999, %v1410, %v1411
        %v1415 = vsel %vm999, %v1412, %v1410
        %v1416 = vmul.f32 %v1003, %v1336
        %v1417 = vmul.f32 %v1003, %v1338
        %v1418 = vmul.f32 %v1003, %v1340
        %v1419 = vmul.f32 %v1007, %v1342
        %v1420 = vmul.f32 %v1007, %v1344
        %v1421 = vmul.f32 %v1007, %v1346
        %v1422 = vadd.f32 %v1416, %v1419
        %v1423 = vadd.f32 %v1417, %v1420
        %v1424 = vadd.f32 %v1418, %v1421
        %v1425 = vmul.f32 %v1014, %v1348
        %v1426 = vmul.f32 %v1014, %v1350
        %v1427 = vmul.f32 %v1014, %v1352
        %v1428 = vadd.f32 %v1422, %v1425
        %v1429 = vadd.f32 %v1423, %v1426
        %v1430 = vadd.f32 %v1424, %v1427
        %v1431 = vmul.f32 %v1021, %v1332
        %v1432 = vmul.f32 %v1021, %v1333
        %v1433 = vmul.f32 %v1021, %v1334
        %v1434 = vadd.f32 %v1428, %v1431
        %v1435 = vadd.f32 %v1429, %v1432
        %v1436 = vadd.f32 %v1430, %v1433
        %v1437 = vmul.f32 %v1028, %v1354
        %v1438 = vmul.f32 %v1028, %v1356
        %v1439 = vmul.f32 %v1028, %v1358
        %v1440 = vadd.f32 %v1434, %v1437
        %v1441 = vadd.f32 %v1435, %v1438
        %v1442 = vadd.f32 %v1436, %v1439
        %v1443 = vmul.f32 %v1035, %v1360
        %v1444 = vmul.f32 %v1035, %v1362
        %v1445 = vmul.f32 %v1035, %v1364
        %v1446 = vadd.f32 %v1440, %v1443
        %v1447 = vadd.f32 %v1441, %v1444
        %v1448 = vadd.f32 %v1442, %v1445
        %v1449 = vmul.f32 %v1042, %v1366
        %v1450 = vmul.f32 %v1042, %v1368
        %v1451 = vmul.f32 %v1042, %v1370
        %v1452 = vadd.f32 %v1446, %v1449
        %v1453 = vadd.f32 %v1447, %v1450
        %v1454 = vadd.f32 %v1448, %v1451
        %v1455 = vrot.slane %v1452, 6
        %v1456 = vrot.slane %v1453, 6
        %v1457 = vrot.slane %v1454, 6
        %v1458 = vsel %vm744, %v1456, %v1457
        %v1459 = vsel %vm744, %v1455, %v1456
        %v1460 = vsel %vm744, %v1457, %v1455
        %v1461 = vadd.f32 %v1415, %v1460
        %v1462 = vadd.f32 %v1414, %v1459
        %v1463 = vadd.f32 %v1413, %v1458
        %v1464 = vmul.f32 %v1058, %v1336
        %v1465 = vmul.f32 %v1058, %v1338
        %v1466 = vmul.f32 %v1058, %v1340
        %v1467 = vmul.f32 %v1062, %v1342
        %v1468 = vmul.f32 %v1062, %v1344
        %v1469 = vmul.f32 %v1062, %v1346
        %v1470 = vadd.f32 %v1464, %v1467
        %v1471 = vadd.f32 %v1465, %v1468
        %v1472 = vadd.f32 %v1466, %v1469
        %v1473 = vmul.f32 %v1069, %v1348
        %v1474 = vmul.f32 %v1069, %v1350
        %v1475 = vmul.f32 %v1069, %v1352
        %v1476 = vadd.f32 %v1470, %v1473
        %v1477 = vadd.f32 %v1471, %v1474
        %v1478 = vadd.f32 %v1472, %v1475
        %v1479 = vmul.f32 %v1076, %v1332
        %v1480 = vmul.f32 %v1076, %v1333
        %v1481 = vmul.f32 %v1076, %v1334
        %v1482 = vadd.f32 %v1476, %v1479
        %v1483 = vadd.f32 %v1477, %v1480
        %v1484 = vadd.f32 %v1478, %v1481
        %v1485 = vmul.f32 %v1083, %v1354
        %v1486 = vmul.f32 %v1083, %v1356
        %v1487 = vmul.f32 %v1083, %v1358
        %v1488 = vadd.f32 %v1482, %v1485
        %v1489 = vadd.f32 %v1483, %v1486
        %v1490 = vadd.f32 %v1484, %v1487
        %v1491 = vmul.f32 %v1090, %v1360
        %v1492 = vmul.f32 %v1090, %v1362
        %v1493 = vmul.f32 %v1090, %v1364
        %v1494 = vadd.f32 %v1488, %v1491
        %v1495 = vadd.f32 %v1489, %v1492
        %v1496 = vadd.f32 %v1490, %v1493
        %v1497 = vmul.f32 %v1097, %v1366
        %v1498 = vmul.f32 %v1097, %v1368
        %v1499 = vmul.f32 %v1097, %v1370
        %v1500 = vadd.f32 %v1494, %v1497
        %v1501 = vadd.f32 %v1495, %v1498
        %v1502 = vadd.f32 %v1496, %v1499
        %v1503 = vrot.slane %v1500, 7
        %v1504 = vrot.slane %v1501, 7
        %v1505 = vrot.slane %v1502, 7
        %v1506 = vsel %vm625, %v1504, %v1505
        %v1507 = vsel %vm625, %v1503, %v1504
        %v1508 = vsel %vm625, %v1505, %v1503
        %v1509 = vadd.f32 %v1461, %v1508
        %v1510 = vadd.f32 %v1462, %v1507
        %v1511 = vadd.f32 %v1463, %v1506
        %v1512 = vmul.f32 %v1113, %v1336
        %v1513 = vmul.f32 %v1113, %v1338
        %v1514 = vmul.f32 %v1113, %v1340
        %v1515 = vmul.f32 %v1117, %v1342
        %v1516 = vmul.f32 %v1117, %v1344
        %v1517 = vmul.f32 %v1117, %v1346
        %v1518 = vadd.f32 %v1512, %v1515
        %v1519 = vadd.f32 %v1513, %v1516
        %v1520 = vadd.f32 %v1514, %v1517
        %v1521 = vmul.f32 %v1124, %v1348
        %v1522 = vmul.f32 %v1124, %v1350
        %v1523 = vmul.f32 %v1124, %v1352
        %v1524 = vadd.f32 %v1518, %v1521
        %v1525 = vadd.f32 %v1519, %v1522
        %v1526 = vadd.f32 %v1520, %v1523
        %v1527 = vmul.f32 %v1131, %v1332
        %v1528 = vmul.f32 %v1131, %v1333
        %v1529 = vmul.f32 %v1131, %v1334
        %v1530 = vadd.f32 %v1524, %v1527
        %v1531 = vadd.f32 %v1525, %v1528
        %v1532 = vadd.f32 %v1526, %v1529
        %v1533 = vmul.f32 %v1138, %v1354
        %v1534 = vmul.f32 %v1138, %v1356
        %v1535 = vmul.f32 %v1138, %v1358
        %v1536 = vadd.f32 %v1530, %v1533
        %v1537 = vadd.f32 %v1531, %v1534
        %v1538 = vadd.f32 %v1532, %v1535
        %v1539 = vmul.f32 %v1145, %v1360
        %v1540 = vmul.f32 %v1145, %v1362
        %v1541 = vmul.f32 %v1145, %v1364
        %v1542 = vadd.f32 %v1536, %v1539
        %v1543 = vadd.f32 %v1537, %v1540
        %v1544 = vadd.f32 %v1538, %v1541
        %v1545 = vmul.f32 %v1152, %v1366
        %v1546 = vmul.f32 %v1152, %v1368
        %v1547 = vmul.f32 %v1152, %v1370
        %v1548 = vadd.f32 %v1542, %v1545
        %v1549 = vadd.f32 %v1543, %v1546
        %v1550 = vadd.f32 %v1544, %v1547
        %v1551 = vadd.f32 %v1509, %v1548
        %v1552 = vadd.f32 %v1510, %v1549
        %v1553 = vadd.f32 %v1511, %v1550
        %v1554 = vmul.f32 %v1162, %v1336
        %v1555 = vmul.f32 %v1162, %v1338
        %v1556 = vmul.f32 %v1162, %v1340
        %v1557 = vmul.f32 %v1166, %v1342
        %v1558 = vmul.f32 %v1166, %v1344
        %v1559 = vmul.f32 %v1166, %v1346
        %v1560 = vadd.f32 %v1554, %v1557
        %v1561 = vadd.f32 %v1555, %v1558
        %v1562 = vadd.f32 %v1556, %v1559
        %v1563 = vmul.f32 %v1173, %v1348
        %v1564 = vmul.f32 %v1173, %v1350
        %v1565 = vmul.f32 %v1173, %v1352
        %v1566 = vadd.f32 %v1560, %v1563
        %v1567 = vadd.f32 %v1561, %v1564
        %v1568 = vadd.f32 %v1562, %v1565
        %v1569 = vmul.f32 %v1180, %v1332
        %v1570 = vmul.f32 %v1180, %v1333
        %v1571 = vmul.f32 %v1180, %v1334
        %v1572 = vadd.f32 %v1566, %v1569
        %v1573 = vadd.f32 %v1567, %v1570
        %v1574 = vadd.f32 %v1568, %v1571
        %v1575 = vmul.f32 %v1187, %v1354
        %v1576 = vmul.f32 %v1187, %v1356
        %v1577 = vmul.f32 %v1187, %v1358
        %v1578 = vadd.f32 %v1572, %v1575
        %v1579 = vadd.f32 %v1573, %v1576
        %v1580 = vadd.f32 %v1574, %v1577
        %v1581 = vmul.f32 %v1194, %v1360
        %v1582 = vmul.f32 %v1194, %v1362
        %v1583 = vmul.f32 %v1194, %v1364
        %v1584 = vadd.f32 %v1578, %v1581
        %v1585 = vadd.f32 %v1579, %v1582
        %v1586 = vadd.f32 %v1580, %v1583
        %v1587 = vmul.f32 %v1201, %v1366
        %v1588 = vmul.f32 %v1201, %v1368
        %v1589 = vmul.f32 %v1201, %v1370
        %v1590 = vadd.f32 %v1584, %v1587
        %v1591 = vadd.f32 %v1585, %v1588
        %v1592 = vadd.f32 %v1586, %v1589
        %v1593 = vrot.slane %v1590, 1
        %v1594 = vrot.slane %v1591, 1
        %v1595 = vrot.slane %v1592, 1
        %v1596 = vsel %vm671, %v1594, %v1595
        %v1597 = vsel %vm671, %v1593, %v1594
        %v1598 = vsel %vm671, %v1595, %v1593
        %v1599 = vadd.f32 %v1551, %v1597
        %v1600 = vadd.f32 %v1552, %v1596
        %v1601 = vadd.f32 %v1553, %v1598
        %v1602 = vmul.f32 %v1217, %v1336
        %v1603 = vmul.f32 %v1217, %v1338
        %v1604 = vmul.f32 %v1217, %v1340
        %v1605 = vmul.f32 %v1221, %v1342
        %v1606 = vmul.f32 %v1221, %v1344
        %v1607 = vmul.f32 %v1221, %v1346
        %v1608 = vadd.f32 %v1602, %v1605
        %v1609 = vadd.f32 %v1603, %v1606
        %v1610 = vadd.f32 %v1604, %v1607
        %v1611 = vmul.f32 %v1228, %v1348
        %v1612 = vmul.f32 %v1228, %v1350
        %v1613 = vmul.f32 %v1228, %v1352
        %v1614 = vadd.f32 %v1608, %v1611
        %v1615 = vadd.f32 %v1609, %v1612
        %v1616 = vadd.f32 %v1610, %v1613
        %v1617 = vmul.f32 %v1235, %v1332
        %v1618 = vmul.f32 %v1235, %v1333
        %v1619 = vmul.f32 %v1235, %v1334
        %v1620 = vadd.f32 %v1614, %v1617
        %v1621 = vadd.f32 %v1615, %v1618
        %v1622 = vadd.f32 %v1616, %v1619
        %v1623 = vmul.f32 %v1242, %v1354
        %v1624 = vmul.f32 %v1242, %v1356
        %v1625 = vmul.f32 %v1242, %v1358
        %v1626 = vadd.f32 %v1620, %v1623
        %v1627 = vadd.f32 %v1621, %v1624
        %v1628 = vadd.f32 %v1622, %v1625
        %v1629 = vmul.f32 %v1249, %v1360
        %v1630 = vmul.f32 %v1249, %v1362
        %v1631 = vmul.f32 %v1249, %v1364
        %v1632 = vadd.f32 %v1626, %v1629
        %v1633 = vadd.f32 %v1627, %v1630
        %v1634 = vadd.f32 %v1628, %v1631
        %v1635 = vmul.f32 %v1256, %v1366
        %v1636 = vmul.f32 %v1256, %v1368
        %v1637 = vmul.f32 %v1256, %v1370
        %v1638 = vadd.f32 %v1632, %v1635
        %v1639 = vadd.f32 %v1633, %v1636
        %v1640 = vadd.f32 %v1634, %v1637
        %v1641 = vrot.slane %v1638, 2
        %v1642 = vrot.slane %v1639, 2
        %v1643 = vrot.slane %v1640, 2
        %v1644 = vsel %vm900, %v1642, %v1643
        %v1645 = vsel %vm900, %v1641, %v1642
        %v1646 = vsel %vm900, %v1643, %v1641
        %v1647 = vadd.f32 %v1599, %v1645
        %v1648 = vadd.f32 %v1600, %v1644
        %v1649 = vadd.f32 %v1601, %v1646
        %v1650 = vmul.f32 %v1272, %v1336
        %v1651 = vmul.f32 %v1272, %v1338
        %v1652 = vmul.f32 %v1272, %v1340
        %v1653 = vmul.f32 %v1276, %v1342
        %v1654 = vmul.f32 %v1276, %v1344
        %v1655 = vmul.f32 %v1276, %v1346
        %v1656 = vadd.f32 %v1650, %v1653
        %v1657 = vadd.f32 %v1651, %v1654
        %v1658 = vadd.f32 %v1652, %v1655
        %v1659 = vmul.f32 %v1283, %v1348
        %v1660 = vmul.f32 %v1283, %v1350
        %v1661 = vmul.f32 %v1283, %v1352
        %v1662 = vadd.f32 %v1656, %v1659
        %v1663 = vadd.f32 %v1657, %v1660
        %v1664 = vadd.f32 %v1658, %v1661
        %v1665 = vmul.f32 %v1290, %v1332
        %v1666 = vmul.f32 %v1290, %v1333
        %v1667 = vmul.f32 %v1290, %v1334
        %v1668 = vadd.f32 %v1662, %v1665
        %v1669 = vadd.f32 %v1663, %v1666
        %v1670 = vadd.f32 %v1664, %v1667
        %v1671 = vmul.f32 %v1297, %v1354
        %v1672 = vmul.f32 %v1297, %v1356
        %v1673 = vmul.f32 %v1297, %v1358
        %v1674 = vadd.f32 %v1668, %v1671
        %v1675 = vadd.f32 %v1669, %v1672
        %v1676 = vadd.f32 %v1670, %v1673
        %v1677 = vmul.f32 %v1304, %v1360
        %v1678 = vmul.f32 %v1304, %v1362
        %v1679 = vmul.f32 %v1304, %v1364
        %v1680 = vadd.f32 %v1674, %v1677
        %v1681 = vadd.f32 %v1675, %v1678
        %v1682 = vadd.f32 %v1676, %v1679
        %v1683 = vmul.f32 %v1311, %v1366
        %v1684 = vmul.f32 %v1311, %v1368
        %v1685 = vmul.f32 %v1311, %v1370
        %v1686 = vadd.f32 %v1680, %v1683
        %v1687 = vadd.f32 %v1681, %v1684
        %v1688 = vadd.f32 %v1682, %v1685
        %v1689 = vrot.slane %v1686, 3
        %v1690 = vrot.slane %v1687, 3
        %v1691 = vrot.slane %v1688, 3
        %v1692 = vsel %vm1321, %v1690, %v1691
        %v1693 = vsel %vm1321, %v1689, %v1690
        %v1694 = vsel %vm1321, %v1691, %v1689
        %v1695 = vadd.f32 %v1647, %v1693
        %v1696 = vadd.f32 %v1648, %v1692
        %v1697 = vadd.f32 %v1649, %v1694
        %v1698 = vadd.f32 %v1695, %v1328
        %v1699 = vadd.f32 %v1696, %v1328
        %v1700 = vadd.f32 %v1697, %v1328
        %v1701 = vmul.f32 %v1698, %v417
        %v1702 = vmul.f32 %v1699, %v418
        %v1703 = vmul.f32 %v1700, %v419
        %1704 = vrot.lane.b32.xlu0 %v1701, 3
        %v1705 = vpop.permute.xlu0 %1704
        %1706 = vrot.lane.b32.xlu0 %v1702, 3
        %v1707 = vpop.permute.xlu0 %1706
        %1708 = vrot.lane.b32.xlu0 %v1703, 3
        %v1709 = vpop.permute.xlu0 %1708
        %1710 = vrot.lane.b32.xlu0 %v1701, 2
        %v1711 = vpop.permute.xlu0 %1710
        %1712 = vrot.lane.b32.xlu0 %v1702, 2
        %v1713 = vpop.permute.xlu0 %1712
        %1714 = vrot.lane.b32.xlu0 %v1703, 2
        %v1715 = vpop.permute.xlu0 %1714
        %1716 = vrot.lane.b32.xlu0 %v1701, 1
        %v1717 = vpop.permute.xlu0 %1716
        %1718 = vrot.lane.b32.xlu0 %v1702, 1
        %v1719 = vpop.permute.xlu0 %1718
        %1720 = vrot.lane.b32.xlu0 %v1703, 1
        %v1721 = vpop.permute.xlu0 %1720
        %1722 = vrot.lane.b32.xlu0 %v1701, 127
        %v1723 = vpop.permute.xlu0 %1722
        %1724 = vrot.lane.b32.xlu0 %v1702, 127
        %v1725 = vpop.permute.xlu0 %1724
        %1726 = vrot.lane.b32.xlu0 %v1703, 127
        %v1727 = vpop.permute.xlu0 %1726
        %1728 = vrot.lane.b32.xlu0 %v1701, 126
        %v1729 = vpop.permute.xlu0 %1728
        %1730 = vrot.lane.b32.xlu0 %v1702, 126
        %v1731 = vpop.permute.xlu0 %1730
        %1732 = vrot.lane.b32.xlu0 %v1703, 126
        %v1733 = vpop.permute.xlu0 %1732
        %1734 = vrot.lane.b32.xlu0 %v1701, 125
        %v1735 = vpop.permute.xlu0 %1734
        %1736 = vrot.lane.b32.xlu0 %v1702, 125
        %v1737 = vpop.permute.xlu0 %1736
        %1738 = vrot.lane.b32.xlu0 %v1703, 125
        %v1739 = vpop.permute.xlu0 %1738
        %v1740 = vmul.f32 %v950, %v1705
        %v1741 = vmul.f32 %v950, %v1707
        %v1742 = vmul.f32 %v950, %v1709
        %v1743 = vmul.f32 %v954, %v1711
        %v1744 = vmul.f32 %v954, %v1713
        %v1745 = vmul.f32 %v954, %v1715
        %v1746 = vadd.f32 %v1740, %v1743
        %v1747 = vadd.f32 %v1741, %v1744
        %v1748 = vadd.f32 %v1742, %v1745
        %v1749 = vmul.f32 %v961, %v1717
        %v1750 = vmul.f32 %v961, %v1719
        %v1751 = vmul.f32 %v961, %v1721
        %v1752 = vadd.f32 %v1746, %v1749
        %v1753 = vadd.f32 %v1747, %v1750
        %v1754 = vadd.f32 %v1748, %v1751
        %v1755 = vmul.f32 %v968, %v1701
        %v1756 = vmul.f32 %v968, %v1702
        %v1757 = vmul.f32 %v968, %v1703
        %v1758 = vadd.f32 %v1752, %v1755
        %v1759 = vadd.f32 %v1753, %v1756
        %v1760 = vadd.f32 %v1754, %v1757
        %v1761 = vmul.f32 %v975, %v1723
        %v1762 = vmul.f32 %v975, %v1725
        %v1763 = vmul.f32 %v975, %v1727
        %v1764 = vadd.f32 %v1758, %v1761
        %v1765 = vadd.f32 %v1759, %v1762
        %v1766 = vadd.f32 %v1760, %v1763
        %v1767 = vmul.f32 %v982, %v1729
        %v1768 = vmul.f32 %v982, %v1731
        %v1769 = vmul.f32 %v982, %v1733
        %v1770 = vadd.f32 %v1764, %v1767
        %v1771 = vadd.f32 %v1765, %v1768
        %v1772 = vadd.f32 %v1766, %v1769
        %v1773 = vmul.f32 %v989, %v1735
        %v1774 = vmul.f32 %v989, %v1737
        %v1775 = vmul.f32 %v989, %v1739
        %v1776 = vadd.f32 %v1770, %v1773
        %v1777 = vadd.f32 %v1771, %v1774
        %v1778 = vadd.f32 %v1772, %v1775
        %v1779 = vrot.slane %v1776, 5
        %v1780 = vrot.slane %v1777, 5
        %v1781 = vrot.slane %v1778, 5
        %v1782 = vsel %vm999, %v1780, %v1781
        %v1783 = vsel %vm999, %v1779, %v1780
        %v1784 = vsel %vm999, %v1781, %v1779
        %v1785 = vmul.f32 %v1003, %v1705
        %v1786 = vmul.f32 %v1003, %v1707
        %v1787 = vmul.f32 %v1003, %v1709
        %v1788 = vmul.f32 %v1007, %v1711
        %v1789 = vmul.f32 %v1007, %v1713
        %v1790 = vmul.f32 %v1007, %v1715
        %v1791 = vadd.f32 %v1785, %v1788
        %v1792 = vadd.f32 %v1786, %v1789
        %v1793 = vadd.f32 %v1787, %v1790
        %v1794 = vmul.f32 %v1014, %v1717
        %v1795 = vmul.f32 %v1014, %v1719
        %v1796 = vmul.f32 %v1014, %v1721
        %v1797 = vadd.f32 %v1791, %v1794
        %v1798 = vadd.f32 %v1792, %v1795
        %v1799 = vadd.f32 %v1793, %v1796
        %v1800 = vmul.f32 %v1021, %v1701
        %v1801 = vmul.f32 %v1021, %v1702
        %v1802 = vmul.f32 %v1021, %v1703
        %v1803 = vadd.f32 %v1797, %v1800
        %v1804 = vadd.f32 %v1798, %v1801
        %v1805 = vadd.f32 %v1799, %v1802
        %v1806 = vmul.f32 %v1028, %v1723
        %v1807 = vmul.f32 %v1028, %v1725
        %v1808 = vmul.f32 %v1028, %v1727
        %v1809 = vadd.f32 %v1803, %v1806
        %v1810 = vadd.f32 %v1804, %v1807
        %v1811 = vadd.f32 %v1805, %v1808
        %v1812 = vmul.f32 %v1035, %v1729
        %v1813 = vmul.f32 %v1035, %v1731
        %v1814 = vmul.f32 %v1035, %v1733
        %v1815 = vadd.f32 %v1809, %v1812
        %v1816 = vadd.f32 %v1810, %v1813
        %v1817 = vadd.f32 %v1811, %v1814
        %v1818 = vmul.f32 %v1042, %v1735
        %v1819 = vmul.f32 %v1042, %v1737
        %v1820 = vmul.f32 %v1042, %v1739
        %v1821 = vadd.f32 %v1815, %v1818
        %v1822 = vadd.f32 %v1816, %v1819
        %v1823 = vadd.f32 %v1817, %v1820
        %v1824 = vrot.slane %v1821, 6
        %v1825 = vrot.slane %v1822, 6
        %v1826 = vrot.slane %v1823, 6
        %v1827 = vsel %vm744, %v1825, %v1826
        %v1828 = vsel %vm744, %v1824, %v1825
        %v1829 = vsel %vm744, %v1826, %v1824
        %v1830 = vadd.f32 %v1784, %v1829
        %v1831 = vadd.f32 %v1783, %v1828
        %v1832 = vadd.f32 %v1782, %v1827
        %v1833 = vmul.f32 %v1058, %v1705
        %v1834 = vmul.f32 %v1058, %v1707
        %v1835 = vmul.f32 %v1058, %v1709
        %v1836 = vmul.f32 %v1062, %v1711
        %v1837 = vmul.f32 %v1062, %v1713
        %v1838 = vmul.f32 %v1062, %v1715
        %v1839 = vadd.f32 %v1833, %v1836
        %v1840 = vadd.f32 %v1834, %v1837
        %v1841 = vadd.f32 %v1835, %v1838
        %v1842 = vmul.f32 %v1069, %v1717
        %v1843 = vmul.f32 %v1069, %v1719
        %v1844 = vmul.f32 %v1069, %v1721
        %v1845 = vadd.f32 %v1839, %v1842
        %v1846 = vadd.f32 %v1840, %v1843
        %v1847 = vadd.f32 %v1841, %v1844
        %v1848 = vmul.f32 %v1076, %v1701
        %v1849 = vmul.f32 %v1076, %v1702
        %v1850 = vmul.f32 %v1076, %v1703
        %v1851 = vadd.f32 %v1845, %v1848
        %v1852 = vadd.f32 %v1846, %v1849
        %v1853 = vadd.f32 %v1847, %v1850
        %v1854 = vmul.f32 %v1083, %v1723
        %v1855 = vmul.f32 %v1083, %v1725
        %v1856 = vmul.f32 %v1083, %v1727
        %v1857 = vadd.f32 %v1851, %v1854
        %v1858 = vadd.f32 %v1852, %v1855
        %v1859 = vadd.f32 %v1853, %v1856
        %v1860 = vmul.f32 %v1090, %v1729
        %v1861 = vmul.f32 %v1090, %v1731
        %v1862 = vmul.f32 %v1090, %v1733
        %v1863 = vadd.f32 %v1857, %v1860
        %v1864 = vadd.f32 %v1858, %v1861
        %v1865 = vadd.f32 %v1859, %v1862
        %v1866 = vmul.f32 %v1097, %v1735
        %v1867 = vmul.f32 %v1097, %v1737
        %v1868 = vmul.f32 %v1097, %v1739
        %v1869 = vadd.f32 %v1863, %v1866
        %v1870 = vadd.f32 %v1864, %v1867
        %v1871 = vadd.f32 %v1865, %v1868
        %v1872 = vrot.slane %v1869, 7
        %v1873 = vrot.slane %v1870, 7
        %v1874 = vrot.slane %v1871, 7
        %v1875 = vsel %vm625, %v1873, %v1874
        %v1876 = vsel %vm625, %v1872, %v1873
        %v1877 = vsel %vm625, %v1874, %v1872
        %v1878 = vadd.f32 %v1830, %v1877
        %v1879 = vadd.f32 %v1831, %v1876
        %v1880 = vadd.f32 %v1832, %v1875
        %v1881 = vmul.f32 %v1113, %v1705
        %v1882 = vmul.f32 %v1113, %v1707
        %v1883 = vmul.f32 %v1113, %v1709
        %v1884 = vmul.f32 %v1117, %v1711
        %v1885 = vmul.f32 %v1117, %v1713
        %v1886 = vmul.f32 %v1117, %v1715
        %v1887 = vadd.f32 %v1881, %v1884
        %v1888 = vadd.f32 %v1882, %v1885
        %v1889 = vadd.f32 %v1883, %v1886
        %v1890 = vmul.f32 %v1124, %v1717
        %v1891 = vmul.f32 %v1124, %v1719
        %v1892 = vmul.f32 %v1124, %v1721
        %v1893 = vadd.f32 %v1887, %v1890
        %v1894 = vadd.f32 %v1888, %v1891
        %v1895 = vadd.f32 %v1889, %v1892
        %v1896 = vmul.f32 %v1131, %v1701
        %v1897 = vmul.f32 %v1131, %v1702
        %v1898 = vmul.f32 %v1131, %v1703
        %v1899 = vadd.f32 %v1893, %v1896
        %v1900 = vadd.f32 %v1894, %v1897
        %v1901 = vadd.f32 %v1895, %v1898
        %v1902 = vmul.f32 %v1138, %v1723
        %v1903 = vmul.f32 %v1138, %v1725
        %v1904 = vmul.f32 %v1138, %v1727
        %v1905 = vadd.f32 %v1899, %v1902
        %v1906 = vadd.f32 %v1900, %v1903
        %v1907 = vadd.f32 %v1901, %v1904
        %v1908 = vmul.f32 %v1145, %v1729
        %v1909 = vmul.f32 %v1145, %v1731
        %v1910 = vmul.f32 %v1145, %v1733
        %v1911 = vadd.f32 %v1905, %v1908
        %v1912 = vadd.f32 %v1906, %v1909
        %v1913 = vadd.f32 %v1907, %v1910
        %v1914 = vmul.f32 %v1152, %v1735
        %v1915 = vmul.f32 %v1152, %v1737
        %v1916 = vmul.f32 %v1152, %v1739
        %v1917 = vadd.f32 %v1911, %v1914
        %v1918 = vadd.f32 %v1912, %v1915
        %v1919 = vadd.f32 %v1913, %v1916
        %v1920 = vadd.f32 %v1878, %v1917
        %v1921 = vadd.f32 %v1879, %v1918
        %v1922 = vadd.f32 %v1880, %v1919
        %v1923 = vmul.f32 %v1162, %v1705
        %v1924 = vmul.f32 %v1162, %v1707
        %v1925 = vmul.f32 %v1162, %v1709
        %v1926 = vmul.f32 %v1166, %v1711
        %v1927 = vmul.f32 %v1166, %v1713
        %v1928 = vmul.f32 %v1166, %v1715
        %v1929 = vadd.f32 %v1923, %v1926
        %v1930 = vadd.f32 %v1924, %v1927
        %v1931 = vadd.f32 %v1925, %v1928
        %v1932 = vmul.f32 %v1173, %v1717
        %v1933 = vmul.f32 %v1173, %v1719
        %v1934 = vmul.f32 %v1173, %v1721
        %v1935 = vadd.f32 %v1929, %v1932
        %v1936 = vadd.f32 %v1930, %v1933
        %v1937 = vadd.f32 %v1931, %v1934
        %v1938 = vmul.f32 %v1180, %v1701
        %v1939 = vmul.f32 %v1180, %v1702
        %v1940 = vmul.f32 %v1180, %v1703
        %v1941 = vadd.f32 %v1935, %v1938
        %v1942 = vadd.f32 %v1936, %v1939
        %v1943 = vadd.f32 %v1937, %v1940
        %v1944 = vmul.f32 %v1187, %v1723
        %v1945 = vmul.f32 %v1187, %v1725
        %v1946 = vmul.f32 %v1187, %v1727
        %v1947 = vadd.f32 %v1941, %v1944
        %v1948 = vadd.f32 %v1942, %v1945
        %v1949 = vadd.f32 %v1943, %v1946
        %v1950 = vmul.f32 %v1194, %v1729
        %v1951 = vmul.f32 %v1194, %v1731
        %v1952 = vmul.f32 %v1194, %v1733
        %v1953 = vadd.f32 %v1947, %v1950
        %v1954 = vadd.f32 %v1948, %v1951
        %v1955 = vadd.f32 %v1949, %v1952
        %v1956 = vmul.f32 %v1201, %v1735
        %v1957 = vmul.f32 %v1201, %v1737
        %v1958 = vmul.f32 %v1201, %v1739
        %v1959 = vadd.f32 %v1953, %v1956
        %v1960 = vadd.f32 %v1954, %v1957
        %v1961 = vadd.f32 %v1955, %v1958
        %v1962 = vrot.slane %v1959, 1
        %v1963 = vrot.slane %v1960, 1
        %v1964 = vrot.slane %v1961, 1
        %v1965 = vsel %vm671, %v1963, %v1964
        %v1966 = vsel %vm671, %v1962, %v1963
        %v1967 = vsel %vm671, %v1964, %v1962
        %v1968 = vadd.f32 %v1920, %v1966
        %v1969 = vadd.f32 %v1921, %v1965
        %v1970 = vadd.f32 %v1922, %v1967
        %v1971 = vmul.f32 %v1217, %v1705
        %v1972 = vmul.f32 %v1217, %v1707
        %v1973 = vmul.f32 %v1217, %v1709
        %v1974 = vmul.f32 %v1221, %v1711
        %v1975 = vmul.f32 %v1221, %v1713
        %v1976 = vmul.f32 %v1221, %v1715
        %v1977 = vadd.f32 %v1971, %v1974
        %v1978 = vadd.f32 %v1972, %v1975
        %v1979 = vadd.f32 %v1973, %v1976
        %v1980 = vmul.f32 %v1228, %v1717
        %v1981 = vmul.f32 %v1228, %v1719
        %v1982 = vmul.f32 %v1228, %v1721
        %v1983 = vadd.f32 %v1977, %v1980
        %v1984 = vadd.f32 %v1978, %v1981
        %v1985 = vadd.f32 %v1979, %v1982
        %v1986 = vmul.f32 %v1235, %v1701
        %v1987 = vmul.f32 %v1235, %v1702
        %v1988 = vmul.f32 %v1235, %v1703
        %v1989 = vadd.f32 %v1983, %v1986
        %v1990 = vadd.f32 %v1984, %v1987
        %v1991 = vadd.f32 %v1985, %v1988
        %v1992 = vmul.f32 %v1242, %v1723
        %v1993 = vmul.f32 %v1242, %v1725
        %v1994 = vmul.f32 %v1242, %v1727
        %v1995 = vadd.f32 %v1989, %v1992
        %v1996 = vadd.f32 %v1990, %v1993
        %v1997 = vadd.f32 %v1991, %v1994
        %v1998 = vmul.f32 %v1249, %v1729
        %v1999 = vmul.f32 %v1249, %v1731
        %v2000 = vmul.f32 %v1249, %v1733
        %v2001 = vadd.f32 %v1995, %v1998
        %v2002 = vadd.f32 %v1996, %v1999
        %v2003 = vadd.f32 %v1997, %v2000
        %v2004 = vmul.f32 %v1256, %v1735
        %v2005 = vmul.f32 %v1256, %v1737
        %v2006 = vmul.f32 %v1256, %v1739
        %v2007 = vadd.f32 %v2001, %v2004
        %v2008 = vadd.f32 %v2002, %v2005
        %v2009 = vadd.f32 %v2003, %v2006
        %v2010 = vrot.slane %v2007, 2
        %v2011 = vrot.slane %v2008, 2
        %v2012 = vrot.slane %v2009, 2
        %v2013 = vsel %vm900, %v2011, %v2012
        %v2014 = vsel %vm900, %v2010, %v2011
        %v2015 = vsel %vm900, %v2012, %v2010
        %v2016 = vadd.f32 %v1968, %v2014
        %v2017 = vadd.f32 %v1969, %v2013
        %v2018 = vadd.f32 %v1970, %v2015
        %v2019 = vmul.f32 %v1272, %v1705
        %v2020 = vmul.f32 %v1272, %v1707
        %v2021 = vmul.f32 %v1272, %v1709
        %v2022 = vmul.f32 %v1276, %v1711
        %v2023 = vmul.f32 %v1276, %v1713
        %v2024 = vmul.f32 %v1276, %v1715
        %v2025 = vadd.f32 %v2019, %v2022
        %v2026 = vadd.f32 %v2020, %v2023
        %v2027 = vadd.f32 %v2021, %v2024
        %v2028 = vmul.f32 %v1283, %v1717
        %v2029 = vmul.f32 %v1283, %v1719
        %v2030 = vmul.f32 %v1283, %v1721
        %v2031 = vadd.f32 %v2025, %v2028
        %v2032 = vadd.f32 %v2026, %v2029
        %v2033 = vadd.f32 %v2027, %v2030
        %v2034 = vmul.f32 %v1290, %v1701
        %v2035 = vmul.f32 %v1290, %v1702
        %v2036 = vmul.f32 %v1290, %v1703
        %v2037 = vadd.f32 %v2031, %v2034
        %v2038 = vadd.f32 %v2032, %v2035
        %v2039 = vadd.f32 %v2033, %v2036
        %v2040 = vmul.f32 %v1297, %v1723
        %v2041 = vmul.f32 %v1297, %v1725
        %v2042 = vmul.f32 %v1297, %v1727
        %v2043 = vadd.f32 %v2037, %v2040
        %v2044 = vadd.f32 %v2038, %v2041
        %v2045 = vadd.f32 %v2039, %v2042
        %v2046 = vmul.f32 %v1304, %v1729
        %v2047 = vmul.f32 %v1304, %v1731
        %v2048 = vmul.f32 %v1304, %v1733
        %v2049 = vadd.f32 %v2043, %v2046
        %v2050 = vadd.f32 %v2044, %v2047
        %v2051 = vadd.f32 %v2045, %v2048
        %v2052 = vmul.f32 %v1311, %v1735
        %v2053 = vmul.f32 %v1311, %v1737
        %v2054 = vmul.f32 %v1311, %v1739
        %v2055 = vadd.f32 %v2049, %v2052
        %v2056 = vadd.f32 %v2050, %v2053
        %v2057 = vadd.f32 %v2051, %v2054
        %v2058 = vrot.slane %v2055, 3
        %v2059 = vrot.slane %v2056, 3
        %v2060 = vrot.slane %v2057, 3
        %v2061 = vsel %vm1321, %v2059, %v2060
        %v2062 = vsel %vm1321, %v2058, %v2059
        %v2063 = vsel %vm1321, %v2060, %v2058
        %v2064 = vadd.f32 %v2016, %v2062
        %v2065 = vadd.f32 %v2017, %v2061
        %v2066 = vadd.f32 %v2018, %v2063
        %v2067 = vadd.f32 %v2064, %v1328
        %v2068 = vadd.f32 %v2065, %v1328
        %v2069 = vadd.f32 %v2066, %v1328
        %v2070 = vmul.f32 %v2067, %v417
        %v2071 = vmul.f32 %v2068, %v418
        %v2072 = vmul.f32 %v2069, %v419
        %2073 = vst [vmem:[%s391] sm:$0xff] %v2070
        %2074 = vst [vmem:[%s391 + $0x8] sm:$0xff] %v2071
        %2075 = vst [vmem:[%s391 + $0x10] sm:$0xff] %v2072
        %p2076 = scmp.lt.s32.totalorder %s26, 2
        %s2077 = scalar_select %p2076, %s26, 2
        %p2078 = scmp.lt.s32.totalorder %s27, 0
        %s2079 = scalar_select %p2078, %s27, 0
        %s2080 = smul.addr %s2079, 3
        %s2081 = smul.addr %s2077, 3
        %s2082 = sadd.s32 %s2080, %s2081
        %s2083 = smul.addr %s2082, 8
        %s2084 = scalar_lea.vmem %s7, %s2083
        // Predicated region
        $region73: #{cnn_dpe_forward.1} parent=47 // pred_check
          %p2085 = pneg %p208
        $region74: #{cnn_dpe_forward.1} parent=47 // pred_check_branch
          %2087 = sbr.rel (%p2085) target = $region76
        $region75: #{cnn_dpe_forward.1} parent=47 // pred_region
          _
        $region76: #{cnn_dpe_forward.1} parent=47 // pred_fallthru
          _
      $region48: #{cnn_dpe_forward.1} parent=5 // pred_fallthru
        _
      %p2088 = scmp.le.s32.totalorder 2, %s17
      // Predicated region
      $region77: #{cnn_dpe_forward.1} parent=5 // pred_check
        %p2089 = pneg %p2088
      $region78: #{cnn_dpe_forward.1} parent=5 // pred_check_branch
        %2091 = sbr.rel (%p2089) target = $region80
      $region79: #{cnn_dpe_forward.1} parent=5 // pred_region
        %s2092 = ssub.s32 %s17, 2
        // Predicated region
        $region81: #{cnn_dpe_forward.1} parent=79 // pred_check
          %p2093 = pneg %p214
        $region82: #{cnn_dpe_forward.1} parent=79 // pred_check_branch
          %2095 = sbr.rel (%p2093) target = $region84
        $region83: #{cnn_dpe_forward.1} parent=79 // pred_region
          %p2096 = scmp.lt.s32.totalorder %s28, 2
          %s2097 = scalar_select %p2096, %s28, 2
          %p2098 = scmp.lt.s32.totalorder %s29, 0
          %s2099 = scalar_select %p2098, %s29, 0
          %s2100 = smul.addr %s2099, 3
          %s2101 = smul.addr %s2097, 3
          %s2102 = sadd.s32 %s2100, %s2101
          %s2103 = smul.addr %s2102, 8
          %s2104 = scalar_lea.vmem %s7, %s2103
        $region84: #{cnn_dpe_forward.1} parent=79 // pred_fallthru
          _
      $region80: #{cnn_dpe_forward.1} parent=5 // pred_fallthru
        _
    $region6: #{cnn_dpe_forward.1} parent=1 // loop_footer
      %s21 = sadd.s32 1, %s17
    $region7: #{cnn_dpe_forward.1} parent=1 // loop_footer_branch
      %16 = sbr.rel target = $region3
    $region8: #{cnn_dpe_forward.1} parent=1 // loop_exit
      _
    %2105 = vsyncpa [#allocation3], 1
    %s2106 = scalar_lea.sflag [#allocation3], 1
    %2107 = vsyncpa %s2106, 1
    %2108 = vsyncpa [#allocation5], 1
    %2109 = vsyncpa [#allocation8], 1
    %2110 = vsyncpa [#allocation11], 1

</llo_original>
